<compile_context>
chip_gen: v6e
topology: v6e:2x2x1
jax: 0.10.0
libtpu: 0.0.40
codegen_flags: <defaults>
</compile_context>

<pallas_src>
import jax
import jax.numpy as jnp
import numpy as np
from jax.experimental import pallas as pl
from jax.experimental.pallas import tpu as pltpu

# ----------------------------- configuration (small but module-consistent) ---
B = 2
EMB = 128            # embedding_dim (UperNet num_labels = 128 in the module)
H = W = 16           # spatial size of the decoder logits
HW = H * W
N_BINS = 100         # n_bins default
NB_PAD = 128         # bin axis padded to a full lane width
HID = 256            # regressor hidden width (hard-coded in the module)
MIN_VAL = 0.1
MAX_VAL = 10.0
NEG_SLOPE = 0.01     # nn.LeakyReLU default negative slope
K_IM2COL = 9 * EMB   # im2col contraction size for the 3x3 conv


# ============================ fused forward kernel ===========================
def _fused_kernel(y_ref, patches_ref, wf_ref, bf_ref,
                  w1_ref, b1_ref, w2_ref, b2_ref, w3_ref, b3_ref,
                  cum_ref, pred_ref):
    f32 = jnp.float32
    bf16 = jnp.bfloat16
    lane = jax.lax.broadcasted_iota(jnp.int32, (1, NB_PAD), 1)

    # --- bin-width regressor MLP (bf16 weights/activations, f32 accumulate) --
    h = jnp.dot(y_ref[...].astype(bf16), w1_ref[...],
                preferred_element_type=f32) + b1_ref[...]
    h = jnp.where(h > 0, h, NEG_SLOPE * h)
    h = jnp.dot(h.astype(bf16), w2_ref[...],
                preferred_element_type=f32) + b2_ref[...]
    h = jnp.where(h > 0, h, NEG_SLOPE * h)
    h = jnp.dot(h.astype(bf16), w3_ref[...],
                preferred_element_type=f32) + b3_ref[...]              # (1, NB_PAD)
    # 'linear' normalization: relu + eps, padded bins forced to exactly 0
    h = jnp.where(lane < N_BINS, jnp.maximum(h, 0.0) + 0.1, 0.0)
    bwn = h / jnp.sum(h, axis=1, keepdims=True)                        # (1, NB_PAD)

    # --- widths -> inclusive cumsum (roll-based log-scan) -> bin centers -----
    widths = (MAX_VAL - MIN_VAL) * bwn                                 # (1, NB_PAD)
    cum = widths
    for s in (1, 2, 4, 8, 16, 32, 64):                                 # Hillis-Steele
        cum = cum + jnp.where(lane >= s, pltpu.roll(cum, s, axis=1), 0.0)
    cum_ref[...] = cum
    centers = MIN_VAL + cum - 0.5 * widths                             # (1, NB_PAD)

    # --- fused 3x3 conv + 1x1 conv_out logits, softmax, expected depth -------
    logits = jnp.dot(patches_ref[...], wf_ref[...],
                     preferred_element_type=f32) + bf_ref[...]         # (HW, NB_PAD)
    m = jnp.max(logits, axis=-1, keepdims=True)
    e = jnp.exp(logits - m)                 # padded bins: exp(-1e30 - m) == 0
    co = jnp.concatenate([centers, jnp.ones_like(centers)], axis=0)    # (2, NB_PAD)
    # single MXU op with transposed rhs: row 0 = numerator, row 1 = denominator
    nd = jax.lax.dot_general(co, e, (((1,), (1,)), ((), ())),
                             preferred_element_type=f32)               # (2, HW)
    pred_ref[...] = nd[0:1, :] * pl.reciprocal(nd[1:2, :], approx=True)


# ================================ wrapper ====================================
def _im2col(x_nhwc):
    """(B,H,W,C) -> (B, H*W, 9*C) patches matching w_conv.reshape(9*C, C)."""
    xp = jnp.pad(x_nhwc, ((0, 0), (1, 1), (1, 1), (0, 0)))
    taps = [xp[:, dy:dy + H, dx:dx + W, :] for dy in range(3) for dx in range(3)]
    return jnp.concatenate(taps, axis=-1).reshape(B, HW, K_IM2COL)


def pack_params(params):
    """One-time parameter packing (kept OUT of the per-call jitted path)."""
    f32, bf16 = jnp.float32, jnp.bfloat16
    hi = jax.lax.Precision.HIGHEST
    pad = NB_PAD - N_BINS
    w_out_p = jnp.pad(params['w_out'].astype(f32), ((0, 0), (0, pad)))  # (EMB, NB_PAD)
    wc = params['w_conv'].reshape(K_IM2COL, EMB).astype(f32)
    wf = jnp.dot(wc, w_out_p, precision=hi).astype(bf16)                # fused conv weight
    bf_ = (jnp.dot(params['b_conv'].astype(f32), w_out_p, precision=hi)
           + jnp.pad(params['b_out'], (0, pad))
           + jnp.where(jnp.arange(NB_PAD) < N_BINS, 0.0, -1e30))        # padded-bin logit bias
    return {
        'wf': wf,                                                       # (K_IM2COL, NB_PAD) bf16
        'bf': bf_.reshape(1, NB_PAD).astype(f32),
        'w1': params['w1'].astype(bf16),
        'b1': params['b1'].reshape(1, HID).astype(f32),
        'w2': params['w2'].astype(bf16),
        'b2': params['b2'].reshape(1, HID).astype(f32),
        'w3': jnp.pad(params['w3'], ((0, 0), (0, pad))).astype(bf16),   # zero cols -> h3_pad = 0
        'b3': jnp.pad(params['b3'], (0, pad)).reshape(1, NB_PAD).astype(f32),
    }


@jax.jit
def swin_adabin_forward(enc_dec_pred_nchw, packed):
    f32 = jnp.float32
    x = jnp.transpose(enc_dec_pred_nchw, (0, 2, 3, 1))          # NCHW -> NHWC, f32
    y = jnp.mean(x, axis=(1, 2)).reshape(B, 1, EMB)             # spatial mean in f32
    patches = _im2col(x).astype(jnp.bfloat16)                   # (B, HW, 9*EMB)

    def full(shape):
        n = len(shape)
        return pl.BlockSpec(shape, lambda b, n=n: (0,) * n)

    flops = 2 * B * (HW * K_IM2COL * NB_PAD + EMB * HID + HID * HID
                     + HID * NB_PAD + 2 * NB_PAD * HW)
    bytes_accessed = (B * HW * K_IM2COL * 2 + K_IM2COL * NB_PAD * 2
                      + B * EMB * 4
                      + (EMB * HID + HID * HID + HID * NB_PAD) * 2
                      + (2 * HID + 2 * NB_PAD) * 4
                      + B * (NB_PAD + HW) * 4)

    cum, pred_flat = pl.pallas_call(
        _fused_kernel,
        out_shape=(jax.ShapeDtypeStruct((B, 1, NB_PAD), f32),
                   jax.ShapeDtypeStruct((B, 1, HW), f32)),
        grid=(B,),
        in_specs=[
            pl.BlockSpec((None, 1, EMB), lambda b: (b, 0, 0)),          # y
            pl.BlockSpec((None, HW, K_IM2COL), lambda b: (b, 0, 0)),    # patches
            full((K_IM2COL, NB_PAD)), full((1, NB_PAD)),                # fused conv
            full((EMB, HID)), full((1, HID)),                           # regressor L1
            full((HID, HID)), full((1, HID)),                           # regressor L2
            full((HID, NB_PAD)), full((1, NB_PAD)),                     # regressor L3
        ],
        out_specs=(pl.BlockSpec((None, 1, NB_PAD), lambda b: (b, 0, 0)),
                   pl.BlockSpec((None, 1, HW), lambda b: (b, 0, 0))),
        compiler_params=pltpu.CompilerParams(
            dimension_semantics=("parallel",)),
        cost_estimate=pl.CostEstimate(flops=flops,
                                      transcendentals=B * HW * NB_PAD,
                                      bytes_accessed=bytes_accessed),
    )(y, patches, packed['wf'], packed['bf'],
      packed['w1'], packed['b1'], packed['w2'], packed['b2'],
      packed['w3'], packed['b3'])

    cum = cum[:, 0, :N_BINS]                                    # (B, n_bins)
    bin_edges = jnp.concatenate(
        [jnp.full((B, 1), MIN_VAL, f32), MIN_VAL + cum], axis=1)     # (B, n_bins+1)
    pred = pred_flat[:, 0, :].reshape(B, 1, H, W)                    # (B, 1, H, W)
    return bin_edges, pred


# ============================ reference (plain JAX) ===========================
def reference_forward(enc_dec_pred_nchw, params,
                      min_val=MIN_VAL, max_val=MAX_VAL):
    hi = jax.lax.Precision.HIGHEST
    x = jnp.transpose(enc_dec_pred_nchw, (0, 2, 3, 1))
    xp = jnp.pad(x, ((0, 0), (1, 1), (1, 1), (0, 0)))
    ram = jnp.zeros((B, H, W, EMB), jnp.float32)
    for dy in range(3):
        for dx in range(3):
            ram = ram + jnp.einsum('bhwc,cd->bhwd',
                                   xp[:, dy:dy + H, dx:dx + W, :],
                                   params['w_conv'][dy, dx], precision=hi)
    ram = ram + params['b_conv']
    y = x.mean(axis=(1, 2))
    h = jnp.dot(y, params['w1'], precision=hi) + params['b1']
    h = jnp.where(h > 0, h, NEG_SLOPE * h)
    h = jnp.dot(h, params['w2'], precision=hi) + params['b2']
    h = jnp.where(h > 0, h, NEG_SLOPE * h)
    h = jnp.dot(h, params['w3'], precision=hi) + params['b3']
    h = jnp.maximum(h, 0.0) + 0.1
    bwn = h / h.sum(axis=1, keepdims=True)
    logits = jnp.einsum('bhwc,cn->bhwn', ram, params['w_out'],
                        precision=hi) + params['b_out']
    out = jax.nn.softmax(logits, axis=-1)
    bw = (max_val - min_val) * bwn
    bw = jnp.concatenate([jnp.full((B, 1), min_val, bw.dtype), bw], axis=1)
    edges = jnp.cumsum(bw, axis=1)
    centers = 0.5 * (edges[:, :-1] + edges[:, 1:])
    pred = jnp.sum(out * centers[:, None, None, :], axis=-1, keepdims=True)
    return edges, jnp.transpose(pred, (0, 3, 1, 2))


# ============================ deterministic params ===========================
def init_params(key):
    ks = jax.random.split(key, 10)

    def u(k, shape, fan_in):
        bound = 1.0 / np.sqrt(fan_in)
        return jax.random.uniform(k, shape, jnp.float32, -bound, bound)

    return {
        'w_conv': u(ks[0], (3, 3, EMB, EMB), 3 * 3 * EMB),
        'b_conv': u(ks[1], (EMB,), 3 * 3 * EMB),
        'w1': u(ks[2], (EMB, HID), EMB),
        'b1': u(ks[3], (HID,), EMB),
        'w2': u(ks[4], (HID, HID), HID),
        'b2': u(ks[5], (HID,), HID),
        'w3': u(ks[6], (HID, N_BINS), HID),
        'b3': u(ks[7], (N_BINS,), HID),
        'w_out': u(ks[8], (EMB, N_BINS), EMB),   # 1x1 conv as (Cin, Cout)
        'b_out': u(ks[9], (N_BINS,), EMB),
    }


if __name__ == "__main__":
    key = jax.random.PRNGKey(0)
    k_x, k_p = jax.random.split(key)
    # enc_dec_pred: the 128-channel UperNet decoder logits (backbone not translated)
    enc_dec_pred = jax.random.normal(k_x, (B, EMB, H, W), jnp.float32)
    params = init_params(k_p)
    packed = pack_params(params)          # one-time parameter packing

    bin_edges, pred = jax.block_until_ready(
        swin_adabin_forward(enc_dec_pred, packed))

    edges_exp, pred_exp = reference_forward(enc_dec_pred, params)
    np.testing.assert_allclose(np.asarray(bin_edges), np.asarray(edges_exp),
                               rtol=2e-2, atol=2e-2)
    np.testing.assert_allclose(np.asarray(pred), np.asarray(pred_exp),
                               rtol=2e-2, atol=2e-2)
    assert bin_edges.shape == (B, N_BINS + 1) and pred.shape == (B, 1, H, W)
    print("KERNEL_OK")
</pallas_src>

<mosaic_0001>
module attributes {stable_mosaic.version = 11 : i64} {
  func.func @_fused_kernel(%arg0: i32, %arg1: memref<1x1x128xf32, #tpu.memory_space<vmem>>, %arg2: memref<1x256x1152xbf16, #tpu.memory_space<vmem>>, %arg3: memref<1152x128xbf16, #tpu.memory_space<vmem>>, %arg4: memref<1x128xf32, #tpu.memory_space<vmem>>, %arg5: memref<128x256xbf16, #tpu.memory_space<vmem>>, %arg6: memref<1x256xf32, #tpu.memory_space<vmem>>, %arg7: memref<256x256xbf16, #tpu.memory_space<vmem>>, %arg8: memref<1x256xf32, #tpu.memory_space<vmem>>, %arg9: memref<256x128xbf16, #tpu.memory_space<vmem>>, %arg10: memref<1x128xf32, #tpu.memory_space<vmem>>, %arg11: memref<1x1x128xf32, #tpu.memory_space<vmem>>, %arg12: memref<1x1x256xf32, #tpu.memory_space<vmem>>) attributes {dimension_semantics = [#tpu.dimension_semantics<parallel>], iteration_bounds = array<i64: 2>, scalar_prefetch = 0 : i64, scratch_operands = 0 : i64, tpu.core_type = #tpu.core_type<tc>, window_params = [{transform_indices = @transform_0, window_bounds = array<i64: 1, 1, 128>}, {transform_indices = @transform_1, window_bounds = array<i64: 1, 256, 1152>}, {pipeline_mode = #tpu.pipeline_mode<synchronous>, transform_indices = @transform_2, window_bounds = array<i64: 1152, 128>}, {pipeline_mode = #tpu.pipeline_mode<synchronous>, transform_indices = @transform_3, window_bounds = array<i64: 1, 128>}, {pipeline_mode = #tpu.pipeline_mode<synchronous>, transform_indices = @transform_4, window_bounds = array<i64: 128, 256>}, {pipeline_mode = #tpu.pipeline_mode<synchronous>, transform_indices = @transform_5, window_bounds = array<i64: 1, 256>}, {pipeline_mode = #tpu.pipeline_mode<synchronous>, transform_indices = @transform_6, window_bounds = array<i64: 256, 256>}, {pipeline_mode = #tpu.pipeline_mode<synchronous>, transform_indices = @transform_7, window_bounds = array<i64: 1, 256>}, {pipeline_mode = #tpu.pipeline_mode<synchronous>, transform_indices = @transform_8, window_bounds = array<i64: 256, 128>}, {pipeline_mode = #tpu.pipeline_mode<synchronous>, transform_indices = @transform_9, window_bounds = array<i64: 1, 128>}, {transform_indices = @transform_10, window_bounds = array<i64: 1, 1, 128>}, {transform_indices = @transform_11, window_bounds = array<i64: 1, 1, 256>}]} {
    %0 = tpu.iota {dimensions = array<i32: 1>} : vector<1x128xi32>
    %c0 = arith.constant 0 : index
    %c0_0 = arith.constant 0 : index
    %c0_1 = arith.constant 0 : index
    %1 = vector.load %arg1[%c0, %c0_0, %c0_1] : memref<1x1x128xf32, #tpu.memory_space<vmem>>, vector<1x1x128xf32>
    %2 = vector.shape_cast %1 : vector<1x1x128xf32> to vector<1x128xf32>
    %3 = arith.truncf %2 : vector<1x128xf32> to vector<1x128xbf16>
    %c0_2 = arith.constant 0 : index
    %c0_3 = arith.constant 0 : index
    %4 = vector.load %arg5[%c0_2, %c0_3] : memref<128x256xbf16, #tpu.memory_space<vmem>>, vector<128x256xbf16>
    %cst = arith.constant dense<0.000000e+00> : vector<1x256xf32>
    %5 = tpu.matmul %3, %4, %cst {dimension_numbers = #tpu.dot_dimension_numbers<[1], [0], [0], [1], [0, 0, 1, 1], [], []>} : vector<1x128xbf16>, vector<128x256xbf16>, vector<1x256xf32> -> vector<1x256xf32>
    %c0_4 = arith.constant 0 : index
    %c0_5 = arith.constant 0 : index
    %6 = vector.load %arg6[%c0_4, %c0_5] : memref<1x256xf32, #tpu.memory_space<vmem>>, vector<1x256xf32>
    %7 = arith.addf %5, %6 : vector<1x256xf32>
    %cst_6 = arith.constant 0.000000e+00 : f32
    %8 = vector.broadcast %cst_6 : f32 to vector<1x256xf32>
    %9 = arith.cmpf ogt, %7, %8 : vector<1x256xf32>
    %cst_7 = arith.constant 0.00999999977 : f32
    %10 = vector.broadcast %cst_7 : f32 to vector<1x256xf32>
    %11 = arith.mulf %10, %7 : vector<1x256xf32>
    %12 = arith.select %9, %7, %11 : vector<1x256xi1>, vector<1x256xf32>
    %13 = arith.truncf %12 : vector<1x256xf32> to vector<1x256xbf16>
    %c0_8 = arith.constant 0 : index
    %c0_9 = arith.constant 0 : index
    %14 = vector.load %arg7[%c0_8, %c0_9] : memref<256x256xbf16, #tpu.memory_space<vmem>>, vector<256x256xbf16>
    %cst_10 = arith.constant dense<0.000000e+00> : vector<1x256xf32>
    %15 = tpu.matmul %13, %14, %cst_10 {dimension_numbers = #tpu.dot_dimension_numbers<[1], [0], [0], [1], [0, 0, 1, 1], [], []>} : vector<1x256xbf16>, vector<256x256xbf16>, vector<1x256xf32> -> vector<1x256xf32>
    %c0_11 = arith.constant 0 : index
    %c0_12 = arith.constant 0 : index
    %16 = vector.load %arg8[%c0_11, %c0_12] : memref<1x256xf32, #tpu.memory_space<vmem>>, vector<1x256xf32>
    %17 = arith.addf %15, %16 : vector<1x256xf32>
    %cst_13 = arith.constant 0.000000e+00 : f32
    %18 = vector.broadcast %cst_13 : f32 to vector<1x256xf32>
    %19 = arith.cmpf ogt, %17, %18 : vector<1x256xf32>
    %cst_14 = arith.constant 0.00999999977 : f32
    %20 = vector.broadcast %cst_14 : f32 to vector<1x256xf32>
    %21 = arith.mulf %20, %17 : vector<1x256xf32>
    %22 = arith.select %19, %17, %21 : vector<1x256xi1>, vector<1x256xf32>
    %23 = arith.truncf %22 : vector<1x256xf32> to vector<1x256xbf16>
    %c0_15 = arith.constant 0 : index
    %c0_16 = arith.constant 0 : index
    %24 = vector.load %arg9[%c0_15, %c0_16] : memref<256x128xbf16, #tpu.memory_space<vmem>>, vector<256x128xbf16>
    %cst_17 = arith.constant dense<0.000000e+00> : vector<1x128xf32>
    %25 = tpu.matmul %23, %24, %cst_17 {dimension_numbers = #tpu.dot_dimension_numbers<[1], [0], [0], [1], [0, 0, 1, 1], [], []>} : vector<1x256xbf16>, vector<256x128xbf16>, vector<1x128xf32> -> vector<1x128xf32>
    %c0_18 = arith.constant 0 : index
    %c0_19 = arith.constant 0 : index
    %26 = vector.load %arg10[%c0_18, %c0_19] : memref<1x128xf32, #tpu.memory_space<vmem>>, vector<1x128xf32>
    %27 = arith.addf %25, %26 : vector<1x128xf32>
    %c100_i32 = arith.constant 100 : i32
    %28 = vector.broadcast %c100_i32 : i32 to vector<1x128xi32>
    %29 = arith.cmpi slt, %0, %28 : vector<1x128xi32>
    %cst_20 = arith.constant 0.000000e+00 : f32
    %30 = vector.broadcast %cst_20 : f32 to vector<1x128xf32>
    %31 = arith.maximumf %27, %30 : vector<1x128xf32>
    %cst_21 = arith.constant 1.000000e-01 : f32
    %32 = vector.broadcast %cst_21 : f32 to vector<1x128xf32>
    %33 = arith.addf %31, %32 : vector<1x128xf32>
    %cst_22 = arith.constant 0.000000e+00 : f32
    %34 = vector.broadcast %cst_22 : f32 to vector<1x128xf32>
    %35 = arith.select %29, %33, %34 : vector<1x128xi1>, vector<1x128xf32>
    %cst_23 = arith.constant dense<0.000000e+00> : vector<1xf32>
    %36 = vector.multi_reduction <add>, %35, %cst_23 [1] : vector<1x128xf32> to vector<1xf32>
    %37 = vector.shape_cast %36 : vector<1xf32> to vector<1x1xf32>
    %38 = vector.broadcast %37 : vector<1x1xf32> to vector<1x128xf32>
    %39 = arith.divf %35, %38 : vector<1x128xf32>
    %cst_24 = arith.constant 9.89999961 : f32
    %40 = vector.broadcast %cst_24 : f32 to vector<1x128xf32>
    %41 = arith.mulf %40, %39 : vector<1x128xf32>
    %c1_i32 = arith.constant 1 : i32
    %42 = vector.broadcast %c1_i32 : i32 to vector<1x128xi32>
    %43 = arith.cmpi sge, %0, %42 : vector<1x128xi32>
    %c1_i32_25 = arith.constant 1 : i32
    %44 = tpu.dynamic_rotate %41 by %c1_i32_25 dim 1 : vector<1x128xf32>, i32 -> vector<1x128xf32>
    %cst_26 = arith.constant 0.000000e+00 : f32
    %45 = vector.broadcast %cst_26 : f32 to vector<1x128xf32>
    %46 = arith.select %43, %44, %45 : vector<1x128xi1>, vector<1x128xf32>
    %47 = arith.addf %41, %46 : vector<1x128xf32>
    %c2_i32 = arith.constant 2 : i32
    %48 = vector.broadcast %c2_i32 : i32 to vector<1x128xi32>
    %49 = arith.cmpi sge, %0, %48 : vector<1x128xi32>
    %c2_i32_27 = arith.constant 2 : i32
    %50 = tpu.dynamic_rotate %47 by %c2_i32_27 dim 1 : vector<1x128xf32>, i32 -> vector<1x128xf32>
    %cst_28 = arith.constant 0.000000e+00 : f32
    %51 = vector.broadcast %cst_28 : f32 to vector<1x128xf32>
    %52 = arith.select %49, %50, %51 : vector<1x128xi1>, vector<1x128xf32>
    %53 = arith.addf %47, %52 : vector<1x128xf32>
    %c4_i32 = arith.constant 4 : i32
    %54 = vector.broadcast %c4_i32 : i32 to vector<1x128xi32>
    %55 = arith.cmpi sge, %0, %54 : vector<1x128xi32>
    %c4_i32_29 = arith.constant 4 : i32
    %56 = tpu.dynamic_rotate %53 by %c4_i32_29 dim 1 : vector<1x128xf32>, i32 -> vector<1x128xf32>
    %cst_30 = arith.constant 0.000000e+00 : f32
    %57 = vector.broadcast %cst_30 : f32 to vector<1x128xf32>
    %58 = arith.select %55, %56, %57 : vector<1x128xi1>, vector<1x128xf32>
    %59 = arith.addf %53, %58 : vector<1x128xf32>
    %c8_i32 = arith.constant 8 : i32
    %60 = vector.broadcast %c8_i32 : i32 to vector<1x128xi32>
    %61 = arith.cmpi sge, %0, %60 : vector<1x128xi32>
    %c8_i32_31 = arith.constant 8 : i32
    %62 = tpu.dynamic_rotate %59 by %c8_i32_31 dim 1 : vector<1x128xf32>, i32 -> vector<1x128xf32>
    %cst_32 = arith.constant 0.000000e+00 : f32
    %63 = vector.broadcast %cst_32 : f32 to vector<1x128xf32>
    %64 = arith.select %61, %62, %63 : vector<1x128xi1>, vector<1x128xf32>
    %65 = arith.addf %59, %64 : vector<1x128xf32>
    %c16_i32 = arith.constant 16 : i32
    %66 = vector.broadcast %c16_i32 : i32 to vector<1x128xi32>
    %67 = arith.cmpi sge, %0, %66 : vector<1x128xi32>
    %c16_i32_33 = arith.constant 16 : i32
    %68 = tpu.dynamic_rotate %65 by %c16_i32_33 dim 1 : vector<1x128xf32>, i32 -> vector<1x128xf32>
    %cst_34 = arith.constant 0.000000e+00 : f32
    %69 = vector.broadcast %cst_34 : f32 to vector<1x128xf32>
    %70 = arith.select %67, %68, %69 : vector<1x128xi1>, vector<1x128xf32>
    %71 = arith.addf %65, %70 : vector<1x128xf32>
    %c32_i32 = arith.constant 32 : i32
    %72 = vector.broadcast %c32_i32 : i32 to vector<1x128xi32>
    %73 = arith.cmpi sge, %0, %72 : vector<1x128xi32>
    %c32_i32_35 = arith.constant 32 : i32
    %74 = tpu.dynamic_rotate %71 by %c32_i32_35 dim 1 : vector<1x128xf32>, i32 -> vector<1x128xf32>
    %cst_36 = arith.constant 0.000000e+00 : f32
    %75 = vector.broadcast %cst_36 : f32 to vector<1x128xf32>
    %76 = arith.select %73, %74, %75 : vector<1x128xi1>, vector<1x128xf32>
    %77 = arith.addf %71, %76 : vector<1x128xf32>
    %c64_i32 = arith.constant 64 : i32
    %78 = vector.broadcast %c64_i32 : i32 to vector<1x128xi32>
    %79 = arith.cmpi sge, %0, %78 : vector<1x128xi32>
    %c64_i32_37 = arith.constant 64 : i32
    %80 = tpu.dynamic_rotate %77 by %c64_i32_37 dim 1 : vector<1x128xf32>, i32 -> vector<1x128xf32>
    %cst_38 = arith.constant 0.000000e+00 : f32
    %81 = vector.broadcast %cst_38 : f32 to vector<1x128xf32>
    %82 = arith.select %79, %80, %81 : vector<1x128xi1>, vector<1x128xf32>
    %83 = arith.addf %77, %82 : vector<1x128xf32>
    %c0_39 = arith.constant 0 : index
    %c0_40 = arith.constant 0 : index
    %c0_41 = arith.constant 0 : index
    %84 = vector.load %arg11[%c0_39, %c0_40, %c0_41] : memref<1x1x128xf32, #tpu.memory_space<vmem>>, vector<1x1x128xf32>
    %85 = vector.shape_cast %84 : vector<1x1x128xf32> to vector<1x128xf32>
    %86 = vector.shape_cast %83 : vector<1x128xf32> to vector<1x1x128xf32>
    tpu.vector_store %arg11[%c0_39, %c0_40, %c0_41], %86 {strides = array<i32>} : memref<1x1x128xf32, #tpu.memory_space<vmem>>, vector<1x1x128xf32>,
    %cst_42 = arith.constant 1.000000e-01 : f32
    %87 = vector.broadcast %cst_42 : f32 to vector<1x128xf32>
    %88 = arith.addf %87, %83 : vector<1x128xf32>
    %cst_43 = arith.constant 5.000000e-01 : f32
    %89 = vector.broadcast %cst_43 : f32 to vector<1x128xf32>
    %90 = arith.mulf %89, %41 : vector<1x128xf32>
    %91 = arith.subf %88, %90 : vector<1x128xf32>
    %c0_44 = arith.constant 0 : index
    %c0_45 = arith.constant 0 : index
    %c0_46 = arith.constant 0 : index
    %92 = vector.load %arg2[%c0_44, %c0_45, %c0_46] : memref<1x256x1152xbf16, #tpu.memory_space<vmem>>, vector<1x256x1152xbf16>
    %93 = vector.shape_cast %92 : vector<1x256x1152xbf16> to vector<256x1152xbf16>
    %c0_47 = arith.constant 0 : index
    %c0_48 = arith.constant 0 : index
    %94 = vector.load %arg3[%c0_47, %c0_48] : memref<1152x128xbf16, #tpu.memory_space<vmem>>, vector<1152x128xbf16>
    %cst_49 = arith.constant dense<0.000000e+00> : vector<256x128xf32>
    %95 = tpu.matmul %93, %94, %cst_49 {dimension_numbers = #tpu.dot_dimension_numbers<[1], [0], [0], [1], [0, 0, 1, 1], [], []>} : vector<256x1152xbf16>, vector<1152x128xbf16>, vector<256x128xf32> -> vector<256x128xf32>
    %c0_50 = arith.constant 0 : index
    %c0_51 = arith.constant 0 : index
    %96 = vector.load %arg4[%c0_50, %c0_51] : memref<1x128xf32, #tpu.memory_space<vmem>>, vector<1x128xf32>
    %97 = vector.broadcast %96 : vector<1x128xf32> to vector<256x128xf32>
    %98 = arith.addf %95, %97 : vector<256x128xf32>
    %cst_52 = arith.constant dense<0xFF800000> : vector<256xf32>
    %99 = vector.multi_reduction <maximumf>, %98, %cst_52 [1] : vector<256x128xf32> to vector<256xf32>
    %100 = vector.shape_cast %99 : vector<256xf32> to vector<256x1xf32>
    %101 = vector.broadcast %100 : vector<256x1xf32> to vector<256x128xf32>
    %102 = arith.subf %98, %101 : vector<256x128xf32>
    %103 = math.exp %102 : vector<256x128xf32>
    %cst_53 = arith.constant 1.000000e+00 : f32
    %104 = vector.broadcast %cst_53 : f32 to vector<1x128xf32>
    %105 = tpu.concatenate %91, %104 in 0 : vector<1x128xf32>, vector<1x128xf32> -> vector<2x128xf32>
    %cst_54 = arith.constant dense<0.000000e+00> : vector<2x256xf32>
    %106 = tpu.matmul %105, %103, %cst_54 {dimension_numbers = #tpu.dot_dimension_numbers<[1], [1], [0], [0], [0, 0, 1, 0], [], []>} : vector<2x128xf32>, vector<256x128xf32>, vector<2x256xf32> -> vector<2x256xf32>
    %107 = vector.extract_strided_slice %106 {offsets = [0, 0], sizes = [1, 256], strides = [1, 1]} : vector<2x256xf32> to vector<1x256xf32>
    %108 = vector.extract_strided_slice %106 {offsets = [1, 0], sizes = [1, 256], strides = [1, 1]} : vector<2x256xf32> to vector<1x256xf32>
    %109 = tpu.reciprocal %108 {approx = true} : vector<1x256xf32> -> vector<1x256xf32>
    %110 = arith.mulf %107, %109 : vector<1x256xf32>
    %c0_55 = arith.constant 0 : index
    %c0_56 = arith.constant 0 : index
    %c0_57 = arith.constant 0 : index
    %111 = vector.load %arg12[%c0_55, %c0_56, %c0_57] : memref<1x1x256xf32, #tpu.memory_space<vmem>>, vector<1x1x256xf32>
    %112 = vector.shape_cast %111 : vector<1x1x256xf32> to vector<1x256xf32>
    %113 = vector.shape_cast %110 : vector<1x256xf32> to vector<1x1x256xf32>
    tpu.vector_store %arg12[%c0_55, %c0_56, %c0_57], %113 {strides = array<i32>} : memref<1x1x256xf32, #tpu.memory_space<vmem>>, vector<1x1x256xf32>,
    return
  }
  func.func @transform_0(%arg0: i32) -> (i32, i32, i32) {
    %c0_i32 = arith.constant 0 : i32
    %c0_i32_0 = arith.constant 0 : i32
    %c0_i32_1 = arith.constant 0 : i32
    return %arg0, %c0_i32, %c0_i32_0 : i32, i32, i32
  }
  func.func @transform_1(%arg0: i32) -> (i32, i32, i32) {
    %c0_i32 = arith.constant 0 : i32
    %c0_i32_0 = arith.constant 0 : i32
    %c0_i32_1 = arith.constant 0 : i32
    return %arg0, %c0_i32, %c0_i32_0 : i32, i32, i32
  }
  func.func @transform_2(%arg0: i32) -> (i32, i32) {
    %c0_i32 = arith.constant 0 : i32
    %c0_i32_0 = arith.constant 0 : i32
    %c0_i32_1 = arith.constant 0 : i32
    return %c0_i32, %c0_i32_0 : i32, i32
  }
  func.func @transform_3(%arg0: i32) -> (i32, i32) {
    %c0_i32 = arith.constant 0 : i32
    %c0_i32_0 = arith.constant 0 : i32
    %c0_i32_1 = arith.constant 0 : i32
    return %c0_i32, %c0_i32_0 : i32, i32
  }
  func.func @transform_4(%arg0: i32) -> (i32, i32) {
    %c0_i32 = arith.constant 0 : i32
    %c0_i32_0 = arith.constant 0 : i32
    %c0_i32_1 = arith.constant 0 : i32
    return %c0_i32, %c0_i32_0 : i32, i32
  }
  func.func @transform_5(%arg0: i32) -> (i32, i32) {
    %c0_i32 = arith.constant 0 : i32
    %c0_i32_0 = arith.constant 0 : i32
    %c0_i32_1 = arith.constant 0 : i32
    return %c0_i32, %c0_i32_0 : i32, i32
  }
  func.func @transform_6(%arg0: i32) -> (i32, i32) {
    %c0_i32 = arith.constant 0 : i32
    %c0_i32_0 = arith.constant 0 : i32
    %c0_i32_1 = arith.constant 0 : i32
    return %c0_i32, %c0_i32_0 : i32, i32
  }
  func.func @transform_7(%arg0: i32) -> (i32, i32) {
    %c0_i32 = arith.constant 0 : i32
    %c0_i32_0 = arith.constant 0 : i32
    %c0_i32_1 = arith.constant 0 : i32
    return %c0_i32, %c0_i32_0 : i32, i32
  }
  func.func @transform_8(%arg0: i32) -> (i32, i32) {
    %c0_i32 = arith.constant 0 : i32
    %c0_i32_0 = arith.constant 0 : i32
    %c0_i32_1 = arith.constant 0 : i32
    return %c0_i32, %c0_i32_0 : i32, i32
  }
  func.func @transform_9(%arg0: i32) -> (i32, i32) {
    %c0_i32 = arith.constant 0 : i32
    %c0_i32_0 = arith.constant 0 : i32
    %c0_i32_1 = arith.constant 0 : i32
    return %c0_i32, %c0_i32_0 : i32, i32
  }
  func.func @transform_10(%arg0: i32) -> (i32, i32, i32) {
    %c0_i32 = arith.constant 0 : i32
    %c0_i32_0 = arith.constant 0 : i32
    %c0_i32_1 = arith.constant 0 : i32
    return %arg0, %c0_i32, %c0_i32_0 : i32, i32, i32
  }
  func.func @transform_11(%arg0: i32) -> (i32, i32, i32) {
    %c0_i32 = arith.constant 0 : i32
    %c0_i32_0 = arith.constant 0 : i32
    %c0_i32_1 = arith.constant 0 : i32
    return %arg0, %c0_i32, %c0_i32_0 : i32, i32, i32
  }
}

</mosaic_0001>

<llo_original>
// kernel: squeeze.3
$region0: #{squeeze.3}
  %s0 = inlined_call_operand.vmem [shape: f32[2,256], index: 0, kind: input, shape index: {}]
  %s1 = inlined_call_operand.hbm [shape: f32[2,1,16,16], index: 1, kind: output, shape index: {}]
  $region1: #{squeeze.3} parent=0
    #allocation0 [shape = 'u8[16384]{0}', space=vmem, size = 0x4000, scoped, tag = 'operand span for operand 1']
    #allocation1 [shape = 's32[1]{0}', space=sflag, size = 0x4, scoped, tag = 'scoped memory for squeeze.3']
    #allocation2 [shape = 'u8[8192]{0}', space=vmem, size = 0x2000, scoped, tag = 'scoped mem for input reshape']
    %2 = vsyncpa [#allocation1], 0
    %s4 = sshll.u32 1, 2
    %s5 = ssub.s32 %s4, 1
    %s6 = scalar_lea.vmem %s0, 2
    %v7 = vld [vmem:[%s6] sm:%s5]
    %s8 = scalar_lea.vmem [#allocation2], 8
    %9 = vst [vmem:[%s8] sm:%s5] %v7
    %v10 = vld [vmem:[%s0] sm:%s5]
    %11 = vst [vmem:[#allocation2] sm:%s5] %v10
    %v12 = vld [vmem:[#allocation2] sm:$0x3]
    %vm13 = vcmask 130048
    %14 = vst.msk [vmem:[#allocation0] ss:$16 sm:$0x3] %vm13, %v12
    %s15 = scalar_lea.vmem [#allocation2], 8
    %v16 = vld [vmem:[%s15] sm:$0x3]
    %vm17 = vcmask 130048
    %s18 = scalar_lea.vmem [#allocation0], 8
    %19 = vst.msk [vmem:[%s18] ss:$16 sm:$0x3] %vm17, %v16
    %v20 = vld.sshfl [vmem:[#allocation2] sm:$0xff pattern:$0x99999180]
    %21 = vrot.lane.b32.xlu0 %v20, 112
    %v22 = vpop.permute.xlu0 %21
    %vm23 = vcmask 130048
    %s24 = scalar_lea.vmem [#allocation0], 1
    %25 = vst.msk [vmem:[%s24] ss:$8 sm:$0xf] %vm23, %v22
    %v26 = vld.sshfl [vmem:[#allocation2] sm:$0xff pattern:$0x99999180]
    %27 = vrot.lane.b32.xlu0 %v26, 96
    %v28 = vpop.permute.xlu0 %27
    %vm29 = vcmask 130048
    %s30 = scalar_lea.vmem [#allocation0], 2
    %31 = vst.msk [vmem:[%s30] ss:$8 sm:$0xf] %vm29, %v28
    %v32 = vld.sshfl [vmem:[#allocation2] sm:$0xff pattern:$0x99999180]
    %33 = vrot.lane.b32.xlu0 %v32, 80
    %v34 = vpop.permute.xlu0 %33
    %vm35 = vcmask 130048
    %s36 = scalar_lea.vmem [#allocation0], 3
    %37 = vst.msk [vmem:[%s36] ss:$8 sm:$0xf] %vm35, %v34
    %v38 = vld.sshfl [vmem:[#allocation2] sm:$0xff pattern:$0x99999180]
    %39 = vrot.lane.b32.xlu0 %v38, 64
    %v40 = vpop.permute.xlu0 %39
    %vm41 = vcmask 130048
    %s42 = scalar_lea.vmem [#allocation0], 4
    %43 = vst.msk [vmem:[%s42] ss:$8 sm:$0xf] %vm41, %v40
    %v44 = vld.sshfl [vmem:[#allocation2] sm:$0xff pattern:$0x99999180]
    %45 = vrot.lane.b32.xlu0 %v44, 48
    %v46 = vpop.permute.xlu0 %45
    %vm47 = vcmask 130048
    %s48 = scalar_lea.vmem [#allocation0], 5
    %49 = vst.msk [vmem:[%s48] ss:$8 sm:$0xf] %vm47, %v46
    %v50 = vld.sshfl [vmem:[#allocation2] sm:$0xff pattern:$0x99999180]
    %51 = vrot.lane.b32.xlu0 %v50, 32
    %v52 = vpop.permute.xlu0 %51
    %vm53 = vcmask 130048
    %s54 = scalar_lea.vmem [#allocation0], 6
    %55 = vst.msk [vmem:[%s54] ss:$8 sm:$0xf] %vm53, %v52
    %v56 = vld.sshfl [vmem:[#allocation2] sm:$0xff pattern:$0x99999180]
    %57 = vrot.lane.b32.xlu0 %v56, 16
    %v58 = vpop.permute.xlu0 %57
    %vm59 = vcmask 130048
    %s60 = scalar_lea.vmem [#allocation0], 7
    %61 = vst.msk [vmem:[%s60] ss:$8 sm:$0xf] %vm59, %v58
    %s63 = ssub.s32 512, 512
    %64 = vsyncadd [#allocation1], %s63
    %s66 = sshll.u32 [#allocation0], 4
    %s67 = int_to_ptr.vmem [resolvable:$true] %s66
    %69 = dma.vmem_to_hbm [thread:$0]  %s67, 512, %s1, [#allocation1]
    %70 = dma.done [#allocation1], 512
    %71 = vsyncpa [#allocation1], 1

// kernel: swin_adabin_forward.1
$region0: #{swin_adabin_forward.1}
  #allocation0 [shape = 'u32[]', space=smem, size = 0x4, offset = 0x4, fixed_abs, tag = 'smem constant byte address 0x4 - core index']
  #allocation1 [shape = 'u32[144,128]{1,0:T(1,128)}', space=vmem, size = 0x12000, scoped, tag = 'internal scratch']
  %s0 = inlined_call_operand.vmem [shape: f32[2,1,128], index: 0, kind: input, shape index: {}]
  %s1 = inlined_call_operand.vmem [shape: bf16[2,256,1152], index: 1, kind: input, shape index: {}]
  %s2 = inlined_call_operand.vmem [shape: bf16[1152,128], index: 2, kind: input, shape index: {}]
  %s3 = inlined_call_operand.vmem [shape: f32[1,128], index: 3, kind: input, shape index: {}]
  %s4 = inlined_call_operand.vmem [shape: bf16[128,256], index: 4, kind: input, shape index: {}]
  %s5 = inlined_call_operand.vmem [shape: f32[1,256], index: 5, kind: input, shape index: {}]
  %s6 = inlined_call_operand.vmem [shape: bf16[256,256], index: 6, kind: input, shape index: {}]
  %s7 = inlined_call_operand.vmem [shape: f32[1,256], index: 7, kind: input, shape index: {}]
  %s8 = inlined_call_operand.vmem [shape: bf16[256,128], index: 8, kind: input, shape index: {}]
  %s9 = inlined_call_operand.vmem [shape: f32[1,128], index: 9, kind: input, shape index: {}]
  %s10 = inlined_call_operand.vmem [shape: f32[2,1,128], index: 10, kind: output, shape index: {0}]
  %s11 = inlined_call_operand.vmem [shape: f32[2,1,256], index: 11, kind: output, shape index: {1}]
  %12 = xla_tuple %s10, %s11
  %s13 = sld [smem:[#allocation0]]
  $region81: #{swin_adabin_forward.1} parent=0
    _
  %s15 = ssub.s32 1, %s13
  %s16 = scalar_select 0, %s15, %s13
  loop: start=0, step=1, limit=4
  $region2: #{swin_adabin_forward.1} parent=0 // loop_pre_header
    _
  $region3: #{swin_adabin_forward.1} parent=0 // loop_header
    %s18 = sphi 0, %s22
    %p19 = scmp.ge.s32.totalorder %s18, 4
    %s28 = sphi 0, %s30
    %s31 = sphi 0, %s28
    %s32 = sphi 0, %s31
    %s48 = sphi 0, %s32
    %s54 = sphi 0, %s56
    %s57 = sphi 0, %s54
    %s58 = sphi 0, %s57
    %s74 = sphi 0, %s58
    %s78 = sphi 0, %s78
    %s80 = sphi 0, %s78
    %s81 = sphi 0, %s80
    %s95 = sphi 0, %s81
    %s99 = sphi 0, %s99
    %s101 = sphi 0, %s99
    %s102 = sphi 0, %s101
    %s116 = sphi 0, %s102
    %s120 = sphi 0, %s120
    %s122 = sphi 0, %s120
    %s123 = sphi 0, %s122
    %s137 = sphi 0, %s123
    %s141 = sphi 0, %s141
    %s143 = sphi 0, %s141
    %s144 = sphi 0, %s143
    %s158 = sphi 0, %s144
    %s162 = sphi 0, %s162
    %s164 = sphi 0, %s162
    %s165 = sphi 0, %s164
    %s179 = sphi 0, %s165
    %s183 = sphi 0, %s183
    %s185 = sphi 0, %s183
    %s186 = sphi 0, %s185
    %s200 = sphi 0, %s186
    %s204 = sphi 0, %s204
    %s206 = sphi 0, %s204
    %s207 = sphi 0, %s206
    %s221 = sphi 0, %s207
    %s225 = sphi 0, %s225
    %s227 = sphi 0, %s225
    %s228 = sphi 0, %s227
    %s242 = sphi 0, %s228
    %s248 = sphi 0, %s250
    %s251 = sphi 0, %s248
    %s252 = sphi 0, %s251
    %s268 = sphi 0, %s252
    %s274 = sphi 0, %s276
    %s277 = sphi 0, %s274
    %s278 = sphi 0, %s277
    %s294 = sphi 0, %s278
  $region4: #{swin_adabin_forward.1} parent=0 // loop_header_branch
    %21 = sbr.rel (%p19) target = $region8
  $region5: #{swin_adabin_forward.1} parent=0 // loop_body
    %s23 = ssub.s32 %s18, 1
    %s24 = ssub.s32 %s18, 2
    %s25 = sadd.s32 %s18, 1
    %s26 = ssub.s32 %s18, %s25
    %p27 = scmp.eq.s32.totalorder %s26, 0
    %s29 = sadd.s32 %s28, 1
    %s30 = scalar_select %p27, %s28, %s29
    %p33 = pneg %p27
    %p34 = scmp.eq.s32.totalorder %s18, 1
    %p35 = por %p33, %p34
    %p36 = scmp.ne.s32.totalorder %s28, %s31
    %p37 = scmp.eq.s32.totalorder %s18, 0
    %p38 = por %p36, %p37
    %p39 = scmp.ne.s32.totalorder %s28, %s31
    %p40 = scmp.eq.s32.totalorder %s23, 1
    %p41 = por %p39, %p40
    %p42 = scmp.ne.s32.totalorder %s31, %s32
    %p43 = scmp.eq.s32.totalorder %s23, 0
    %p44 = por %p42, %p43
    %p45 = scmp.ne.s32.totalorder %s31, %s32
    %p46 = scmp.eq.s32.totalorder %s24, 1
    %p47 = por %p45, %p46
    %p49 = scmp.ne.s32.totalorder %s32, %s48
    %p50 = scmp.eq.s32.totalorder %s24, 0
    %p51 = por %p49, %p50
    %s52 = ssub.s32 %s18, %s25
    %p53 = scmp.eq.s32.totalorder %s52, 0
    %s55 = sadd.s32 %s54, 1
    %s56 = scalar_select %p53, %s54, %s55
    %p59 = pneg %p53
    %p60 = scmp.eq.s32.totalorder %s18, 1
    %p61 = por %p59, %p60
    %p62 = scmp.ne.s32.totalorder %s54, %s57
    %p63 = scmp.eq.s32.totalorder %s18, 0
    %p64 = por %p62, %p63
    %p65 = scmp.ne.s32.totalorder %s54, %s57
    %p66 = scmp.eq.s32.totalorder %s23, 1
    %p67 = por %p65, %p66
    %p68 = scmp.ne.s32.totalorder %s57, %s58
    %p69 = scmp.eq.s32.totalorder %s23, 0
    %p70 = por %p68, %p69
    %p71 = scmp.ne.s32.totalorder %s57, %s58
    %p72 = scmp.eq.s32.totalorder %s24, 1
    %p73 = por %p71, %p72
    %p75 = scmp.ne.s32.totalorder %s58, %s74
    %p76 = scmp.eq.s32.totalorder %s24, 0
    %p77 = por %p75, %p76
    %s79 = sadd.s32 %s78, 1
    %p82 = scmp.eq.s32.totalorder %s18, 1
    %p83 = scmp.ne.s32.totalorder %s78, %s80
    %p84 = scmp.eq.s32.totalorder %s18, 0
    %p85 = por %p83, %p84
    %p86 = scmp.ne.s32.totalorder %s78, %s80
    %p87 = scmp.eq.s32.totalorder %s23, 1
    %p88 = por %p86, %p87
    %p89 = scmp.ne.s32.totalorder %s80, %s81
    %p90 = scmp.eq.s32.totalorder %s23, 0
    %p91 = por %p89, %p90
    %p92 = scmp.ne.s32.totalorder %s80, %s81
    %p93 = scmp.eq.s32.totalorder %s24, 1
    %p94 = por %p92, %p93
    %p96 = scmp.ne.s32.totalorder %s81, %s95
    %p97 = scmp.eq.s32.totalorder %s24, 0
    %p98 = por %p96, %p97
    %s100 = sadd.s32 %s99, 1
    %p103 = scmp.eq.s32.totalorder %s18, 1
    %p104 = scmp.ne.s32.totalorder %s99, %s101
    %p105 = scmp.eq.s32.totalorder %s18, 0
    %p106 = por %p104, %p105
    %p107 = scmp.ne.s32.totalorder %s99, %s101
    %p108 = scmp.eq.s32.totalorder %s23, 1
    %p109 = por %p107, %p108
    %p110 = scmp.ne.s32.totalorder %s101, %s102
    %p111 = scmp.eq.s32.totalorder %s23, 0
    %p112 = por %p110, %p111
    %p113 = scmp.ne.s32.totalorder %s101, %s102
    %p114 = scmp.eq.s32.totalorder %s24, 1
    %p115 = por %p113, %p114
    %p117 = scmp.ne.s32.totalorder %s102, %s116
    %p118 = scmp.eq.s32.totalorder %s24, 0
    %p119 = por %p117, %p118
    %s121 = sadd.s32 %s120, 1
    %p124 = scmp.eq.s32.totalorder %s18, 1
    %p125 = scmp.ne.s32.totalorder %s120, %s122
    %p126 = scmp.eq.s32.totalorder %s18, 0
    %p127 = por %p125, %p126
    %p128 = scmp.ne.s32.totalorder %s120, %s122
    %p129 = scmp.eq.s32.totalorder %s23, 1
    %p130 = por %p128, %p129
    %p131 = scmp.ne.s32.totalorder %s122, %s123
    %p132 = scmp.eq.s32.totalorder %s23, 0
    %p133 = por %p131, %p132
    %p134 = scmp.ne.s32.totalorder %s122, %s123
    %p135 = scmp.eq.s32.totalorder %s24, 1
    %p136 = por %p134, %p135
    %p138 = scmp.ne.s32.totalorder %s123, %s137
    %p139 = scmp.eq.s32.totalorder %s24, 0
    %p140 = por %p138, %p139
    %s142 = sadd.s32 %s141, 1
    %p145 = scmp.eq.s32.totalorder %s18, 1
    %p146 = scmp.ne.s32.totalorder %s141, %s143
    %p147 = scmp.eq.s32.totalorder %s18, 0
    %p148 = por %p146, %p147
    %p149 = scmp.ne.s32.totalorder %s141, %s143
    %p150 = scmp.eq.s32.totalorder %s23, 1
    %p151 = por %p149, %p150
    %p152 = scmp.ne.s32.totalorder %s143, %s144
    %p153 = scmp.eq.s32.totalorder %s23, 0
    %p154 = por %p152, %p153
    %p155 = scmp.ne.s32.totalorder %s143, %s144
    %p156 = scmp.eq.s32.totalorder %s24, 1
    %p157 = por %p155, %p156
    %p159 = scmp.ne.s32.totalorder %s144, %s158
    %p160 = scmp.eq.s32.totalorder %s24, 0
    %p161 = por %p159, %p160
    %s163 = sadd.s32 %s162, 1
    %p166 = scmp.eq.s32.totalorder %s18, 1
    %p167 = scmp.ne.s32.totalorder %s162, %s164
    %p168 = scmp.eq.s32.totalorder %s18, 0
    %p169 = por %p167, %p168
    %p170 = scmp.ne.s32.totalorder %s162, %s164
    %p171 = scmp.eq.s32.totalorder %s23, 1
    %p172 = por %p170, %p171
    %p173 = scmp.ne.s32.totalorder %s164, %s165
    %p174 = scmp.eq.s32.totalorder %s23, 0
    %p175 = por %p173, %p174
    %p176 = scmp.ne.s32.totalorder %s164, %s165
    %p177 = scmp.eq.s32.totalorder %s24, 1
    %p178 = por %p176, %p177
    %p180 = scmp.ne.s32.totalorder %s165, %s179
    %p181 = scmp.eq.s32.totalorder %s24, 0
    %p182 = por %p180, %p181
    %s184 = sadd.s32 %s183, 1
    %p187 = scmp.eq.s32.totalorder %s18, 1
    %p188 = scmp.ne.s32.totalorder %s183, %s185
    %p189 = scmp.eq.s32.totalorder %s18, 0
    %p190 = por %p188, %p189
    %p191 = scmp.ne.s32.totalorder %s183, %s185
    %p192 = scmp.eq.s32.totalorder %s23, 1
    %p193 = por %p191, %p192
    %p194 = scmp.ne.s32.totalorder %s185, %s186
    %p195 = scmp.eq.s32.totalorder %s23, 0
    %p196 = por %p194, %p195
    %p197 = scmp.ne.s32.totalorder %s185, %s186
    %p198 = scmp.eq.s32.totalorder %s24, 1
    %p199 = por %p197, %p198
    %p201 = scmp.ne.s32.totalorder %s186, %s200
    %p202 = scmp.eq.s32.totalorder %s24, 0
    %p203 = por %p201, %p202
    %s205 = sadd.s32 %s204, 1
    %p208 = scmp.eq.s32.totalorder %s18, 1
    %p209 = scmp.ne.s32.totalorder %s204, %s206
    %p210 = scmp.eq.s32.totalorder %s18, 0
    %p211 = por %p209, %p210
    %p212 = scmp.ne.s32.totalorder %s204, %s206
    %p213 = scmp.eq.s32.totalorder %s23, 1
    %p214 = por %p212, %p213
    %p215 = scmp.ne.s32.totalorder %s206, %s207
    %p216 = scmp.eq.s32.totalorder %s23, 0
    %p217 = por %p215, %p216
    %p218 = scmp.ne.s32.totalorder %s206, %s207
    %p219 = scmp.eq.s32.totalorder %s24, 1
    %p220 = por %p218, %p219
    %p222 = scmp.ne.s32.totalorder %s207, %s221
    %p223 = scmp.eq.s32.totalorder %s24, 0
    %p224 = por %p222, %p223
    %s226 = sadd.s32 %s225, 1
    %p229 = scmp.eq.s32.totalorder %s18, 1
    %p230 = scmp.ne.s32.totalorder %s225, %s227
    %p231 = scmp.eq.s32.totalorder %s18, 0
    %p232 = por %p230, %p231
    %p233 = scmp.ne.s32.totalorder %s225, %s227
    %p234 = scmp.eq.s32.totalorder %s23, 1
    %p235 = por %p233, %p234
    %p236 = scmp.ne.s32.totalorder %s227, %s228
    %p237 = scmp.eq.s32.totalorder %s23, 0
    %p238 = por %p236, %p237
    %p239 = scmp.ne.s32.totalorder %s227, %s228
    %p240 = scmp.eq.s32.totalorder %s24, 1
    %p241 = por %p239, %p240
    %p243 = scmp.ne.s32.totalorder %s228, %s242
    %p244 = scmp.eq.s32.totalorder %s24, 0
    %p245 = por %p243, %p244
    %s246 = ssub.s32 %s18, %s25
    %p247 = scmp.eq.s32.totalorder %s246, 0
    %s249 = sadd.s32 %s248, 1
    %s250 = scalar_select %p247, %s248, %s249
    %p253 = pneg %p247
    %p254 = scmp.eq.s32.totalorder %s18, 1
    %p255 = por %p253, %p254
    %p256 = scmp.ne.s32.totalorder %s248, %s251
    %p257 = scmp.eq.s32.totalorder %s18, 0
    %p258 = por %p256, %p257
    %p259 = scmp.ne.s32.totalorder %s248, %s251
    %p260 = scmp.eq.s32.totalorder %s23, 1
    %p261 = por %p259, %p260
    %p262 = scmp.ne.s32.totalorder %s251, %s252
    %p263 = scmp.eq.s32.totalorder %s23, 0
    %p264 = por %p262, %p263
    %p265 = scmp.ne.s32.totalorder %s251, %s252
    %p266 = scmp.eq.s32.totalorder %s24, 1
    %p267 = por %p265, %p266
    %p269 = scmp.ne.s32.totalorder %s252, %s268
    %p270 = scmp.eq.s32.totalorder %s24, 0
    %p271 = por %p269, %p270
    %s272 = ssub.s32 %s18, %s25
    %p273 = scmp.eq.s32.totalorder %s272, 0
    %s275 = sadd.s32 %s274, 1
    %s276 = scalar_select %p273, %s274, %s275
    %p279 = pneg %p273
    %p280 = scmp.eq.s32.totalorder %s18, 1
    %p281 = por %p279, %p280
    %p282 = scmp.ne.s32.totalorder %s274, %s277
    %p283 = scmp.eq.s32.totalorder %s18, 0
    %p284 = por %p282, %p283
    %p285 = scmp.ne.s32.totalorder %s274, %s277
    %p286 = scmp.eq.s32.totalorder %s23, 1
    %p287 = por %p285, %p286
    %p288 = scmp.ne.s32.totalorder %s277, %s278
    %p289 = scmp.eq.s32.totalorder %s23, 0
    %p290 = por %p288, %p289
    %p291 = scmp.ne.s32.totalorder %s277, %s278
    %p292 = scmp.eq.s32.totalorder %s24, 1
    %p293 = por %p291, %p292
    %p295 = scmp.ne.s32.totalorder %s278, %s294
    %p296 = scmp.eq.s32.totalorder %s24, 0
    %p297 = por %p295, %p296
    %p298 = scmp.le.s32.totalorder 1, %s18
    %p299 = scmp.lt.s32.totalorder %s18, 3
    %p300 = pnand %p298, %p299
    %p301 = pneg %p300
    // Predicated region
    $region9: #{swin_adabin_forward.1} parent=5 // pred_check
      _
    $region10: #{swin_adabin_forward.1} parent=5 // pred_check_branch
      %303 = sbr.rel (%p300) target = $region12
    $region11: #{swin_adabin_forward.1} parent=5 // pred_region
      %s304 = ssub.s32 %s18, 1
      // Predicated region
      $region13: #{swin_adabin_forward.1} parent=11 // pred_check
        %p305 = pneg %p91
      $region14: #{swin_adabin_forward.1} parent=11 // pred_check_branch
        %307 = sbr.rel (%p305) target = $region16
      $region15: #{swin_adabin_forward.1} parent=11 // pred_region
        _
      $region16: #{swin_adabin_forward.1} parent=11 // pred_fallthru
        _
      // Predicated region
      $region17: #{swin_adabin_forward.1} parent=11 // pred_check
        %p308 = pneg %p112
      $region18: #{swin_adabin_forward.1} parent=11 // pred_check_branch
        %310 = sbr.rel (%p308) target = $region20
      $region19: #{swin_adabin_forward.1} parent=11 // pred_region
        _
      $region20: #{swin_adabin_forward.1} parent=11 // pred_fallthru
        _
      // Predicated region
      $region21: #{swin_adabin_forward.1} parent=11 // pred_check
        %p311 = pneg %p133
      $region22: #{swin_adabin_forward.1} parent=11 // pred_check_branch
        %313 = sbr.rel (%p311) target = $region24
      $region23: #{swin_adabin_forward.1} parent=11 // pred_region
        _
      $region24: #{swin_adabin_forward.1} parent=11 // pred_fallthru
        _
      // Predicated region
      $region25: #{swin_adabin_forward.1} parent=11 // pred_check
        %p314 = pneg %p154
      $region26: #{swin_adabin_forward.1} parent=11 // pred_check_branch
        %316 = sbr.rel (%p314) target = $region28
      $region27: #{swin_adabin_forward.1} parent=11 // pred_region
        _
      $region28: #{swin_adabin_forward.1} parent=11 // pred_fallthru
        _
      // Predicated region
      $region29: #{swin_adabin_forward.1} parent=11 // pred_check
        %p317 = pneg %p175
      $region30: #{swin_adabin_forward.1} parent=11 // pred_check_branch
        %319 = sbr.rel (%p317) target = $region32
      $region31: #{swin_adabin_forward.1} parent=11 // pred_region
        _
      $region32: #{swin_adabin_forward.1} parent=11 // pred_fallthru
        _
      // Predicated region
      $region33: #{swin_adabin_forward.1} parent=11 // pred_check
        %p320 = pneg %p196
      $region34: #{swin_adabin_forward.1} parent=11 // pred_check_branch
        %322 = sbr.rel (%p320) target = $region36
      $region35: #{swin_adabin_forward.1} parent=11 // pred_region
        _
      $region36: #{swin_adabin_forward.1} parent=11 // pred_fallthru
        _
      // Predicated region
      $region37: #{swin_adabin_forward.1} parent=11 // pred_check
        %p323 = pneg %p217
      $region38: #{swin_adabin_forward.1} parent=11 // pred_check_branch
        %325 = sbr.rel (%p323) target = $region40
      $region39: #{swin_adabin_forward.1} parent=11 // pred_region
        _
      $region40: #{swin_adabin_forward.1} parent=11 // pred_fallthru
        _
      // Predicated region
      $region41: #{swin_adabin_forward.1} parent=11 // pred_check
        %p326 = pneg %p238
      $region42: #{swin_adabin_forward.1} parent=11 // pred_check_branch
        %328 = sbr.rel (%p326) target = $region44
      $region43: #{swin_adabin_forward.1} parent=11 // pred_region
        _
      $region44: #{swin_adabin_forward.1} parent=11 // pred_fallthru
        _
    $region12: #{swin_adabin_forward.1} parent=5 // pred_fallthru
      _
    %p329 = scmp.lt.s32.totalorder %s18, 2
    // Predicated region
    $region45: #{swin_adabin_forward.1} parent=5 // pred_check
      %p330 = pneg %p329
    $region46: #{swin_adabin_forward.1} parent=5 // pred_check_branch
      %332 = sbr.rel (%p330) target = $region48
    $region47: #{swin_adabin_forward.1} parent=5 // pred_region
      // Predicated region
      $region49: #{swin_adabin_forward.1} parent=47 // pred_check
        %p333 = pneg %p38
      $region50: #{swin_adabin_forward.1} parent=47 // pred_check_branch
        %335 = sbr.rel (%p333) target = $region52
      $region51: #{swin_adabin_forward.1} parent=47 // pred_region
        %p336 = scmp.lt.s32.totalorder %s18, 1
        %s337 = scalar_select %p336, %s18, 1
        %s338 = scalar_lea.vmem %s0, %s337
      $region52: #{swin_adabin_forward.1} parent=47 // pred_fallthru
        _
      // Predicated region
      $region53: #{swin_adabin_forward.1} parent=47 // pred_check
        %p339 = pneg %p64
      $region54: #{swin_adabin_forward.1} parent=47 // pred_check_branch
        %341 = sbr.rel (%p339) target = $region56
      $region55: #{swin_adabin_forward.1} parent=47 // pred_region
        %p342 = scmp.lt.s32.totalorder %s18, 1
        %s343 = scalar_select %p342, %s18, 1
        %s344 = smul.addr %s343, 288
        %s345 = smul.addr %s344, 4
        %s346 = scalar_lea.vmem %s1, %s345
      $region56: #{swin_adabin_forward.1} parent=47 // pred_fallthru
        _
    $region48: #{swin_adabin_forward.1} parent=5 // pred_fallthru
      _
    %p347 = scmp.le.s32.totalorder 1, %s18
    %p348 = scmp.lt.s32.totalorder %s18, 3
    %p349 = pnand %p347, %p348
    %p350 = pneg %p349
    // Predicated region
    $region57: #{swin_adabin_forward.1} parent=5 // pred_check
      _
    $region58: #{swin_adabin_forward.1} parent=5 // pred_check_branch
      %352 = sbr.rel (%p349) target = $region60
    $region59: #{swin_adabin_forward.1} parent=5 // pred_region
      %s353 = ssub.s32 %s18, 1
      %p354 = scmp.lt.s32.totalorder %s23, 1
      %s355 = scalar_select %p354, %s23, 1
      %s356 = scalar_lea.vmem %s0, %s355
      %p357 = pneg %p44
      %p358 = pneg %p41
      %p359 = scmp.lt.s32.totalorder %s23, 1
      %s360 = scalar_select %p359, %s23, 1
      %s361 = smul.addr %s360, 288
      %s362 = smul.addr %s361, 4
      %s363 = scalar_lea.vmem %s1, %s362
      %p364 = pneg %p70
      %p365 = pneg %p67
      %p366 = pneg %p91
      %p367 = pneg %p88
      %p368 = pneg %p112
      %p369 = pneg %p109
      %p370 = pneg %p133
      %p371 = pneg %p130
      %p372 = pneg %p154
      %p373 = pneg %p151
      %p374 = pneg %p175
      %p375 = pneg %p172
      %p376 = pneg %p196
      %p377 = pneg %p193
      %p378 = pneg %p217
      %p379 = pneg %p214
      %p380 = pneg %p238
      %p381 = pneg %p235
      %p382 = pneg %p264
      %p383 = pneg %p261
      %p384 = scmp.lt.s32.totalorder %s23, 1
      %s385 = scalar_select %p384, %s23, 1
      %s386 = scalar_lea.vmem %s10, %s385
      %p387 = pneg %p290
      %p388 = pneg %p287
      %p389 = scmp.lt.s32.totalorder %s23, 1
      %s390 = scalar_select %p389, %s23, 1
      %s391 = smul.addr %s390, 2
      %s392 = scalar_lea.vmem %s11, %s391
      %p393 = scmp.lt.s32.totalorder %s23, 1
      %s394 = scalar_select %p393, %s23, 1
      %s395 = scalar_lea.vmem %s0, %s394
      %p396 = scmp.lt.s32.totalorder %s23, 1
      %s397 = scalar_select %p396, %s23, 1
      %s398 = smul.addr %s397, 288
      %s399 = smul.addr %s398, 4
      %s400 = scalar_lea.vmem %s1, %s399
      %p401 = scmp.lt.s32.totalorder %s23, 1
      %s402 = scalar_select %p401, %s23, 1
      %s403 = scalar_lea.vmem %s10, %s402
      %p404 = scmp.lt.s32.totalorder %s23, 1
      %s405 = scalar_select %p404, %s23, 1
      %s406 = smul.addr %s405, 2
      %s407 = scalar_lea.vmem %s11, %s406
      %v409 = vlaneseq
      %v410 = vand.u32 %v409, 127
      %v411 = vld [vmem:[%s395] sm:$0x1]
      %v412 = vpack.c.bf16 %v411, %v411
      %v413 = vld [vmem:[%s4] sm:$0xff]
      %v414 = vld [vmem:[%s4 + $0x8] sm:$0xff]
      %v415 = vld [vmem:[%s4 + $0x10] sm:$0xff]
      %v416 = vld [vmem:[%s4 + $0x18] sm:$0xff]
      %v417 = vld [vmem:[%s4 + $0x20] sm:$0xff]
      %v418 = vld [vmem:[%s4 + $0x28] sm:$0xff]
      %v419 = vld [vmem:[%s4 + $0x30] sm:$0xff]
      %v420 = vld [vmem:[%s4 + $0x38] sm:$0xff]
      %v421 = vld [vmem:[%s4 + $0x40] sm:$0xff]
      %v422 = vld [vmem:[%s4 + $0x48] sm:$0xff]
      %v423 = vld [vmem:[%s4 + $0x50] sm:$0xff]
      %v424 = vld [vmem:[%s4 + $0x58] sm:$0xff]
      %v425 = vld [vmem:[%s4 + $0x60] sm:$0xff]
      %v426 = vld [vmem:[%s4 + $0x68] sm:$0xff]
      %v427 = vld [vmem:[%s4 + $0x70] sm:$0xff]
      %v428 = vld [vmem:[%s4 + $0x78] sm:$0xff]
      %v429 = vld [vmem:[%s5] sm:$0x3]
      %v446 = vunpack.c.l.b16 %v413
      %v447 = vunpack.c.h.b16 %v413
      %v448 = vunpack.c.l.b16 %v414
      %v449 = vunpack.c.h.b16 %v414
      %v450 = vunpack.c.l.b16 %v415
      %v451 = vunpack.c.h.b16 %v415
      %v452 = vunpack.c.l.b16 %v416
      %v453 = vunpack.c.h.b16 %v416
      %v454 = vunpack.c.l.b16 %v417
      %v455 = vunpack.c.h.b16 %v417
      %v456 = vunpack.c.l.b16 %v418
      %v457 = vunpack.c.h.b16 %v418
      %v458 = vunpack.c.l.b16 %v419
      %v459 = vunpack.c.h.b16 %v419
      %v460 = vunpack.c.l.b16 %v420
      %v461 = vunpack.c.h.b16 %v420
      %v462 = vunpack.c.l.b16 %v421
      %v463 = vunpack.c.h.b16 %v421
      %v464 = vunpack.c.l.b16 %v422
      %v465 = vunpack.c.h.b16 %v422
      %v466 = vunpack.c.l.b16 %v423
      %v467 = vunpack.c.h.b16 %v423
      %v468 = vunpack.c.l.b16 %v424
      %v469 = vunpack.c.h.b16 %v424
      %v470 = vunpack.c.l.b16 %v425
      %v471 = vunpack.c.h.b16 %v425
      %v472 = vunpack.c.l.b16 %v426
      %v473 = vunpack.c.h.b16 %v426
      %v474 = vunpack.c.l.b16 %v427
      %v475 = vunpack.c.h.b16 %v427
      %v476 = vunpack.c.l.b16 %v428
      %v477 = vunpack.c.h.b16 %v428
      %v478 = vpack.c.b16 %v448, %v446
      %v479 = vpack.c.b16 %v449, %v447
      %v480 = vpack.c.b16 %v452, %v450
      %v481 = vpack.c.b16 %v453, %v451
      %v482 = vpack.c.b16 %v456, %v454
      %v483 = vpack.c.b16 %v457, %v455
      %v484 = vpack.c.b16 %v460, %v458
      %v485 = vpack.c.b16 %v461, %v459
      %v486 = vpack.c.b16 %v464, %v462
      %v487 = vpack.c.b16 %v465, %v463
      %v488 = vpack.c.b16 %v468, %v466
      %v489 = vpack.c.b16 %v469, %v467
      %v490 = vpack.c.b16 %v472, %v470
      %v491 = vpack.c.b16 %v473, %v471
      %v492 = vpack.c.b16 %v476, %v474
      %v493 = vpack.c.b16 %v477, %v475
      %v511 = vlaneseq
      %v512 = vshrl.u32 %v511, 7
      %v513 = vsub.s32 0, %v512
      %v514 = vrot.slane %v429, %v513
      %v515 = vlaneseq
      %v516 = vshrl.u32 %v515, 7
      %v517 = vsub.s32 1, %v516
      %v518 = vrot.slane %v429, %v517
      %521 = vmatprep.subr.bf16.mxu0 %v493
      %522 = vmatpush1.bf16.msra.mxu0 %v492
      %523 = vmatprep.subr.bf16.mxu0 %v491
      %524 = vmatpush1.bf16.msra.mxu0 %v490
      %525 = vmatprep.subr.bf16.mxu0 %v489
      %526 = vmatpush1.bf16.msra.mxu0 %v488
      %527 = vmatprep.subr.bf16.mxu0 %v487
      %528 = vmatpush1.bf16.msra.mxu0 %v486
      %529 = vmatprep.subr.bf16.mxu0 %v485
      %530 = vmatpush1.bf16.msra.mxu0 %v484
      %531 = vmatprep.subr.bf16.mxu0 %v483
      %532 = vmatpush1.bf16.msra.mxu0 %v482
      %533 = vmatprep.subr.bf16.mxu0 %v481
      %534 = vmatpush1.bf16.msra.mxu0 %v480
      %535 = vmatprep.subr.bf16.mxu0 %v479
      %536 = vmatpush1.bf16.msra.mxu0 %v478
      %537 = vmatprep.subr.bf16.mxu0 0
      %538 = vmatpush2.bf16.msra.mxu0 0
      %539 = vmatprep.subr.bf16.mxu0 0
      %540 = vmatpush2.bf16.msra.mxu0 0
      %541 = vmatprep.subr.bf16.mxu0 0
      %542 = vmatpush2.bf16.msra.mxu0 0
      %543 = vmatprep.subr.bf16.mxu0 0
      %544 = vmatpush2.bf16.msra.mxu0 0
      %545 = vmatprep.subr.bf16.mxu0 0
      %546 = vmatpush2.bf16.msra.mxu0 0
      %547 = vmatprep.subr.bf16.mxu0 0
      %548 = vmatpush2.bf16.msra.mxu0 0
      %549 = vmatprep.subr.bf16.mxu0 0
      %550 = vmatpush2.bf16.msra.mxu0 0
      %551 = vmatprep.subr.bf16.mxu0 0
      %552 = vmatpush2.bf16.msra.mxu0 0
      %553 = vmatprep.mubr.bf16.mxu0 0
      %554 = vmatmul.mubr.bf16.gmra.mxu0 %v412
      %v555 = vpop.f32.mrf.mxu0
      %v556 = vadd.f32 %v514, %v555
      %v557 = vpop.f32.mrf.mxu0
      %v558 = vadd.f32 %v518, %v557
      %v559 = vpop.f32.mrf.mxu0
      %v560 = vpop.f32.mrf.mxu0
      %561 = vdwg.mxu0
      %vm562 = vcmp.gt.f32.partialorder %v556, 0.0
      %vm563 = vcmp.gt.f32.partialorder %v558, 0.0
      %v564 = vmul.f32 %v556, 0.01
      %v565 = vmul.f32 %v558, 0.01
      %v566 = vsel %vm562, %v556, %v564
      %v567 = vsel %vm563, %v558, %v565
      %v568 = vpack.c.bf16 %v566, %v566
      %v569 = vpack.c.bf16 %v567, %v567
      %v570 = vld [vmem:[%s6] sm:$0xff]
      %v571 = vld [vmem:[%s6 + $0x8] sm:$0xff]
      %v572 = vld [vmem:[%s6 + $0x10] sm:$0xff]
      %v573 = vld [vmem:[%s6 + $0x18] sm:$0xff]
      %v574 = vld [vmem:[%s6 + $0x20] sm:$0xff]
      %v575 = vld [vmem:[%s6 + $0x28] sm:$0xff]
      %v576 = vld [vmem:[%s6 + $0x30] sm:$0xff]
      %v577 = vld [vmem:[%s6 + $0x38] sm:$0xff]
      %v578 = vld [vmem:[%s6 + $0x40] sm:$0xff]
      %v579 = vld [vmem:[%s6 + $0x48] sm:$0xff]
      %v580 = vld [vmem:[%s6 + $0x50] sm:$0xff]
      %v581 = vld [vmem:[%s6 + $0x58] sm:$0xff]
      %v582 = vld [vmem:[%s6 + $0x60] sm:$0xff]
      %v583 = vld [vmem:[%s6 + $0x68] sm:$0xff]
      %v584 = vld [vmem:[%s6 + $0x70] sm:$0xff]
      %v585 = vld [vmem:[%s6 + $0x78] sm:$0xff]
      %v586 = vld [vmem:[%s6 + $0x80] sm:$0xff]
      %v587 = vld [vmem:[%s6 + $0x88] sm:$0xff]
      %v588 = vld [vmem:[%s6 + $0x90] sm:$0xff]
      %v589 = vld [vmem:[%s6 + $0x98] sm:$0xff]
      %v590 = vld [vmem:[%s6 + $0xa0] sm:$0xff]
      %v591 = vld [vmem:[%s6 + $0xa8] sm:$0xff]
      %v592 = vld [vmem:[%s6 + $0xb0] sm:$0xff]
      %v593 = vld [vmem:[%s6 + $0xb8] sm:$0xff]
      %v594 = vld [vmem:[%s6 + $0xc0] sm:$0xff]
      %v595 = vld [vmem:[%s6 + $0xc8] sm:$0xff]
      %v596 = vld [vmem:[%s6 + $0xd0] sm:$0xff]
      %v597 = vld [vmem:[%s6 + $0xd8] sm:$0xff]
      %v598 = vld [vmem:[%s6 + $0xe0] sm:$0xff]
      %v599 = vld [vmem:[%s6 + $0xe8] sm:$0xff]
      %v600 = vld [vmem:[%s6 + $0xf0] sm:$0xff]
      %v601 = vld [vmem:[%s6 + $0xf8] sm:$0xff]
      %v602 = vld [vmem:[%s7] sm:$0x3]
      %v635 = vunpack.c.l.b16 %v570
      %v636 = vunpack.c.h.b16 %v570
      %v637 = vunpack.c.l.b16 %v571
      %v638 = vunpack.c.h.b16 %v571
      %v639 = vunpack.c.l.b16 %v572
      %v640 = vunpack.c.h.b16 %v572
      %v641 = vunpack.c.l.b16 %v573
      %v642 = vunpack.c.h.b16 %v573
      %v643 = vunpack.c.l.b16 %v574
      %v644 = vunpack.c.h.b16 %v574
      %v645 = vunpack.c.l.b16 %v575
      %v646 = vunpack.c.h.b16 %v575
      %v647 = vunpack.c.l.b16 %v576
      %v648 = vunpack.c.h.b16 %v576
      %v649 = vunpack.c.l.b16 %v577
      %v650 = vunpack.c.h.b16 %v577
      %v651 = vunpack.c.l.b16 %v578
      %v652 = vunpack.c.h.b16 %v578
      %v653 = vunpack.c.l.b16 %v579
      %v654 = vunpack.c.h.b16 %v579
      %v655 = vunpack.c.l.b16 %v580
      %v656 = vunpack.c.h.b16 %v580
      %v657 = vunpack.c.l.b16 %v581
      %v658 = vunpack.c.h.b16 %v581
      %v659 = vunpack.c.l.b16 %v582
      %v660 = vunpack.c.h.b16 %v582
      %v661 = vunpack.c.l.b16 %v583
      %v662 = vunpack.c.h.b16 %v583
      %v663 = vunpack.c.l.b16 %v584
      %v664 = vunpack.c.h.b16 %v584
      %v665 = vunpack.c.l.b16 %v585
      %v666 = vunpack.c.h.b16 %v585
      %v667 = vunpack.c.l.b16 %v586
      %v668 = vunpack.c.h.b16 %v586
      %v669 = vunpack.c.l.b16 %v587
      %v670 = vunpack.c.h.b16 %v587
      %v671 = vunpack.c.l.b16 %v588
      %v672 = vunpack.c.h.b16 %v588
      %v673 = vunpack.c.l.b16 %v589
      %v674 = vunpack.c.h.b16 %v589
      %v675 = vunpack.c.l.b16 %v590
      %v676 = vunpack.c.h.b16 %v590
      %v677 = vunpack.c.l.b16 %v591
      %v678 = vunpack.c.h.b16 %v591
      %v679 = vunpack.c.l.b16 %v592
      %v680 = vunpack.c.h.b16 %v592
      %v681 = vunpack.c.l.b16 %v593
      %v682 = vunpack.c.h.b16 %v593
      %v683 = vunpack.c.l.b16 %v594
      %v684 = vunpack.c.h.b16 %v594
      %v685 = vunpack.c.l.b16 %v595
      %v686 = vunpack.c.h.b16 %v595
      %v687 = vunpack.c.l.b16 %v596
      %v688 = vunpack.c.h.b16 %v596
      %v689 = vunpack.c.l.b16 %v597
      %v690 = vunpack.c.h.b16 %v597
      %v691 = vunpack.c.l.b16 %v598
      %v692 = vunpack.c.h.b16 %v598
      %v693 = vunpack.c.l.b16 %v599
      %v694 = vunpack.c.h.b16 %v599
      %v695 = vunpack.c.l.b16 %v600
      %v696 = vunpack.c.h.b16 %v600
      %v697 = vunpack.c.l.b16 %v601
      %v698 = vunpack.c.h.b16 %v601
      %v699 = vpack.c.b16 %v637, %v635
      %v700 = vpack.c.b16 %v638, %v636
      %v701 = vpack.c.b16 %v641, %v639
      %v702 = vpack.c.b16 %v642, %v640
      %v703 = vpack.c.b16 %v645, %v643
      %v704 = vpack.c.b16 %v646, %v644
      %v705 = vpack.c.b16 %v649, %v647
      %v706 = vpack.c.b16 %v650, %v648
      %v707 = vpack.c.b16 %v653, %v651
      %v708 = vpack.c.b16 %v654, %v652
      %v709 = vpack.c.b16 %v657, %v655
      %v710 = vpack.c.b16 %v658, %v656
      %v711 = vpack.c.b16 %v661, %v659
      %v712 = vpack.c.b16 %v662, %v660
      %v713 = vpack.c.b16 %v665, %v663
      %v714 = vpack.c.b16 %v666, %v664
      %v715 = vpack.c.b16 %v669, %v667
      %v716 = vpack.c.b16 %v670, %v668
      %v717 = vpack.c.b16 %v673, %v671
      %v718 = vpack.c.b16 %v674, %v672
      %v719 = vpack.c.b16 %v677, %v675
      %v720 = vpack.c.b16 %v678, %v676
      %v721 = vpack.c.b16 %v681, %v679
      %v722 = vpack.c.b16 %v682, %v680
      %v723 = vpack.c.b16 %v685, %v683
      %v724 = vpack.c.b16 %v686, %v684
      %v725 = vpack.c.b16 %v689, %v687
      %v726 = vpack.c.b16 %v690, %v688
      %v727 = vpack.c.b16 %v693, %v691
      %v728 = vpack.c.b16 %v694, %v692
      %v729 = vpack.c.b16 %v697, %v695
      %v730 = vpack.c.b16 %v698, %v696
      %v764 = vlaneseq
      %v765 = vshrl.u32 %v764, 7
      %v766 = vsub.s32 0, %v765
      %v767 = vrot.slane %v602, %v766
      %v768 = vlaneseq
      %v769 = vshrl.u32 %v768, 7
      %v770 = vsub.s32 1, %v769
      %v771 = vrot.slane %v602, %v770
      %774 = vmatprep.subr.bf16.mxu0 %v714
      %775 = vmatpush1.bf16.msra.mxu0 %v713
      %776 = vmatprep.subr.bf16.mxu0 %v712
      %777 = vmatpush1.bf16.msra.mxu0 %v711
      %778 = vmatprep.subr.bf16.mxu0 %v710
      %779 = vmatpush1.bf16.msra.mxu0 %v709
      %780 = vmatprep.subr.bf16.mxu0 %v708
      %781 = vmatpush1.bf16.msra.mxu0 %v707
      %782 = vmatprep.subr.bf16.mxu0 %v706
      %783 = vmatpush1.bf16.msra.mxu0 %v705
      %784 = vmatprep.subr.bf16.mxu0 %v704
      %785 = vmatpush1.bf16.msra.mxu0 %v703
      %786 = vmatprep.subr.bf16.mxu0 %v702
      %787 = vmatpush1.bf16.msra.mxu0 %v701
      %788 = vmatprep.subr.bf16.mxu0 %v700
      %789 = vmatpush1.bf16.msra.mxu0 %v699
      %790 = vmatprep.subr.bf16.mxu0 %v730
      %791 = vmatpush2.bf16.msra.mxu0 %v729
      %792 = vmatprep.subr.bf16.mxu0 %v728
      %793 = vmatpush2.bf16.msra.mxu0 %v727
      %794 = vmatprep.subr.bf16.mxu0 %v726
      %795 = vmatpush2.bf16.msra.mxu0 %v725
      %796 = vmatprep.subr.bf16.mxu0 %v724
      %797 = vmatpush2.bf16.msra.mxu0 %v723
      %798 = vmatprep.subr.bf16.mxu0 %v722
      %799 = vmatpush2.bf16.msra.mxu0 %v721
      %800 = vmatprep.subr.bf16.mxu0 %v720
      %801 = vmatpush2.bf16.msra.mxu0 %v719
      %802 = vmatprep.subr.bf16.mxu0 %v718
      %803 = vmatpush2.bf16.msra.mxu0 %v717
      %804 = vmatprep.subr.bf16.mxu0 %v716
      %805 = vmatpush2.bf16.msra.mxu0 %v715
      %806 = vmatprep.mubr.bf16.mxu0 %v569
      %807 = vmatmul.mubr.bf16.gmra.mxu0 %v568
      %v808 = vpop.f32.mrf.mxu0
      %v809 = vadd.f32 %v767, %v808
      %v810 = vpop.f32.mrf.mxu0
      %v811 = vadd.f32 %v771, %v810
      %v812 = vpop.f32.mrf.mxu0
      %v813 = vpop.f32.mrf.mxu0
      %814 = vdwg.mxu0
      %vm815 = vcmp.gt.f32.partialorder %v809, 0.0
      %vm816 = vcmp.gt.f32.partialorder %v811, 0.0
      %v817 = vmul.f32 %v809, 0.01
      %v818 = vmul.f32 %v811, 0.01
      %v819 = vsel %vm815, %v809, %v817
      %v820 = vsel %vm816, %v811, %v818
      %v821 = vpack.c.bf16 %v819, %v819
      %v822 = vpack.c.bf16 %v820, %v820
      %v823 = vld [vmem:[%s8] sm:$0xf]
      %v824 = vld [vmem:[%s8 + $0x4] sm:$0xf]
      %v825 = vld [vmem:[%s8 + $0x8] sm:$0xf]
      %v826 = vld [vmem:[%s8 + $0xc] sm:$0xf]
      %v827 = vld [vmem:[%s8 + $0x10] sm:$0xf]
      %v828 = vld [vmem:[%s8 + $0x14] sm:$0xf]
      %v829 = vld [vmem:[%s8 + $0x18] sm:$0xf]
      %v830 = vld [vmem:[%s8 + $0x1c] sm:$0xf]
      %v831 = vld [vmem:[%s8 + $0x20] sm:$0xf]
      %v832 = vld [vmem:[%s8 + $0x24] sm:$0xf]
      %v833 = vld [vmem:[%s8 + $0x28] sm:$0xf]
      %v834 = vld [vmem:[%s8 + $0x2c] sm:$0xf]
      %v835 = vld [vmem:[%s8 + $0x30] sm:$0xf]
      %v836 = vld [vmem:[%s8 + $0x34] sm:$0xf]
      %v837 = vld [vmem:[%s8 + $0x38] sm:$0xf]
      %v838 = vld [vmem:[%s8 + $0x3c] sm:$0xf]
      %v839 = vld [vmem:[%s8 + $0x40] sm:$0xf]
      %v840 = vld [vmem:[%s8 + $0x44] sm:$0xf]
      %v841 = vld [vmem:[%s8 + $0x48] sm:$0xf]
      %v842 = vld [vmem:[%s8 + $0x4c] sm:$0xf]
      %v843 = vld [vmem:[%s8 + $0x50] sm:$0xf]
      %v844 = vld [vmem:[%s8 + $0x54] sm:$0xf]
      %v845 = vld [vmem:[%s8 + $0x58] sm:$0xf]
      %v846 = vld [vmem:[%s8 + $0x5c] sm:$0xf]
      %v847 = vld [vmem:[%s8 + $0x60] sm:$0xf]
      %v848 = vld [vmem:[%s8 + $0x64] sm:$0xf]
      %v849 = vld [vmem:[%s8 + $0x68] sm:$0xf]
      %v850 = vld [vmem:[%s8 + $0x6c] sm:$0xf]
      %v851 = vld [vmem:[%s8 + $0x70] sm:$0xf]
      %v852 = vld [vmem:[%s8 + $0x74] sm:$0xf]
      %v853 = vld [vmem:[%s8 + $0x78] sm:$0xf]
      %v854 = vld [vmem:[%s8 + $0x7c] sm:$0xf]
      %v855 = vld [vmem:[%s9] sm:$0x1]
      %v888 = vunpack.c.l.b16 %v823
      %v889 = vunpack.c.l.b16 %v824
      %v890 = vunpack.c.l.b16 %v825
      %v891 = vunpack.c.l.b16 %v826
      %v892 = vunpack.c.l.b16 %v827
      %v893 = vunpack.c.l.b16 %v828
      %v894 = vunpack.c.l.b16 %v829
      %v895 = vunpack.c.l.b16 %v830
      %v896 = vunpack.c.l.b16 %v831
      %v897 = vunpack.c.l.b16 %v832
      %v898 = vunpack.c.l.b16 %v833
      %v899 = vunpack.c.l.b16 %v834
      %v900 = vunpack.c.l.b16 %v835
      %v901 = vunpack.c.l.b16 %v836
      %v902 = vunpack.c.l.b16 %v837
      %v903 = vunpack.c.l.b16 %v838
      %v904 = vunpack.c.l.b16 %v839
      %v905 = vunpack.c.l.b16 %v840
      %v906 = vunpack.c.l.b16 %v841
      %v907 = vunpack.c.l.b16 %v842
      %v908 = vunpack.c.l.b16 %v843
      %v909 = vunpack.c.l.b16 %v844
      %v910 = vunpack.c.l.b16 %v845
      %v911 = vunpack.c.l.b16 %v846
      %v912 = vunpack.c.l.b16 %v847
      %v913 = vunpack.c.l.b16 %v848
      %v914 = vunpack.c.l.b16 %v849
      %v915 = vunpack.c.l.b16 %v850
      %v916 = vunpack.c.l.b16 %v851
      %v917 = vunpack.c.l.b16 %v852
      %v918 = vunpack.c.l.b16 %v853
      %v919 = vunpack.c.l.b16 %v854
      %v920 = vpack.c.b16 %v889, %v888
      %v921 = vpack.c.b16 %v891, %v890
      %v922 = vpack.c.b16 %v893, %v892
      %v923 = vpack.c.b16 %v895, %v894
      %v924 = vpack.c.b16 %v897, %v896
      %v925 = vpack.c.b16 %v899, %v898
      %v926 = vpack.c.b16 %v901, %v900
      %v927 = vpack.c.b16 %v903, %v902
      %v928 = vpack.c.b16 %v905, %v904
      %v929 = vpack.c.b16 %v907, %v906
      %v930 = vpack.c.b16 %v909, %v908
      %v931 = vpack.c.b16 %v911, %v910
      %v932 = vpack.c.b16 %v913, %v912
      %v933 = vpack.c.b16 %v915, %v914
      %v934 = vpack.c.b16 %v917, %v916
      %v935 = vpack.c.b16 %v919, %v918
      %952 = vmatprep.subr.bf16.mxu0 0
      %953 = vmatpush1.bf16.msra.mxu0 %v927
      %954 = vmatprep.subr.bf16.mxu0 0
      %955 = vmatpush1.bf16.msra.mxu0 %v926
      %956 = vmatprep.subr.bf16.mxu0 0
      %957 = vmatpush1.bf16.msra.mxu0 %v925
      %958 = vmatprep.subr.bf16.mxu0 0
      %959 = vmatpush1.bf16.msra.mxu0 %v924
      %960 = vmatprep.subr.bf16.mxu0 0
      %961 = vmatpush1.bf16.msra.mxu0 %v923
      %962 = vmatprep.subr.bf16.mxu0 0
      %963 = vmatpush1.bf16.msra.mxu0 %v922
      %964 = vmatprep.subr.bf16.mxu0 0
      %965 = vmatpush1.bf16.msra.mxu0 %v921
      %966 = vmatprep.subr.bf16.mxu0 0
      %967 = vmatpush1.bf16.msra.mxu0 %v920
      %968 = vmatprep.subr.bf16.mxu0 0
      %969 = vmatpush2.bf16.msra.mxu0 %v935
      %970 = vmatprep.subr.bf16.mxu0 0
      %971 = vmatpush2.bf16.msra.mxu0 %v934
      %972 = vmatprep.subr.bf16.mxu0 0
      %973 = vmatpush2.bf16.msra.mxu0 %v933
      %974 = vmatprep.subr.bf16.mxu0 0
      %975 = vmatpush2.bf16.msra.mxu0 %v932
      %976 = vmatprep.subr.bf16.mxu0 0
      %977 = vmatpush2.bf16.msra.mxu0 %v931
      %978 = vmatprep.subr.bf16.mxu0 0
      %979 = vmatpush2.bf16.msra.mxu0 %v930
      %980 = vmatprep.subr.bf16.mxu0 0
      %981 = vmatpush2.bf16.msra.mxu0 %v929
      %982 = vmatprep.subr.bf16.mxu0 0
      %983 = vmatpush2.bf16.msra.mxu0 %v928
      %984 = vmatprep.mubr.bf16.mxu0 %v822
      %985 = vmatmul.mubr.bf16.gmra.mxu0 %v821
      %v986 = vpop.f32.mrf.mxu0
      %v987 = vadd.f32 %v855, %v986
      %v988 = vpop.f32.mrf.mxu0
      %v989 = vpop.f32.mrf.mxu0
      %v990 = vpop.f32.mrf.mxu0
      %991 = vdwg.mxu0
      %vm992 = vcmp.lt.s32.totalorder %v410, 100
      %v993 = vmax.f32 %v987, 0.0
      %v994 = vadd.f32 %v993, 0.1
      %v995 = vsel %vm992, %v994, 0.0
      %vm996 = vcmask 1040384
      %v997 = vsel %vm996, %v995, 0.0
      %998 = vadd.xlane.f32.xlu0 %v997
      %v999 = vpop.xlane.xlu0 %998
      %v1000 = vrcp.pop %v999
      %v1001 = vmul.f32 %v995, %v1000
      %v1002 = vmul.f32 %v1001, 9.9
      %vm1003 = vcmp.ge.s32.totalorder %v410, 1
      %1004 = vrot.lane.b32.xlu0 %v1002, 1
      %v1005 = vpop.permute.xlu0 %1004
      %v1006 = vsel %vm1003, %v1005, 0.0
      %v1007 = vadd.f32 %v1002, %v1006
      %vm1008 = vcmp.ge.s32.totalorder %v410, 2
      %1009 = vrot.lane.b32.xlu0 %v1007, 2
      %v1010 = vpop.permute.xlu0 %1009
      %v1011 = vsel %vm1008, %v1010, 0.0
      %v1012 = vadd.f32 %v1007, %v1011
      %vm1013 = vcmp.ge.s32.totalorder %v410, 4
      %1014 = vrot.lane.b32.xlu0 %v1012, 4
      %v1015 = vpop.permute.xlu0 %1014
      %v1016 = vsel %vm1013, %v1015, 0.0
      %v1017 = vadd.f32 %v1012, %v1016
      %vm1018 = vcmp.ge.s32.totalorder %v410, 8
      %1019 = vrot.lane.b32.xlu0 %v1017, 8
      %v1020 = vpop.permute.xlu0 %1019
      %v1021 = vsel %vm1018, %v1020, 0.0
      %v1022 = vadd.f32 %v1017, %v1021
      %vm1023 = vcmp.ge.s32.totalorder %v410, 16
      %1024 = vrot.lane.b32.xlu0 %v1022, 16
      %v1025 = vpop.permute.xlu0 %1024
      %v1026 = vsel %vm1023, %v1025, 0.0
      %v1027 = vadd.f32 %v1022, %v1026
      %vm1028 = vcmp.ge.s32.totalorder %v410, 32
      %1029 = vrot.lane.b32.xlu0 %v1027, 32
      %v1030 = vpop.permute.xlu0 %1029
      %v1031 = vsel %vm1028, %v1030, 0.0
      %v1032 = vadd.f32 %v1027, %v1031
      %vm1033 = vcmp.ge.s32.totalorder %v410, 64
      %1034 = vrot.lane.b32.xlu0 %v1032, 64
      %v1035 = vpop.permute.xlu0 %1034
      %v1036 = vsel %vm1033, %v1035, 0.0
      %v1037 = vadd.f32 %v1032, %v1036
      %1038 = vst [vmem:[%s403] sm:$0x1] %v1037
      %v1039 = vadd.f32 %v1037, 0.1
      %v1040 = vmul.f32 %v1002, 0.5
      %v1041 = vsub.f32 %v1039, %v1040
      %v1042 = vld [vmem:[%s400] sm:$0xff]
      %v1043 = vld [vmem:[%s400 + $0x8] sm:$0xff]
      %v1044 = vld [vmem:[%s400 + $0x10] sm:$0xff]
      %v1045 = vld [vmem:[%s400 + $0x18] sm:$0xff]
      %v1046 = vld [vmem:[%s400 + $0x20] sm:$0xf]
      %v1047 = vld [vmem:[%s400 + $0x24] sm:$0xff]
      %v1048 = vld [vmem:[%s400 + $0x2c] sm:$0xff]
      %v1049 = vld [vmem:[%s400 + $0x34] sm:$0xff]
      %v1050 = vld [vmem:[%s400 + $0x3c] sm:$0xff]
      %v1051 = vld [vmem:[%s400 + $0x44] sm:$0xf]
      %v1052 = vld [vmem:[%s400 + $0x48] sm:$0xff]
      %v1053 = vld [vmem:[%s400 + $0x50] sm:$0xff]
      %v1054 = vld [vmem:[%s400 + $0x58] sm:$0xff]
      %v1055 = vld [vmem:[%s400 + $0x60] sm:$0xff]
      %v1056 = vld [vmem:[%s400 + $0x68] sm:$0xf]
      %v1057 = vld [vmem:[%s400 + $0x6c] sm:$0xff]
      %v1058 = vld [vmem:[%s400 + $0x74] sm:$0xff]
      %v1059 = vld [vmem:[%s400 + $0x7c] sm:$0xff]
      %v1060 = vld [vmem:[%s400 + $0x84] sm:$0xff]
      %v1061 = vld [vmem:[%s400 + $0x8c] sm:$0xf]
      %v1062 = vld [vmem:[%s400 + $0x90] sm:$0xff]
      %v1063 = vld [vmem:[%s400 + $0x98] sm:$0xff]
      %v1064 = vld [vmem:[%s400 + $0xa0] sm:$0xff]
      %v1065 = vld [vmem:[%s400 + $0xa8] sm:$0xff]
      %v1066 = vld [vmem:[%s400 + $0xb0] sm:$0xf]
      %v1067 = vld [vmem:[%s400 + $0xb4] sm:$0xff]
      %v1068 = vld [vmem:[%s400 + $0xbc] sm:$0xff]
      %v1069 = vld [vmem:[%s400 + $0xc4] sm:$0xff]
      %v1070 = vld [vmem:[%s400 + $0xcc] sm:$0xff]
      %v1071 = vld [vmem:[%s400 + $0xd4] sm:$0xf]
      %v1072 = vld [vmem:[%s400 + $0xd8] sm:$0xff]
      %v1073 = vld [vmem:[%s400 + $0xe0] sm:$0xff]
      %v1074 = vld [vmem:[%s400 + $0xe8] sm:$0xff]
      %v1075 = vld [vmem:[%s400 + $0xf0] sm:$0xff]
      %v1076 = vld [vmem:[%s400 + $0xf8] sm:$0xf]
      %v1077 = vld [vmem:[%s400 + $0xfc] sm:$0xff]
      %v1078 = vld [vmem:[%s400 + $0x104] sm:$0xff]
      %v1079 = vld [vmem:[%s400 + $0x10c] sm:$0xff]
      %v1080 = vld [vmem:[%s400 + $0x114] sm:$0xff]
      %v1081 = vld [vmem:[%s400 + $0x11c] sm:$0xf]
      %v1082 = vld [vmem:[%s400 + $0x120] sm:$0xff]
      %v1083 = vld [vmem:[%s400 + $0x128] sm:$0xff]
      %v1084 = vld [vmem:[%s400 + $0x130] sm:$0xff]
      %v1085 = vld [vmem:[%s400 + $0x138] sm:$0xff]
      %v1086 = vld [vmem:[%s400 + $0x140] sm:$0xf]
      %v1087 = vld [vmem:[%s400 + $0x144] sm:$0xff]
      %v1088 = vld [vmem:[%s400 + $0x14c] sm:$0xff]
      %v1089 = vld [vmem:[%s400 + $0x154] sm:$0xff]
      %v1090 = vld [vmem:[%s400 + $0x15c] sm:$0xff]
      %v1091 = vld [vmem:[%s400 + $0x164] sm:$0xf]
      %v1092 = vld [vmem:[%s400 + $0x168] sm:$0xff]
      %v1093 = vld [vmem:[%s400 + $0x170] sm:$0xff]
      %v1094 = vld [vmem:[%s400 + $0x178] sm:$0xff]
      %v1095 = vld [vmem:[%s400 + $0x180] sm:$0xff]
      %v1096 = vld [vmem:[%s400 + $0x188] sm:$0xf]
      %v1097 = vld [vmem:[%s400 + $0x18c] sm:$0xff]
      %v1098 = vld [vmem:[%s400 + $0x194] sm:$0xff]
      %v1099 = vld [vmem:[%s400 + $0x19c] sm:$0xff]
      %v1100 = vld [vmem:[%s400 + $0x1a4] sm:$0xff]
      %v1101 = vld [vmem:[%s400 + $0x1ac] sm:$0xf]
      %v1102 = vld [vmem:[%s400 + $0x1b0] sm:$0xff]
      %v1103 = vld [vmem:[%s400 + $0x1b8] sm:$0xff]
      %v1104 = vld [vmem:[%s400 + $0x1c0] sm:$0xff]
      %v1105 = vld [vmem:[%s400 + $0x1c8] sm:$0xff]
      %v1106 = vld [vmem:[%s400 + $0x1d0] sm:$0xf]
      %v1107 = vld [vmem:[%s400 + $0x1d4] sm:$0xff]
      %v1108 = vld [vmem:[%s400 + $0x1dc] sm:$0xff]
      %v1109 = vld [vmem:[%s400 + $0x1e4] sm:$0xff]
      %v1110 = vld [vmem:[%s400 + $0x1ec] sm:$0xff]
      %v1111 = vld [vmem:[%s400 + $0x1f4] sm:$0xf]
      %v1112 = vld [vmem:[%s400 + $0x1f8] sm:$0xff]
      %v1113 = vld [vmem:[%s400 + $0x200] sm:$0xff]
      %v1114 = vld [vmem:[%s400 + $0x208] sm:$0xff]
      %v1115 = vld [vmem:[%s400 + $0x210] sm:$0xff]
      %v1116 = vld [vmem:[%s400 + $0x218] sm:$0xf]
      %v1117 = vld [vmem:[%s400 + $0x21c] sm:$0xff]
      %v1118 = vld [vmem:[%s400 + $0x224] sm:$0xff]
      %v1119 = vld [vmem:[%s400 + $0x22c] sm:$0xff]
      %v1120 = vld [vmem:[%s400 + $0x234] sm:$0xff]
      %v1121 = vld [vmem:[%s400 + $0x23c] sm:$0xf]
      %v1122 = vld [vmem:[%s400 + $0x240] sm:$0xff]
      %v1123 = vld [vmem:[%s400 + $0x248] sm:$0xff]
      %v1124 = vld [vmem:[%s400 + $0x250] sm:$0xff]
      %v1125 = vld [vmem:[%s400 + $0x258] sm:$0xff]
      %v1126 = vld [vmem:[%s400 + $0x260] sm:$0xf]
      %v1127 = vld [vmem:[%s400 + $0x264] sm:$0xff]
      %v1128 = vld [vmem:[%s400 + $0x26c] sm:$0xff]
      %v1129 = vld [vmem:[%s400 + $0x274] sm:$0xff]
      %v1130 = vld [vmem:[%s400 + $0x27c] sm:$0xff]
      %v1131 = vld [vmem:[%s400 + $0x284] sm:$0xf]
      %v1132 = vld [vmem:[%s400 + $0x288] sm:$0xff]
      %v1133 = vld [vmem:[%s400 + $0x290] sm:$0xff]
      %v1134 = vld [vmem:[%s400 + $0x298] sm:$0xff]
      %v1135 = vld [vmem:[%s400 + $0x2a0] sm:$0xff]
      %v1136 = vld [vmem:[%s400 + $0x2a8] sm:$0xf]
      %v1137 = vld [vmem:[%s400 + $0x2ac] sm:$0xff]
      %v1138 = vld [vmem:[%s400 + $0x2b4] sm:$0xff]
      %v1139 = vld [vmem:[%s400 + $0x2bc] sm:$0xff]
      %v1140 = vld [vmem:[%s400 + $0x2c4] sm:$0xff]
      %v1141 = vld [vmem:[%s400 + $0x2cc] sm:$0xf]
      %v1142 = vld [vmem:[%s400 + $0x2d0] sm:$0xff]
      %v1143 = vld [vmem:[%s400 + $0x2d8] sm:$0xff]
      %v1144 = vld [vmem:[%s400 + $0x2e0] sm:$0xff]
      %v1145 = vld [vmem:[%s400 + $0x2e8] sm:$0xff]
      %v1146 = vld [vmem:[%s400 + $0x2f0] sm:$0xf]
      %v1147 = vld [vmem:[%s400 + $0x2f4] sm:$0xff]
      %v1148 = vld [vmem:[%s400 + $0x2fc] sm:$0xff]
      %v1149 = vld [vmem:[%s400 + $0x304] sm:$0xff]
      %v1150 = vld [vmem:[%s400 + $0x30c] sm:$0xff]
      %v1151 = vld [vmem:[%s400 + $0x314] sm:$0xf]
      %v1152 = vld [vmem:[%s400 + $0x318] sm:$0xff]
      %v1153 = vld [vmem:[%s400 + $0x320] sm:$0xff]
      %v1154 = vld [vmem:[%s400 + $0x328] sm:$0xff]
      %v1155 = vld [vmem:[%s400 + $0x330] sm:$0xff]
      %v1156 = vld [vmem:[%s400 + $0x338] sm:$0xf]
      %v1157 = vld [vmem:[%s400 + $0x33c] sm:$0xff]
      %v1158 = vld [vmem:[%s400 + $0x344] sm:$0xff]
      %v1159 = vld [vmem:[%s400 + $0x34c] sm:$0xff]
      %v1160 = vld [vmem:[%s400 + $0x354] sm:$0xff]
      %v1161 = vld [vmem:[%s400 + $0x35c] sm:$0xf]
      %v1162 = vld [vmem:[%s400 + $0x360] sm:$0xff]
      %v1163 = vld [vmem:[%s400 + $0x368] sm:$0xff]
      %v1164 = vld [vmem:[%s400 + $0x370] sm:$0xff]
      %v1165 = vld [vmem:[%s400 + $0x378] sm:$0xff]
      %v1166 = vld [vmem:[%s400 + $0x380] sm:$0xf]
      %v1167 = vld [vmem:[%s400 + $0x384] sm:$0xff]
      %v1168 = vld [vmem:[%s400 + $0x38c] sm:$0xff]
      %v1169 = vld [vmem:[%s400 + $0x394] sm:$0xff]
      %v1170 = vld [vmem:[%s400 + $0x39c] sm:$0xff]
      %v1171 = vld [vmem:[%s400 + $0x3a4] sm:$0xf]
      %v1172 = vld [vmem:[%s400 + $0x3a8] sm:$0xff]
      %v1173 = vld [vmem:[%s400 + $0x3b0] sm:$0xff]
      %v1174 = vld [vmem:[%s400 + $0x3b8] sm:$0xff]
      %v1175 = vld [vmem:[%s400 + $0x3c0] sm:$0xff]
      %v1176 = vld [vmem:[%s400 + $0x3c8] sm:$0xf]
      %v1177 = vld [vmem:[%s400 + $0x3cc] sm:$0xff]
      %v1178 = vld [vmem:[%s400 + $0x3d4] sm:$0xff]
      %v1179 = vld [vmem:[%s400 + $0x3dc] sm:$0xff]
      %v1180 = vld [vmem:[%s400 + $0x3e4] sm:$0xff]
      %v1181 = vld [vmem:[%s400 + $0x3ec] sm:$0xf]
      %v1182 = vld [vmem:[%s400 + $0x3f0] sm:$0xff]
      %v1183 = vld [vmem:[%s400 + $0x3f8] sm:$0xff]
      %v1184 = vld [vmem:[%s400 + $0x400] sm:$0xff]
      %v1185 = vld [vmem:[%s400 + $0x408] sm:$0xff]
      %v1186 = vld [vmem:[%s400 + $0x410] sm:$0xf]
      %v1187 = vld [vmem:[%s400 + $0x414] sm:$0xff]
      %v1188 = vld [vmem:[%s400 + $0x41c] sm:$0xff]
      %v1189 = vld [vmem:[%s400 + $0x424] sm:$0xff]
      %v1190 = vld [vmem:[%s400 + $0x42c] sm:$0xff]
      %v1191 = vld [vmem:[%s400 + $0x434] sm:$0xf]
      %v1192 = vld [vmem:[%s400 + $0x438] sm:$0xff]
      %v1193 = vld [vmem:[%s400 + $0x440] sm:$0xff]
      %v1194 = vld [vmem:[%s400 + $0x448] sm:$0xff]
      %v1195 = vld [vmem:[%s400 + $0x450] sm:$0xff]
      %v1196 = vld [vmem:[%s400 + $0x458] sm:$0xf]
      %v1197 = vld [vmem:[%s400 + $0x45c] sm:$0xff]
      %v1198 = vld [vmem:[%s400 + $0x464] sm:$0xff]
      %v1199 = vld [vmem:[%s400 + $0x46c] sm:$0xff]
      %v1200 = vld [vmem:[%s400 + $0x474] sm:$0xff]
      %v1201 = vld [vmem:[%s400 + $0x47c] sm:$0xf]
      %v1202 = vld [vmem:[%s2] sm:$0xf]
      %v1203 = vld [vmem:[%s2 + $0x4] sm:$0xf]
      %v1204 = vld [vmem:[%s2 + $0x8] sm:$0xf]
      %v1205 = vld [vmem:[%s2 + $0xc] sm:$0xf]
      %v1206 = vld [vmem:[%s2 + $0x10] sm:$0xf]
      %v1207 = vld [vmem:[%s2 + $0x14] sm:$0xf]
      %v1208 = vld [vmem:[%s2 + $0x18] sm:$0xf]
      %v1209 = vld [vmem:[%s2 + $0x1c] sm:$0xf]
      %v1210 = vld [vmem:[%s2 + $0x20] sm:$0xf]
      %v1211 = vld [vmem:[%s2 + $0x24] sm:$0xf]
      %v1212 = vld [vmem:[%s2 + $0x28] sm:$0xf]
      %v1213 = vld [vmem:[%s2 + $0x2c] sm:$0xf]
      %v1214 = vld [vmem:[%s2 + $0x30] sm:$0xf]
      %v1215 = vld [vmem:[%s2 + $0x34] sm:$0xf]
      %v1216 = vld [vmem:[%s2 + $0x38] sm:$0xf]
      %v1217 = vld [vmem:[%s2 + $0x3c] sm:$0xf]
      %v1218 = vld [vmem:[%s2 + $0x40] sm:$0xf]
      %v1219 = vld [vmem:[%s2 + $0x44] sm:$0xf]
      %v1220 = vld [vmem:[%s2 + $0x48] sm:$0xf]
      %v1221 = vld [vmem:[%s2 + $0x4c] sm:$0xf]
      %v1222 = vld [vmem:[%s2 + $0x50] sm:$0xf]
      %v1223 = vld [vmem:[%s2 + $0x54] sm:$0xf]
      %v1224 = vld [vmem:[%s2 + $0x58] sm:$0xf]
      %v1225 = vld [vmem:[%s2 + $0x5c] sm:$0xf]
      %v1226 = vld [vmem:[%s2 + $0x60] sm:$0xf]
      %v1227 = vld [vmem:[%s2 + $0x64] sm:$0xf]
      %v1228 = vld [vmem:[%s2 + $0x68] sm:$0xf]
      %v1229 = vld [vmem:[%s2 + $0x6c] sm:$0xf]
      %v1230 = vld [vmem:[%s2 + $0x70] sm:$0xf]
      %v1231 = vld [vmem:[%s2 + $0x74] sm:$0xf]
      %v1232 = vld [vmem:[%s2 + $0x78] sm:$0xf]
      %v1233 = vld [vmem:[%s2 + $0x7c] sm:$0xf]
      %v1234 = vld [vmem:[%s2 + $0x80] sm:$0xf]
      %v1235 = vld [vmem:[%s2 + $0x84] sm:$0xf]
      %v1236 = vld [vmem:[%s2 + $0x88] sm:$0xf]
      %v1237 = vld [vmem:[%s2 + $0x8c] sm:$0xf]
      %v1238 = vld [vmem:[%s2 + $0x90] sm:$0xf]
      %v1239 = vld [vmem:[%s2 + $0x94] sm:$0xf]
      %v1240 = vld [vmem:[%s2 + $0x98] sm:$0xf]
      %v1241 = vld [vmem:[%s2 + $0x9c] sm:$0xf]
      %v1242 = vld [vmem:[%s2 + $0xa0] sm:$0xf]
      %v1243 = vld [vmem:[%s2 + $0xa4] sm:$0xf]
      %v1244 = vld [vmem:[%s2 + $0xa8] sm:$0xf]
      %v1245 = vld [vmem:[%s2 + $0xac] sm:$0xf]
      %v1246 = vld [vmem:[%s2 + $0xb0] sm:$0xf]
      %v1247 = vld [vmem:[%s2 + $0xb4] sm:$0xf]
      %v1248 = vld [vmem:[%s2 + $0xb8] sm:$0xf]
      %v1249 = vld [vmem:[%s2 + $0xbc] sm:$0xf]
      %v1250 = vld [vmem:[%s2 + $0xc0] sm:$0xf]
      %v1251 = vld [vmem:[%s2 + $0xc4] sm:$0xf]
      %v1252 = vld [vmem:[%s2 + $0xc8] sm:$0xf]
      %v1253 = vld [vmem:[%s2 + $0xcc] sm:$0xf]
      %v1254 = vld [vmem:[%s2 + $0xd0] sm:$0xf]
      %v1255 = vld [vmem:[%s2 + $0xd4] sm:$0xf]
      %v1256 = vld [vmem:[%s2 + $0xd8] sm:$0xf]
      %v1257 = vld [vmem:[%s2 + $0xdc] sm:$0xf]
      %v1258 = vld [vmem:[%s2 + $0xe0] sm:$0xf]
      %v1259 = vld [vmem:[%s2 + $0xe4] sm:$0xf]
      %v1260 = vld [vmem:[%s2 + $0xe8] sm:$0xf]
      %v1261 = vld [vmem:[%s2 + $0xec] sm:$0xf]
      %v1262 = vld [vmem:[%s2 + $0xf0] sm:$0xf]
      %v1263 = vld [vmem:[%s2 + $0xf4] sm:$0xf]
      %v1264 = vld [vmem:[%s2 + $0xf8] sm:$0xf]
      %v1265 = vld [vmem:[%s2 + $0xfc] sm:$0xf]
      %v1266 = vld [vmem:[%s2 + $0x100] sm:$0xf]
      %v1267 = vld [vmem:[%s2 + $0x104] sm:$0xf]
      %v1268 = vld [vmem:[%s2 + $0x108] sm:$0xf]
      %v1269 = vld [vmem:[%s2 + $0x10c] sm:$0xf]
      %v1270 = vld [vmem:[%s2 + $0x110] sm:$0xf]
      %v1271 = vld [vmem:[%s2 + $0x114] sm:$0xf]
      %v1272 = vld [vmem:[%s2 + $0x118] sm:$0xf]
      %v1273 = vld [vmem:[%s2 + $0x11c] sm:$0xf]
      %v1274 = vld [vmem:[%s2 + $0x120] sm:$0xf]
      %v1275 = vld [vmem:[%s2 + $0x124] sm:$0xf]
      %v1276 = vld [vmem:[%s2 + $0x128] sm:$0xf]
      %v1277 = vld [vmem:[%s2 + $0x12c] sm:$0xf]
      %v1278 = vld [vmem:[%s2 + $0x130] sm:$0xf]
      %v1279 = vld [vmem:[%s2 + $0x134] sm:$0xf]
      %v1280 = vld [vmem:[%s2 + $0x138] sm:$0xf]
      %v1281 = vld [vmem:[%s2 + $0x13c] sm:$0xf]
      %v1282 = vld [vmem:[%s2 + $0x140] sm:$0xf]
      %v1283 = vld [vmem:[%s2 + $0x144] sm:$0xf]
      %v1284 = vld [vmem:[%s2 + $0x148] sm:$0xf]
      %v1285 = vld [vmem:[%s2 + $0x14c] sm:$0xf]
      %v1286 = vld [vmem:[%s2 + $0x150] sm:$0xf]
      %v1287 = vld [vmem:[%s2 + $0x154] sm:$0xf]
      %v1288 = vld [vmem:[%s2 + $0x158] sm:$0xf]
      %v1289 = vld [vmem:[%s2 + $0x15c] sm:$0xf]
      %v1290 = vld [vmem:[%s2 + $0x160] sm:$0xf]
      %v1291 = vld [vmem:[%s2 + $0x164] sm:$0xf]
      %v1292 = vld [vmem:[%s2 + $0x168] sm:$0xf]
      %v1293 = vld [vmem:[%s2 + $0x16c] sm:$0xf]
      %v1294 = vld [vmem:[%s2 + $0x170] sm:$0xf]
      %v1295 = vld [vmem:[%s2 + $0x174] sm:$0xf]
      %v1296 = vld [vmem:[%s2 + $0x178] sm:$0xf]
      %v1297 = vld [vmem:[%s2 + $0x17c] sm:$0xf]
      %v1298 = vld [vmem:[%s2 + $0x180] sm:$0xf]
      %v1299 = vld [vmem:[%s2 + $0x184] sm:$0xf]
      %v1300 = vld [vmem:[%s2 + $0x188] sm:$0xf]
      %v1301 = vld [vmem:[%s2 + $0x18c] sm:$0xf]
      %v1302 = vld [vmem:[%s2 + $0x190] sm:$0xf]
      %v1303 = vld [vmem:[%s2 + $0x194] sm:$0xf]
      %v1304 = vld [vmem:[%s2 + $0x198] sm:$0xf]
      %v1305 = vld [vmem:[%s2 + $0x19c] sm:$0xf]
      %v1306 = vld [vmem:[%s2 + $0x1a0] sm:$0xf]
      %v1307 = vld [vmem:[%s2 + $0x1a4] sm:$0xf]
      %v1308 = vld [vmem:[%s2 + $0x1a8] sm:$0xf]
      %v1309 = vld [vmem:[%s2 + $0x1ac] sm:$0xf]
      %v1310 = vld [vmem:[%s2 + $0x1b0] sm:$0xf]
      %v1311 = vld [vmem:[%s2 + $0x1b4] sm:$0xf]
      %v1312 = vld [vmem:[%s2 + $0x1b8] sm:$0xf]
      %v1313 = vld [vmem:[%s2 + $0x1bc] sm:$0xf]
      %v1314 = vld [vmem:[%s2 + $0x1c0] sm:$0xf]
      %v1315 = vld [vmem:[%s2 + $0x1c4] sm:$0xf]
      %v1316 = vld [vmem:[%s2 + $0x1c8] sm:$0xf]
      %v1317 = vld [vmem:[%s2 + $0x1cc] sm:$0xf]
      %v1318 = vld [vmem:[%s2 + $0x1d0] sm:$0xf]
      %v1319 = vld [vmem:[%s2 + $0x1d4] sm:$0xf]
      %v1320 = vld [vmem:[%s2 + $0x1d8] sm:$0xf]
      %v1321 = vld [vmem:[%s2 + $0x1dc] sm:$0xf]
      %v1322 = vld [vmem:[%s2 + $0x1e0] sm:$0xf]
      %v1323 = vld [vmem:[%s2 + $0x1e4] sm:$0xf]
      %v1324 = vld [vmem:[%s2 + $0x1e8] sm:$0xf]
      %v1325 = vld [vmem:[%s2 + $0x1ec] sm:$0xf]
      %v1326 = vld [vmem:[%s2 + $0x1f0] sm:$0xf]
      %v1327 = vld [vmem:[%s2 + $0x1f4] sm:$0xf]
      %v1328 = vld [vmem:[%s2 + $0x1f8] sm:$0xf]
      %v1329 = vld [vmem:[%s2 + $0x1fc] sm:$0xf]
      %v1330 = vld [vmem:[%s2 + $0x200] sm:$0xf]
      %v1331 = vld [vmem:[%s2 + $0x204] sm:$0xf]
      %v1332 = vld [vmem:[%s2 + $0x208] sm:$0xf]
      %v1333 = vld [vmem:[%s2 + $0x20c] sm:$0xf]
      %v1334 = vld [vmem:[%s2 + $0x210] sm:$0xf]
      %v1335 = vld [vmem:[%s2 + $0x214] sm:$0xf]
      %v1336 = vld [vmem:[%s2 + $0x218] sm:$0xf]
      %v1337 = vld [vmem:[%s2 + $0x21c] sm:$0xf]
      %v1338 = vld [vmem:[%s2 + $0x220] sm:$0xf]
      %v1339 = vld [vmem:[%s2 + $0x224] sm:$0xf]
      %v1340 = vld [vmem:[%s2 + $0x228] sm:$0xf]
      %v1341 = vld [vmem:[%s2 + $0x22c] sm:$0xf]
      %v1342 = vld [vmem:[%s2 + $0x230] sm:$0xf]
      %v1343 = vld [vmem:[%s2 + $0x234] sm:$0xf]
      %v1344 = vld [vmem:[%s2 + $0x238] sm:$0xf]
      %v1345 = vld [vmem:[%s2 + $0x23c] sm:$0xf]
      %v1346 = vld [vmem:[%s3] sm:$0x1]
      %v1348 = vlaneseq
      %v1349 = vshrl.u32 %v1348, 7
      %v1350 = vsub.s32 0, %v1349
      %v1351 = vrot.slane %v1346, %v1350
      %v1513 = vunpack.c.l.b16 %v1042
      %v1514 = vunpack.c.h.b16 %v1042
      %v1515 = vunpack.c.l.b16 %v1043
      %v1516 = vunpack.c.h.b16 %v1043
      %v1517 = vunpack.c.l.b16 %v1044
      %v1518 = vunpack.c.h.b16 %v1044
      %v1519 = vunpack.c.l.b16 %v1045
      %v1520 = vunpack.c.h.b16 %v1045
      %v1521 = vunpack.c.l.b16 %v1046
      %v1522 = vunpack.c.l.b16 %v1047
      %v1523 = vunpack.c.h.b16 %v1047
      %v1524 = vunpack.c.l.b16 %v1048
      %v1525 = vunpack.c.h.b16 %v1048
      %v1526 = vunpack.c.l.b16 %v1049
      %v1527 = vunpack.c.h.b16 %v1049
      %v1528 = vunpack.c.l.b16 %v1050
      %v1529 = vunpack.c.h.b16 %v1050
      %v1530 = vunpack.c.l.b16 %v1051
      %v1531 = vunpack.c.l.b16 %v1052
      %v1532 = vunpack.c.h.b16 %v1052
      %v1533 = vunpack.c.l.b16 %v1053
      %v1534 = vunpack.c.h.b16 %v1053
      %v1535 = vunpack.c.l.b16 %v1054
      %v1536 = vunpack.c.h.b16 %v1054
      %v1537 = vunpack.c.l.b16 %v1055
      %v1538 = vunpack.c.h.b16 %v1055
      %v1539 = vunpack.c.l.b16 %v1056
      %v1540 = vunpack.c.l.b16 %v1057
      %v1541 = vunpack.c.h.b16 %v1057
      %v1542 = vunpack.c.l.b16 %v1058
      %v1543 = vunpack.c.h.b16 %v1058
      %v1544 = vunpack.c.l.b16 %v1059
      %v1545 = vunpack.c.h.b16 %v1059
      %v1546 = vunpack.c.l.b16 %v1060
      %v1547 = vunpack.c.h.b16 %v1060
      %v1548 = vunpack.c.l.b16 %v1061
      %v1549 = vunpack.c.l.b16 %v1062
      %v1550 = vunpack.c.h.b16 %v1062
      %v1551 = vunpack.c.l.b16 %v1063
      %v1552 = vunpack.c.h.b16 %v1063
      %v1553 = vunpack.c.l.b16 %v1064
      %v1554 = vunpack.c.h.b16 %v1064
      %v1555 = vunpack.c.l.b16 %v1065
      %v1556 = vunpack.c.h.b16 %v1065
      %v1557 = vunpack.c.l.b16 %v1066
      %v1558 = vunpack.c.l.b16 %v1067
      %v1559 = vunpack.c.h.b16 %v1067
      %v1560 = vunpack.c.l.b16 %v1068
      %v1561 = vunpack.c.h.b16 %v1068
      %v1562 = vunpack.c.l.b16 %v1069
      %v1563 = vunpack.c.h.b16 %v1069
      %v1564 = vunpack.c.l.b16 %v1070
      %v1565 = vunpack.c.h.b16 %v1070
      %v1566 = vunpack.c.l.b16 %v1071
      %v1567 = vunpack.c.l.b16 %v1072
      %v1568 = vunpack.c.h.b16 %v1072
      %v1569 = vunpack.c.l.b16 %v1073
      %v1570 = vunpack.c.h.b16 %v1073
      %v1571 = vunpack.c.l.b16 %v1074
      %v1572 = vunpack.c.h.b16 %v1074
      %v1573 = vunpack.c.l.b16 %v1075
      %v1574 = vunpack.c.h.b16 %v1075
      %v1575 = vunpack.c.l.b16 %v1076
      %v1576 = vunpack.c.l.b16 %v1077
      %v1577 = vunpack.c.h.b16 %v1077
      %v1578 = vunpack.c.l.b16 %v1078
      %v1579 = vunpack.c.h.b16 %v1078
      %v1580 = vunpack.c.l.b16 %v1079
      %v1581 = vunpack.c.h.b16 %v1079
      %v1582 = vunpack.c.l.b16 %v1080
      %v1583 = vunpack.c.h.b16 %v1080
      %v1584 = vunpack.c.l.b16 %v1081
      %v1585 = vunpack.c.l.b16 %v1082
      %v1586 = vunpack.c.h.b16 %v1082
      %v1587 = vunpack.c.l.b16 %v1083
      %v1588 = vunpack.c.h.b16 %v1083
      %v1589 = vunpack.c.l.b16 %v1084
      %v1590 = vunpack.c.h.b16 %v1084
      %v1591 = vunpack.c.l.b16 %v1085
      %v1592 = vunpack.c.h.b16 %v1085
      %v1593 = vunpack.c.l.b16 %v1086
      %v1594 = vunpack.c.l.b16 %v1087
      %v1595 = vunpack.c.h.b16 %v1087
      %v1596 = vunpack.c.l.b16 %v1088
      %v1597 = vunpack.c.h.b16 %v1088
      %v1598 = vunpack.c.l.b16 %v1089
      %v1599 = vunpack.c.h.b16 %v1089
      %v1600 = vunpack.c.l.b16 %v1090
      %v1601 = vunpack.c.h.b16 %v1090
      %v1602 = vunpack.c.l.b16 %v1091
      %v1603 = vunpack.c.l.b16 %v1092
      %v1604 = vunpack.c.h.b16 %v1092
      %v1605 = vunpack.c.l.b16 %v1093
      %v1606 = vunpack.c.h.b16 %v1093
      %v1607 = vunpack.c.l.b16 %v1094
      %v1608 = vunpack.c.h.b16 %v1094
      %v1609 = vunpack.c.l.b16 %v1095
      %v1610 = vunpack.c.h.b16 %v1095
      %v1611 = vunpack.c.l.b16 %v1096
      %v1612 = vunpack.c.l.b16 %v1097
      %v1613 = vunpack.c.h.b16 %v1097
      %v1614 = vunpack.c.l.b16 %v1098
      %v1615 = vunpack.c.h.b16 %v1098
      %v1616 = vunpack.c.l.b16 %v1099
      %v1617 = vunpack.c.h.b16 %v1099
      %v1618 = vunpack.c.l.b16 %v1100
      %v1619 = vunpack.c.h.b16 %v1100
      %v1620 = vunpack.c.l.b16 %v1101
      %v1621 = vunpack.c.l.b16 %v1102
      %v1622 = vunpack.c.h.b16 %v1102
      %v1623 = vunpack.c.l.b16 %v1103
      %v1624 = vunpack.c.h.b16 %v1103
      %v1625 = vunpack.c.l.b16 %v1104
      %v1626 = vunpack.c.h.b16 %v1104
      %v1627 = vunpack.c.l.b16 %v1105
      %v1628 = vunpack.c.h.b16 %v1105
      %v1629 = vunpack.c.l.b16 %v1106
      %v1630 = vunpack.c.l.b16 %v1107
      %v1631 = vunpack.c.h.b16 %v1107
      %v1632 = vunpack.c.l.b16 %v1108
      %v1633 = vunpack.c.h.b16 %v1108
      %v1634 = vunpack.c.l.b16 %v1109
      %v1635 = vunpack.c.h.b16 %v1109
      %v1636 = vunpack.c.l.b16 %v1110
      %v1637 = vunpack.c.h.b16 %v1110
      %v1638 = vunpack.c.l.b16 %v1111
      %v1639 = vunpack.c.l.b16 %v1112
      %v1640 = vunpack.c.h.b16 %v1112
      %v1641 = vunpack.c.l.b16 %v1113
      %v1642 = vunpack.c.h.b16 %v1113
      %v1643 = vunpack.c.l.b16 %v1114
      %v1644 = vunpack.c.h.b16 %v1114
      %v1645 = vunpack.c.l.b16 %v1115
      %v1646 = vunpack.c.h.b16 %v1115
      %v1647 = vunpack.c.l.b16 %v1116
      %v1648 = vunpack.c.l.b16 %v1117
      %v1649 = vunpack.c.h.b16 %v1117
      %v1650 = vunpack.c.l.b16 %v1118
      %v1651 = vunpack.c.h.b16 %v1118
      %v1652 = vunpack.c.l.b16 %v1119
      %v1653 = vunpack.c.h.b16 %v1119
      %v1654 = vunpack.c.l.b16 %v1120
      %v1655 = vunpack.c.h.b16 %v1120
      %v1656 = vunpack.c.l.b16 %v1121
      %v1657 = vunpack.c.l.b16 %v1122
      %v1658 = vunpack.c.h.b16 %v1122
      %v1659 = vunpack.c.l.b16 %v1123
      %v1660 = vunpack.c.h.b16 %v1123
      %v1661 = vunpack.c.l.b16 %v1124
      %v1662 = vunpack.c.h.b16 %v1124
      %v1663 = vunpack.c.l.b16 %v1125
      %v1664 = vunpack.c.h.b16 %v1125
      %v1665 = vunpack.c.l.b16 %v1126
      %v1666 = vunpack.c.l.b16 %v1127
      %v1667 = vunpack.c.h.b16 %v1127
      %v1668 = vunpack.c.l.b16 %v1128
      %v1669 = vunpack.c.h.b16 %v1128
      %v1670 = vunpack.c.l.b16 %v1129
      %v1671 = vunpack.c.h.b16 %v1129
      %v1672 = vunpack.c.l.b16 %v1130
      %v1673 = vunpack.c.h.b16 %v1130
      %v1674 = vunpack.c.l.b16 %v1131
      %v1675 = vunpack.c.l.b16 %v1132
      %v1676 = vunpack.c.h.b16 %v1132
      %v1677 = vunpack.c.l.b16 %v1133
      %v1678 = vunpack.c.h.b16 %v1133
      %v1679 = vunpack.c.l.b16 %v1134
      %v1680 = vunpack.c.h.b16 %v1134
      %v1681 = vunpack.c.l.b16 %v1135
      %v1682 = vunpack.c.h.b16 %v1135
      %v1683 = vunpack.c.l.b16 %v1136
      %v1684 = vunpack.c.l.b16 %v1137
      %v1685 = vunpack.c.h.b16 %v1137
      %v1686 = vunpack.c.l.b16 %v1138
      %v1687 = vunpack.c.h.b16 %v1138
      %v1688 = vunpack.c.l.b16 %v1139
      %v1689 = vunpack.c.h.b16 %v1139
      %v1690 = vunpack.c.l.b16 %v1140
      %v1691 = vunpack.c.h.b16 %v1140
      %v1692 = vunpack.c.l.b16 %v1141
      %v1693 = vunpack.c.l.b16 %v1142
      %v1694 = vunpack.c.h.b16 %v1142
      %v1695 = vunpack.c.l.b16 %v1143
      %v1696 = vunpack.c.h.b16 %v1143
      %v1697 = vunpack.c.l.b16 %v1144
      %v1698 = vunpack.c.h.b16 %v1144
      %v1699 = vunpack.c.l.b16 %v1145
      %v1700 = vunpack.c.h.b16 %v1145
      %v1701 = vunpack.c.l.b16 %v1146
      %v1702 = vunpack.c.l.b16 %v1147
      %v1703 = vunpack.c.h.b16 %v1147
      %v1704 = vunpack.c.l.b16 %v1148
      %v1705 = vunpack.c.h.b16 %v1148
      %v1706 = vunpack.c.l.b16 %v1149
      %v1707 = vunpack.c.h.b16 %v1149
      %v1708 = vunpack.c.l.b16 %v1150
      %v1709 = vunpack.c.h.b16 %v1150
      %v1710 = vunpack.c.l.b16 %v1151
      %v1711 = vunpack.c.l.b16 %v1152
      %v1712 = vunpack.c.h.b16 %v1152
      %v1713 = vunpack.c.l.b16 %v1153
      %v1714 = vunpack.c.h.b16 %v1153
      %v1715 = vunpack.c.l.b16 %v1154
      %v1716 = vunpack.c.h.b16 %v1154
      %v1717 = vunpack.c.l.b16 %v1155
      %v1718 = vunpack.c.h.b16 %v1155
      %v1719 = vunpack.c.l.b16 %v1156
      %v1720 = vunpack.c.l.b16 %v1157
      %v1721 = vunpack.c.h.b16 %v1157
      %v1722 = vunpack.c.l.b16 %v1158
      %v1723 = vunpack.c.h.b16 %v1158
      %v1724 = vunpack.c.l.b16 %v1159
      %v1725 = vunpack.c.h.b16 %v1159
      %v1726 = vunpack.c.l.b16 %v1160
      %v1727 = vunpack.c.h.b16 %v1160
      %v1728 = vunpack.c.l.b16 %v1161
      %v1729 = vunpack.c.l.b16 %v1162
      %v1730 = vunpack.c.h.b16 %v1162
      %v1731 = vunpack.c.l.b16 %v1163
      %v1732 = vunpack.c.h.b16 %v1163
      %v1733 = vunpack.c.l.b16 %v1164
      %v1734 = vunpack.c.h.b16 %v1164
      %v1735 = vunpack.c.l.b16 %v1165
      %v1736 = vunpack.c.h.b16 %v1165
      %v1737 = vunpack.c.l.b16 %v1166
      %v1738 = vunpack.c.l.b16 %v1167
      %v1739 = vunpack.c.h.b16 %v1167
      %v1740 = vunpack.c.l.b16 %v1168
      %v1741 = vunpack.c.h.b16 %v1168
      %v1742 = vunpack.c.l.b16 %v1169
      %v1743 = vunpack.c.h.b16 %v1169
      %v1744 = vunpack.c.l.b16 %v1170
      %v1745 = vunpack.c.h.b16 %v1170
      %v1746 = vunpack.c.l.b16 %v1171
      %v1747 = vunpack.c.l.b16 %v1172
      %v1748 = vunpack.c.h.b16 %v1172
      %v1749 = vunpack.c.l.b16 %v1173
      %v1750 = vunpack.c.h.b16 %v1173
      %v1751 = vunpack.c.l.b16 %v1174
      %v1752 = vunpack.c.h.b16 %v1174
      %v1753 = vunpack.c.l.b16 %v1175
      %v1754 = vunpack.c.h.b16 %v1175
      %v1755 = vunpack.c.l.b16 %v1176
      %v1756 = vunpack.c.l.b16 %v1177
      %v1757 = vunpack.c.h.b16 %v1177
      %v1758 = vunpack.c.l.b16 %v1178
      %v1759 = vunpack.c.h.b16 %v1178
      %v1760 = vunpack.c.l.b16 %v1179
      %v1761 = vunpack.c.h.b16 %v1179
      %v1762 = vunpack.c.l.b16 %v1180
      %v1763 = vunpack.c.h.b16 %v1180
      %v1764 = vunpack.c.l.b16 %v1181
      %v1765 = vunpack.c.l.b16 %v1182
      %v1766 = vunpack.c.h.b16 %v1182
      %v1767 = vunpack.c.l.b16 %v1183
      %v1768 = vunpack.c.h.b16 %v1183
      %v1769 = vunpack.c.l.b16 %v1184
      %v1770 = vunpack.c.h.b16 %v1184
      %v1771 = vunpack.c.l.b16 %v1185
      %v1772 = vunpack.c.h.b16 %v1185
      %v1773 = vunpack.c.l.b16 %v1186
      %v1774 = vunpack.c.l.b16 %v1187
      %v1775 = vunpack.c.h.b16 %v1187
      %v1776 = vunpack.c.l.b16 %v1188
      %v1777 = vunpack.c.h.b16 %v1188
      %v1778 = vunpack.c.l.b16 %v1189
      %v1779 = vunpack.c.h.b16 %v1189
      %v1780 = vunpack.c.l.b16 %v1190
      %v1781 = vunpack.c.h.b16 %v1190
      %v1782 = vunpack.c.l.b16 %v1191
      %v1783 = vunpack.c.l.b16 %v1192
      %v1784 = vunpack.c.h.b16 %v1192
      %v1785 = vunpack.c.l.b16 %v1193
      %v1786 = vunpack.c.h.b16 %v1193
      %v1787 = vunpack.c.l.b16 %v1194
      %v1788 = vunpack.c.h.b16 %v1194
      %v1789 = vunpack.c.l.b16 %v1195
      %v1790 = vunpack.c.h.b16 %v1195
      %v1791 = vunpack.c.l.b16 %v1196
      %v1792 = vunpack.c.l.b16 %v1197
      %v1793 = vunpack.c.h.b16 %v1197
      %v1794 = vunpack.c.l.b16 %v1198
      %v1795 = vunpack.c.h.b16 %v1198
      %v1796 = vunpack.c.l.b16 %v1199
      %v1797 = vunpack.c.h.b16 %v1199
      %v1798 = vunpack.c.l.b16 %v1200
      %v1799 = vunpack.c.h.b16 %v1200
      %v1800 = vunpack.c.l.b16 %v1201
      %v1801 = vpack.c.b16 %v1522, %v1513
      %v1802 = vpack.c.b16 %v1523, %v1514
      %v1803 = vpack.c.b16 %v1524, %v1515
      %v1804 = vpack.c.b16 %v1525, %v1516
      %v1805 = vpack.c.b16 %v1526, %v1517
      %v1806 = vpack.c.b16 %v1527, %v1518
      %v1807 = vpack.c.b16 %v1528, %v1519
      %v1808 = vpack.c.b16 %v1529, %v1520
      %v1809 = vpack.c.b16 %v1530, %v1521
      %v1810 = vpack.c.b16 %v1540, %v1531
      %v1811 = vpack.c.b16 %v1541, %v1532
      %v1812 = vpack.c.b16 %v1542, %v1533
      %v1813 = vpack.c.b16 %v1543, %v1534
      %v1814 = vpack.c.b16 %v1544, %v1535
      %v1815 = vpack.c.b16 %v1545, %v1536
      %v1816 = vpack.c.b16 %v1546, %v1537
      %v1817 = vpack.c.b16 %v1547, %v1538
      %v1818 = vpack.c.b16 %v1548, %v1539
      %v1819 = vpack.c.b16 %v1558, %v1549
      %v1820 = vpack.c.b16 %v1559, %v1550
      %v1821 = vpack.c.b16 %v1560, %v1551
      %v1822 = vpack.c.b16 %v1561, %v1552
      %v1823 = vpack.c.b16 %v1562, %v1553
      %v1824 = vpack.c.b16 %v1563, %v1554
      %v1825 = vpack.c.b16 %v1564, %v1555
      %v1826 = vpack.c.b16 %v1565, %v1556
      %v1827 = vpack.c.b16 %v1566, %v1557
      %v1828 = vpack.c.b16 %v1576, %v1567
      %v1829 = vpack.c.b16 %v1577, %v1568
      %v1830 = vpack.c.b16 %v1578, %v1569
      %v1831 = vpack.c.b16 %v1579, %v1570
      %v1832 = vpack.c.b16 %v1580, %v1571
      %v1833 = vpack.c.b16 %v1581, %v1572
      %v1834 = vpack.c.b16 %v1582, %v1573
      %v1835 = vpack.c.b16 %v1583, %v1574
      %v1836 = vpack.c.b16 %v1584, %v1575
      %v1837 = vpack.c.b16 %v1594, %v1585
      %v1838 = vpack.c.b16 %v1595, %v1586
      %v1839 = vpack.c.b16 %v1596, %v1587
      %v1840 = vpack.c.b16 %v1597, %v1588
      %v1841 = vpack.c.b16 %v1598, %v1589
      %v1842 = vpack.c.b16 %v1599, %v1590
      %v1843 = vpack.c.b16 %v1600, %v1591
      %v1844 = vpack.c.b16 %v1601, %v1592
      %v1845 = vpack.c.b16 %v1602, %v1593
      %v1846 = vpack.c.b16 %v1612, %v1603
      %v1847 = vpack.c.b16 %v1613, %v1604
      %v1848 = vpack.c.b16 %v1614, %v1605
      %v1849 = vpack.c.b16 %v1615, %v1606
      %v1850 = vpack.c.b16 %v1616, %v1607
      %v1851 = vpack.c.b16 %v1617, %v1608
      %v1852 = vpack.c.b16 %v1618, %v1609
      %v1853 = vpack.c.b16 %v1619, %v1610
      %v1854 = vpack.c.b16 %v1620, %v1611
      %v1855 = vpack.c.b16 %v1630, %v1621
      %v1856 = vpack.c.b16 %v1631, %v1622
      %v1857 = vpack.c.b16 %v1632, %v1623
      %v1858 = vpack.c.b16 %v1633, %v1624
      %v1859 = vpack.c.b16 %v1634, %v1625
      %v1860 = vpack.c.b16 %v1635, %v1626
      %v1861 = vpack.c.b16 %v1636, %v1627
      %v1862 = vpack.c.b16 %v1637, %v1628
      %v1863 = vpack.c.b16 %v1638, %v1629
      %v1864 = vpack.c.b16 %v1648, %v1639
      %v1865 = vpack.c.b16 %v1649, %v1640
      %v1866 = vpack.c.b16 %v1650, %v1641
      %v1867 = vpack.c.b16 %v1651, %v1642
      %v1868 = vpack.c.b16 %v1652, %v1643
      %v1869 = vpack.c.b16 %v1653, %v1644
      %v1870 = vpack.c.b16 %v1654, %v1645
      %v1871 = vpack.c.b16 %v1655, %v1646
      %v1872 = vpack.c.b16 %v1656, %v1647
      %v1873 = vpack.c.b16 %v1666, %v1657
      %v1874 = vpack.c.b16 %v1667, %v1658
      %v1875 = vpack.c.b16 %v1668, %v1659
      %v1876 = vpack.c.b16 %v1669, %v1660
      %v1877 = vpack.c.b16 %v1670, %v1661
      %v1878 = vpack.c.b16 %v1671, %v1662
      %v1879 = vpack.c.b16 %v1672, %v1663
      %v1880 = vpack.c.b16 %v1673, %v1664
      %v1881 = vpack.c.b16 %v1674, %v1665
      %v1882 = vpack.c.b16 %v1684, %v1675
      %v1883 = vpack.c.b16 %v1685, %v1676
      %v1884 = vpack.c.b16 %v1686, %v1677
      %v1885 = vpack.c.b16 %v1687, %v1678
      %v1886 = vpack.c.b16 %v1688, %v1679
      %v1887 = vpack.c.b16 %v1689, %v1680
      %v1888 = vpack.c.b16 %v1690, %v1681
      %v1889 = vpack.c.b16 %v1691, %v1682
      %v1890 = vpack.c.b16 %v1692, %v1683
      %v1891 = vpack.c.b16 %v1702, %v1693
      %v1892 = vpack.c.b16 %v1703, %v1694
      %v1893 = vpack.c.b16 %v1704, %v1695
      %v1894 = vpack.c.b16 %v1705, %v1696
      %v1895 = vpack.c.b16 %v1706, %v1697
      %v1896 = vpack.c.b16 %v1707, %v1698
      %v1897 = vpack.c.b16 %v1708, %v1699
      %v1898 = vpack.c.b16 %v1709, %v1700
      %v1899 = vpack.c.b16 %v1710, %v1701
      %v1900 = vpack.c.b16 %v1720, %v1711
      %v1901 = vpack.c.b16 %v1721, %v1712
      %v1902 = vpack.c.b16 %v1722, %v1713
      %v1903 = vpack.c.b16 %v1723, %v1714
      %v1904 = vpack.c.b16 %v1724, %v1715
      %v1905 = vpack.c.b16 %v1725, %v1716
      %v1906 = vpack.c.b16 %v1726, %v1717
      %v1907 = vpack.c.b16 %v1727, %v1718
      %v1908 = vpack.c.b16 %v1728, %v1719
      %v1909 = vpack.c.b16 %v1738, %v1729
      %v1910 = vpack.c.b16 %v1739, %v1730
      %v1911 = vpack.c.b16 %v1740, %v1731
      %v1912 = vpack.c.b16 %v1741, %v1732
      %v1913 = vpack.c.b16 %v1742, %v1733
      %v1914 = vpack.c.b16 %v1743, %v1734
      %v1915 = vpack.c.b16 %v1744, %v1735
      %v1916 = vpack.c.b16 %v1745, %v1736
      %v1917 = vpack.c.b16 %v1746, %v1737
      %v1918 = vpack.c.b16 %v1756, %v1747
      %v1919 = vpack.c.b16 %v1757, %v1748
      %v1920 = vpack.c.b16 %v1758, %v1749
      %v1921 = vpack.c.b16 %v1759, %v1750
      %v1922 = vpack.c.b16 %v1760, %v1751
      %v1923 = vpack.c.b16 %v1761, %v1752
      %v1924 = vpack.c.b16 %v1762, %v1753
      %v1925 = vpack.c.b16 %v1763, %v1754
      %v1926 = vpack.c.b16 %v1764, %v1755
      %v1927 = vpack.c.b16 %v1774, %v1765
      %v1928 = vpack.c.b16 %v1775, %v1766
      %v1929 = vpack.c.b16 %v1776, %v1767
      %v1930 = vpack.c.b16 %v1777, %v1768
      %v1931 = vpack.c.b16 %v1778, %v1769
      %v1932 = vpack.c.b16 %v1779, %v1770
      %v1933 = vpack.c.b16 %v1780, %v1771
      %v1934 = vpack.c.b16 %v1781, %v1772
      %v1935 = vpack.c.b16 %v1782, %v1773
      %v1936 = vpack.c.b16 %v1792, %v1783
      %v1937 = vpack.c.b16 %v1793, %v1784
      %v1938 = vpack.c.b16 %v1794, %v1785
      %v1939 = vpack.c.b16 %v1795, %v1786
      %v1940 = vpack.c.b16 %v1796, %v1787
      %v1941 = vpack.c.b16 %v1797, %v1788
      %v1942 = vpack.c.b16 %v1798, %v1789
      %v1943 = vpack.c.b16 %v1799, %v1790
      %v1944 = vpack.c.b16 %v1800, %v1791
      %v2233 = vunpack.c.l.b16 %v1202
      %v2234 = vunpack.c.l.b16 %v1203
      %v2235 = vunpack.c.l.b16 %v1204
      %v2236 = vunpack.c.l.b16 %v1205
      %v2237 = vunpack.c.l.b16 %v1206
      %v2238 = vunpack.c.l.b16 %v1207
      %v2239 = vunpack.c.l.b16 %v1208
      %v2240 = vunpack.c.l.b16 %v1209
      %v2241 = vunpack.c.l.b16 %v1210
      %v2242 = vunpack.c.l.b16 %v1211
      %v2243 = vunpack.c.l.b16 %v1212
      %v2244 = vunpack.c.l.b16 %v1213
      %v2245 = vunpack.c.l.b16 %v1214
      %v2246 = vunpack.c.l.b16 %v1215
      %v2247 = vunpack.c.l.b16 %v1216
      %v2248 = vunpack.c.l.b16 %v1217
      %v2249 = vunpack.c.l.b16 %v1218
      %v2250 = vunpack.c.l.b16 %v1219
      %v2251 = vunpack.c.l.b16 %v1220
      %v2252 = vunpack.c.l.b16 %v1221
      %v2253 = vunpack.c.l.b16 %v1222
      %v2254 = vunpack.c.l.b16 %v1223
      %v2255 = vunpack.c.l.b16 %v1224
      %v2256 = vunpack.c.l.b16 %v1225
      %v2257 = vunpack.c.l.b16 %v1226
      %v2258 = vunpack.c.l.b16 %v1227
      %v2259 = vunpack.c.l.b16 %v1228
      %v2260 = vunpack.c.l.b16 %v1229
      %v2261 = vunpack.c.l.b16 %v1230
      %v2262 = vunpack.c.l.b16 %v1231
      %v2263 = vunpack.c.l.b16 %v1232
      %v2264 = vunpack.c.l.b16 %v1233
      %v2265 = vunpack.c.l.b16 %v1234
      %v2266 = vunpack.c.l.b16 %v1235
      %v2267 = vunpack.c.l.b16 %v1236
      %v2268 = vunpack.c.l.b16 %v1237
      %v2269 = vunpack.c.l.b16 %v1238
      %v2270 = vunpack.c.l.b16 %v1239
      %v2271 = vunpack.c.l.b16 %v1240
      %v2272 = vunpack.c.l.b16 %v1241
      %v2273 = vunpack.c.l.b16 %v1242
      %v2274 = vunpack.c.l.b16 %v1243
      %v2275 = vunpack.c.l.b16 %v1244
      %v2276 = vunpack.c.l.b16 %v1245
      %v2277 = vunpack.c.l.b16 %v1246
      %v2278 = vunpack.c.l.b16 %v1247
      %v2279 = vunpack.c.l.b16 %v1248
      %v2280 = vunpack.c.l.b16 %v1249
      %v2281 = vunpack.c.l.b16 %v1250
      %v2282 = vunpack.c.l.b16 %v1251
      %v2283 = vunpack.c.l.b16 %v1252
      %v2284 = vunpack.c.l.b16 %v1253
      %v2285 = vunpack.c.l.b16 %v1254
      %v2286 = vunpack.c.l.b16 %v1255
      %v2287 = vunpack.c.l.b16 %v1256
      %v2288 = vunpack.c.l.b16 %v1257
      %v2289 = vunpack.c.l.b16 %v1258
      %v2290 = vunpack.c.l.b16 %v1259
      %v2291 = vunpack.c.l.b16 %v1260
      %v2292 = vunpack.c.l.b16 %v1261
      %v2293 = vunpack.c.l.b16 %v1262
      %v2294 = vunpack.c.l.b16 %v1263
      %v2295 = vunpack.c.l.b16 %v1264
      %v2296 = vunpack.c.l.b16 %v1265
      %v2297 = vunpack.c.l.b16 %v1266
      %v2298 = vunpack.c.l.b16 %v1267
      %v2299 = vunpack.c.l.b16 %v1268
      %v2300 = vunpack.c.l.b16 %v1269
      %v2301 = vunpack.c.l.b16 %v1270
      %v2302 = vunpack.c.l.b16 %v1271
      %v2303 = vunpack.c.l.b16 %v1272
      %v2304 = vunpack.c.l.b16 %v1273
      %v2305 = vunpack.c.l.b16 %v1274
      %v2306 = vunpack.c.l.b16 %v1275
      %v2307 = vunpack.c.l.b16 %v1276
      %v2308 = vunpack.c.l.b16 %v1277
      %v2309 = vunpack.c.l.b16 %v1278
      %v2310 = vunpack.c.l.b16 %v1279
      %v2311 = vunpack.c.l.b16 %v1280
      %v2312 = vunpack.c.l.b16 %v1281
      %v2313 = vunpack.c.l.b16 %v1282
      %v2314 = vunpack.c.l.b16 %v1283
      %v2315 = vunpack.c.l.b16 %v1284
      %v2316 = vunpack.c.l.b16 %v1285
      %v2317 = vunpack.c.l.b16 %v1286
      %v2318 = vunpack.c.l.b16 %v1287
      %v2319 = vunpack.c.l.b16 %v1288
      %v2320 = vunpack.c.l.b16 %v1289
      %v2321 = vunpack.c.l.b16 %v1290
      %v2322 = vunpack.c.l.b16 %v1291
      %v2323 = vunpack.c.l.b16 %v1292
      %v2324 = vunpack.c.l.b16 %v1293
      %v2325 = vunpack.c.l.b16 %v1294
      %v2326 = vunpack.c.l.b16 %v1295
      %v2327 = vunpack.c.l.b16 %v1296
      %v2328 = vunpack.c.l.b16 %v1297
      %v2329 = vunpack.c.l.b16 %v1298
      %v2330 = vunpack.c.l.b16 %v1299
      %v2331 = vunpack.c.l.b16 %v1300
      %v2332 = vunpack.c.l.b16 %v1301
      %v2333 = vunpack.c.l.b16 %v1302
      %v2334 = vunpack.c.l.b16 %v1303
      %v2335 = vunpack.c.l.b16 %v1304
      %v2336 = vunpack.c.l.b16 %v1305
      %v2337 = vunpack.c.l.b16 %v1306
      %v2338 = vunpack.c.l.b16 %v1307
      %v2339 = vunpack.c.l.b16 %v1308
      %v2340 = vunpack.c.l.b16 %v1309
      %v2341 = vunpack.c.l.b16 %v1310
      %v2342 = vunpack.c.l.b16 %v1311
      %v2343 = vunpack.c.l.b16 %v1312
      %v2344 = vunpack.c.l.b16 %v1313
      %v2345 = vunpack.c.l.b16 %v1314
      %v2346 = vunpack.c.l.b16 %v1315
      %v2347 = vunpack.c.l.b16 %v1316
      %v2348 = vunpack.c.l.b16 %v1317
      %v2349 = vunpack.c.l.b16 %v1318
      %v2350 = vunpack.c.l.b16 %v1319
      %v2351 = vunpack.c.l.b16 %v1320
      %v2352 = vunpack.c.l.b16 %v1321
      %v2353 = vunpack.c.l.b16 %v1322
      %v2354 = vunpack.c.l.b16 %v1323
      %v2355 = vunpack.c.l.b16 %v1324
      %v2356 = vunpack.c.l.b16 %v1325
      %v2357 = vunpack.c.l.b16 %v1326
      %v2358 = vunpack.c.l.b16 %v1327
      %v2359 = vunpack.c.l.b16 %v1328
      %v2360 = vunpack.c.l.b16 %v1329
      %v2361 = vunpack.c.l.b16 %v1330
      %v2362 = vunpack.c.l.b16 %v1331
      %v2363 = vunpack.c.l.b16 %v1332
      %v2364 = vunpack.c.l.b16 %v1333
      %v2365 = vunpack.c.l.b16 %v1334
      %v2366 = vunpack.c.l.b16 %v1335
      %v2367 = vunpack.c.l.b16 %v1336
      %v2368 = vunpack.c.l.b16 %v1337
      %v2369 = vunpack.c.l.b16 %v1338
      %v2370 = vunpack.c.l.b16 %v1339
      %v2371 = vunpack.c.l.b16 %v1340
      %v2372 = vunpack.c.l.b16 %v1341
      %v2373 = vunpack.c.l.b16 %v1342
      %v2374 = vunpack.c.l.b16 %v1343
      %v2375 = vunpack.c.l.b16 %v1344
      %v2376 = vunpack.c.l.b16 %v1345
      %v2377 = vpack.c.b16 %v2234, %v2233
      %v2378 = vpack.c.b16 %v2236, %v2235
      %v2379 = vpack.c.b16 %v2238, %v2237
      %v2380 = vpack.c.b16 %v2240, %v2239
      %v2381 = vpack.c.b16 %v2242, %v2241
      %v2382 = vpack.c.b16 %v2244, %v2243
      %v2383 = vpack.c.b16 %v2246, %v2245
      %v2384 = vpack.c.b16 %v2248, %v2247
      %v2385 = vpack.c.b16 %v2250, %v2249
      %v2386 = vpack.c.b16 %v2252, %v2251
      %v2387 = vpack.c.b16 %v2254, %v2253
      %v2388 = vpack.c.b16 %v2256, %v2255
      %v2389 = vpack.c.b16 %v2258, %v2257
      %v2390 = vpack.c.b16 %v2260, %v2259
      %v2391 = vpack.c.b16 %v2262, %v2261
      %v2392 = vpack.c.b16 %v2264, %v2263
      %v2393 = vpack.c.b16 %v2266, %v2265
      %v2394 = vpack.c.b16 %v2268, %v2267
      %v2395 = vpack.c.b16 %v2270, %v2269
      %v2396 = vpack.c.b16 %v2272, %v2271
      %v2397 = vpack.c.b16 %v2274, %v2273
      %v2398 = vpack.c.b16 %v2276, %v2275
      %v2399 = vpack.c.b16 %v2278, %v2277
      %v2400 = vpack.c.b16 %v2280, %v2279
      %v2401 = vpack.c.b16 %v2282, %v2281
      %v2402 = vpack.c.b16 %v2284, %v2283
      %v2403 = vpack.c.b16 %v2286, %v2285
      %v2404 = vpack.c.b16 %v2288, %v2287
      %v2405 = vpack.c.b16 %v2290, %v2289
      %v2406 = vpack.c.b16 %v2292, %v2291
      %v2407 = vpack.c.b16 %v2294, %v2293
      %v2408 = vpack.c.b16 %v2296, %v2295
      %v2409 = vpack.c.b16 %v2298, %v2297
      %v2410 = vpack.c.b16 %v2300, %v2299
      %v2411 = vpack.c.b16 %v2302, %v2301
      %v2412 = vpack.c.b16 %v2304, %v2303
      %v2413 = vpack.c.b16 %v2306, %v2305
      %v2414 = vpack.c.b16 %v2308, %v2307
      %v2415 = vpack.c.b16 %v2310, %v2309
      %v2416 = vpack.c.b16 %v2312, %v2311
      %v2417 = vpack.c.b16 %v2314, %v2313
      %v2418 = vpack.c.b16 %v2316, %v2315
      %v2419 = vpack.c.b16 %v2318, %v2317
      %v2420 = vpack.c.b16 %v2320, %v2319
      %v2421 = vpack.c.b16 %v2322, %v2321
      %v2422 = vpack.c.b16 %v2324, %v2323
      %v2423 = vpack.c.b16 %v2326, %v2325
      %v2424 = vpack.c.b16 %v2328, %v2327
      %v2425 = vpack.c.b16 %v2330, %v2329
      %v2426 = vpack.c.b16 %v2332, %v2331
      %v2427 = vpack.c.b16 %v2334, %v2333
      %v2428 = vpack.c.b16 %v2336, %v2335
      %v2429 = vpack.c.b16 %v2338, %v2337
      %v2430 = vpack.c.b16 %v2340, %v2339
      %v2431 = vpack.c.b16 %v2342, %v2341
      %v2432 = vpack.c.b16 %v2344, %v2343
      %v2433 = vpack.c.b16 %v2346, %v2345
      %v2434 = vpack.c.b16 %v2348, %v2347
      %v2435 = vpack.c.b16 %v2350, %v2349
      %v2436 = vpack.c.b16 %v2352, %v2351
      %v2437 = vpack.c.b16 %v2354, %v2353
      %v2438 = vpack.c.b16 %v2356, %v2355
      %v2439 = vpack.c.b16 %v2358, %v2357
      %v2440 = vpack.c.b16 %v2360, %v2359
      %v2441 = vpack.c.b16 %v2362, %v2361
      %v2442 = vpack.c.b16 %v2364, %v2363
      %v2443 = vpack.c.b16 %v2366, %v2365
      %v2444 = vpack.c.b16 %v2368, %v2367
      %v2445 = vpack.c.b16 %v2370, %v2369
      %v2446 = vpack.c.b16 %v2372, %v2371
      %v2447 = vpack.c.b16 %v2374, %v2373
      %v2448 = vpack.c.b16 %v2376, %v2375
      %2521 = vmatprep.subr.bf16.mxu0 0
      %2522 = vmatpush1.bf16.msra.mxu0 %v2384
      %2523 = vmatprep.subr.bf16.mxu0 0
      %2524 = vmatpush1.bf16.msra.mxu0 %v2383
      %2525 = vmatprep.subr.bf16.mxu0 0
      %2526 = vmatpush1.bf16.msra.mxu0 %v2382
      %2527 = vmatprep.subr.bf16.mxu0 0
      %2528 = vmatpush1.bf16.msra.mxu0 %v2381
      %2529 = vmatprep.subr.bf16.mxu0 0
      %2530 = vmatpush1.bf16.msra.mxu0 %v2380
      %2531 = vmatprep.subr.bf16.mxu0 0
      %2532 = vmatpush1.bf16.msra.mxu0 %v2379
      %2533 = vmatprep.subr.bf16.mxu0 0
      %2534 = vmatpush1.bf16.msra.mxu0 %v2378
      %2535 = vmatprep.subr.bf16.mxu0 0
      %2536 = vmatpush1.bf16.msra.mxu0 %v2377
      %2537 = vmatprep.subr.bf16.mxu0 0
      %2538 = vmatpush2.bf16.msra.mxu0 %v2392
      %2539 = vmatprep.subr.bf16.mxu0 0
      %2540 = vmatpush2.bf16.msra.mxu0 %v2391
      %2541 = vmatprep.subr.bf16.mxu0 0
      %2542 = vmatpush2.bf16.msra.mxu0 %v2390
      %2543 = vmatprep.subr.bf16.mxu0 0
      %2544 = vmatpush2.bf16.msra.mxu0 %v2389
      %2545 = vmatprep.subr.bf16.mxu0 0
      %2546 = vmatpush2.bf16.msra.mxu0 %v2388
      %2547 = vmatprep.subr.bf16.mxu0 0
      %2548 = vmatpush2.bf16.msra.mxu0 %v2387
      %2549 = vmatprep.subr.bf16.mxu0 0
      %2550 = vmatpush2.bf16.msra.mxu0 %v2386
      %2551 = vmatprep.subr.bf16.mxu0 0
      %2552 = vmatpush2.bf16.msra.mxu0 %v2385
      %2553 = vmatprep.mubr.bf16.mxu0 %v1802
      %2554 = vmatmul.mubr.bf16.gmra.mxu0 %v1801
      %v2555 = vpop.f32.mrf.mxu0
      %v2556 = vadd.f32 %v1351, %v2555
      %v2557 = vpop.f32.mrf.mxu0
      %v2558 = vpop.f32.mrf.mxu0
      %v2559 = vadd.f32 %v1351, %v2558
      %v2560 = vpop.f32.mrf.mxu0
      %2561 = vmatprep.mubr.bf16.mxu0 %v1811
      %2562 = vmatmul.mubr.bf16.gmra.mxu0 %v1810
      %v2563 = vpop.f32.mrf.mxu0
      %v2564 = vadd.f32 %v1351, %v2563
      %v2565 = vpop.f32.mrf.mxu0
      %v2566 = vpop.f32.mrf.mxu0
      %v2567 = vadd.f32 %v1351, %v2566
      %v2568 = vpop.f32.mrf.mxu0
      %2569 = vmatprep.mubr.bf16.mxu0 %v1820
      %2570 = vmatmul.mubr.bf16.gmra.mxu0 %v1819
      %v2571 = vpop.f32.mrf.mxu0
      %v2572 = vadd.f32 %v1351, %v2571
      %v2573 = vpop.f32.mrf.mxu0
      %v2574 = vpop.f32.mrf.mxu0
      %v2575 = vadd.f32 %v1351, %v2574
      %v2576 = vpop.f32.mrf.mxu0
      %2577 = vmatprep.mubr.bf16.mxu0 %v1829
      %2578 = vmatmul.mubr.bf16.gmra.mxu0 %v1828
      %v2579 = vpop.f32.mrf.mxu0
      %v2580 = vadd.f32 %v1351, %v2579
      %v2581 = vpop.f32.mrf.mxu0
      %v2582 = vpop.f32.mrf.mxu0
      %v2583 = vadd.f32 %v1351, %v2582
      %v2584 = vpop.f32.mrf.mxu0
      %2585 = vmatprep.mubr.bf16.mxu0 %v1838
      %2586 = vmatmul.mubr.bf16.gmra.mxu0 %v1837
      %v2587 = vpop.f32.mrf.mxu0
      %v2588 = vadd.f32 %v1351, %v2587
      %v2589 = vpop.f32.mrf.mxu0
      %v2590 = vpop.f32.mrf.mxu0
      %v2591 = vadd.f32 %v1351, %v2590
      %v2592 = vpop.f32.mrf.mxu0
      %2593 = vmatprep.mubr.bf16.mxu0 %v1847
      %2594 = vmatmul.mubr.bf16.gmra.mxu0 %v1846
      %v2595 = vpop.f32.mrf.mxu0
      %v2596 = vadd.f32 %v1351, %v2595
      %v2597 = vpop.f32.mrf.mxu0
      %v2598 = vpop.f32.mrf.mxu0
      %v2599 = vadd.f32 %v1351, %v2598
      %v2600 = vpop.f32.mrf.mxu0
      %2601 = vmatprep.mubr.bf16.mxu0 %v1856
      %2602 = vmatmul.mubr.bf16.gmra.mxu0 %v1855
      %v2603 = vpop.f32.mrf.mxu0
      %v2604 = vadd.f32 %v1351, %v2603
      %v2605 = vpop.f32.mrf.mxu0
      %v2606 = vpop.f32.mrf.mxu0
      %v2607 = vadd.f32 %v1351, %v2606
      %v2608 = vpop.f32.mrf.mxu0
      %2609 = vmatprep.mubr.bf16.mxu0 %v1865
      %2610 = vmatmul.mubr.bf16.gmra.mxu0 %v1864
      %v2611 = vpop.f32.mrf.mxu0
      %v2612 = vadd.f32 %v1351, %v2611
      %v2613 = vpop.f32.mrf.mxu0
      %v2614 = vpop.f32.mrf.mxu0
      %v2615 = vadd.f32 %v1351, %v2614
      %v2616 = vpop.f32.mrf.mxu0
      %2617 = vmatprep.mubr.bf16.mxu0 %v1874
      %2618 = vmatmul.mubr.bf16.gmra.mxu0 %v1873
      %v2619 = vpop.f32.mrf.mxu0
      %v2620 = vadd.f32 %v1351, %v2619
      %v2621 = vpop.f32.mrf.mxu0
      %v2622 = vpop.f32.mrf.mxu0
      %v2623 = vadd.f32 %v1351, %v2622
      %v2624 = vpop.f32.mrf.mxu0
      %2625 = vmatprep.mubr.bf16.mxu0 %v1883
      %2626 = vmatmul.mubr.bf16.gmra.mxu0 %v1882
      %v2627 = vpop.f32.mrf.mxu0
      %v2628 = vadd.f32 %v1351, %v2627
      %v2629 = vpop.f32.mrf.mxu0
      %v2630 = vpop.f32.mrf.mxu0
      %v2631 = vadd.f32 %v1351, %v2630
      %v2632 = vpop.f32.mrf.mxu0
      %2633 = vmatprep.mubr.bf16.mxu0 %v1892
      %2634 = vmatmul.mubr.bf16.gmra.mxu0 %v1891
      %v2635 = vpop.f32.mrf.mxu0
      %v2636 = vadd.f32 %v1351, %v2635
      %v2637 = vpop.f32.mrf.mxu0
      %v2638 = vpop.f32.mrf.mxu0
      %v2639 = vadd.f32 %v1351, %v2638
      %v2640 = vpop.f32.mrf.mxu0
      %2641 = vmatprep.mubr.bf16.mxu0 %v1901
      %2642 = vmatmul.mubr.bf16.gmra.mxu0 %v1900
      %v2643 = vpop.f32.mrf.mxu0
      %v2644 = vadd.f32 %v1351, %v2643
      %v2645 = vpop.f32.mrf.mxu0
      %v2646 = vpop.f32.mrf.mxu0
      %v2647 = vadd.f32 %v1351, %v2646
      %v2648 = vpop.f32.mrf.mxu0
      %2649 = vmatprep.mubr.bf16.mxu0 %v1910
      %2650 = vmatmul.mubr.bf16.gmra.mxu0 %v1909
      %v2651 = vpop.f32.mrf.mxu0
      %v2652 = vadd.f32 %v1351, %v2651
      %v2653 = vpop.f32.mrf.mxu0
      %v2654 = vpop.f32.mrf.mxu0
      %v2655 = vadd.f32 %v1351, %v2654
      %v2656 = vpop.f32.mrf.mxu0
      %2657 = vmatprep.mubr.bf16.mxu0 %v1919
      %2658 = vmatmul.mubr.bf16.gmra.mxu0 %v1918
      %v2659 = vpop.f32.mrf.mxu0
      %v2660 = vadd.f32 %v1351, %v2659
      %v2661 = vpop.f32.mrf.mxu0
      %v2662 = vpop.f32.mrf.mxu0
      %v2663 = vadd.f32 %v1351, %v2662
      %v2664 = vpop.f32.mrf.mxu0
      %2665 = vmatprep.mubr.bf16.mxu0 %v1928
      %2666 = vmatmul.mubr.bf16.gmra.mxu0 %v1927
      %v2667 = vpop.f32.mrf.mxu0
      %v2668 = vadd.f32 %v1351, %v2667
      %v2669 = vpop.f32.mrf.mxu0
      %v2670 = vpop.f32.mrf.mxu0
      %v2671 = vadd.f32 %v1351, %v2670
      %v2672 = vpop.f32.mrf.mxu0
      %2673 = vmatprep.mubr.bf16.mxu0 %v1937
      %2674 = vmatmul.mubr.bf16.gmra.mxu0 %v1936
      %v2675 = vpop.f32.mrf.mxu0
      %v2676 = vadd.f32 %v1351, %v2675
      %v2677 = vpop.f32.mrf.mxu0
      %v2678 = vpop.f32.mrf.mxu0
      %v2679 = vadd.f32 %v1351, %v2678
      %v2680 = vpop.f32.mrf.mxu0
      %2681 = vdwg.mxu0
      %2682 = vmatprep.subr.bf16.mxu0 0
      %2683 = vmatpush1.bf16.msra.mxu0 %v2400
      %2684 = vmatprep.subr.bf16.mxu0 0
      %2685 = vmatpush1.bf16.msra.mxu0 %v2399
      %2686 = vmatprep.subr.bf16.mxu0 0
      %2687 = vmatpush1.bf16.msra.mxu0 %v2398
      %2688 = vmatprep.subr.bf16.mxu0 0
      %2689 = vmatpush1.bf16.msra.mxu0 %v2397
      %2690 = vmatprep.subr.bf16.mxu0 0
      %2691 = vmatpush1.bf16.msra.mxu0 %v2396
      %2692 = vmatprep.subr.bf16.mxu0 0
      %2693 = vmatpush1.bf16.msra.mxu0 %v2395
      %2694 = vmatprep.subr.bf16.mxu0 0
      %2695 = vmatpush1.bf16.msra.mxu0 %v2394
      %2696 = vmatprep.subr.bf16.mxu0 0
      %2697 = vmatpush1.bf16.msra.mxu0 %v2393
      %2698 = vmatprep.subr.bf16.mxu0 0
      %2699 = vmatpush2.bf16.msra.mxu0 %v2408
      %2700 = vmatprep.subr.bf16.mxu0 0
      %2701 = vmatpush2.bf16.msra.mxu0 %v2407
      %2702 = vmatprep.subr.bf16.mxu0 0
      %2703 = vmatpush2.bf16.msra.mxu0 %v2406
      %2704 = vmatprep.subr.bf16.mxu0 0
      %2705 = vmatpush2.bf16.msra.mxu0 %v2405
      %2706 = vmatprep.subr.bf16.mxu0 0
      %2707 = vmatpush2.bf16.msra.mxu0 %v2404
      %2708 = vmatprep.subr.bf16.mxu0 0
      %2709 = vmatpush2.bf16.msra.mxu0 %v2403
      %2710 = vmatprep.subr.bf16.mxu0 0
      %2711 = vmatpush2.bf16.msra.mxu0 %v2402
      %2712 = vmatprep.subr.bf16.mxu0 0
      %2713 = vmatpush2.bf16.msra.mxu0 %v2401
      %2714 = vmatprep.mubr.bf16.mxu0 %v1804
      %2715 = vmatmul.mubr.bf16.gmra.mxu0 %v1803
      %v2716 = vpop.f32.mrf.mxu0
      %v2717 = vadd.f32 %v2556, %v2716
      %v2718 = vpop.f32.mrf.mxu0
      %v2719 = vpop.f32.mrf.mxu0
      %v2720 = vadd.f32 %v2559, %v2719
      %v2721 = vpop.f32.mrf.mxu0
      %2722 = vmatprep.mubr.bf16.mxu0 %v1813
      %2723 = vmatmul.mubr.bf16.gmra.mxu0 %v1812
      %v2724 = vpop.f32.mrf.mxu0
      %v2725 = vadd.f32 %v2564, %v2724
      %v2726 = vpop.f32.mrf.mxu0
      %v2727 = vpop.f32.mrf.mxu0
      %v2728 = vadd.f32 %v2567, %v2727
      %v2729 = vpop.f32.mrf.mxu0
      %2730 = vmatprep.mubr.bf16.mxu0 %v1822
      %2731 = vmatmul.mubr.bf16.gmra.mxu0 %v1821
      %v2732 = vpop.f32.mrf.mxu0
      %v2733 = vadd.f32 %v2572, %v2732
      %v2734 = vpop.f32.mrf.mxu0
      %v2735 = vpop.f32.mrf.mxu0
      %v2736 = vadd.f32 %v2575, %v2735
      %v2737 = vpop.f32.mrf.mxu0
      %2738 = vmatprep.mubr.bf16.mxu0 %v1831
      %2739 = vmatmul.mubr.bf16.gmra.mxu0 %v1830
      %v2740 = vpop.f32.mrf.mxu0
      %v2741 = vadd.f32 %v2580, %v2740
      %v2742 = vpop.f32.mrf.mxu0
      %v2743 = vpop.f32.mrf.mxu0
      %v2744 = vadd.f32 %v2583, %v2743
      %v2745 = vpop.f32.mrf.mxu0
      %2746 = vmatprep.mubr.bf16.mxu0 %v1840
      %2747 = vmatmul.mubr.bf16.gmra.mxu0 %v1839
      %v2748 = vpop.f32.mrf.mxu0
      %v2749 = vadd.f32 %v2588, %v2748
      %v2750 = vpop.f32.mrf.mxu0
      %v2751 = vpop.f32.mrf.mxu0
      %v2752 = vadd.f32 %v2591, %v2751
      %v2753 = vpop.f32.mrf.mxu0
      %2754 = vmatprep.mubr.bf16.mxu0 %v1849
      %2755 = vmatmul.mubr.bf16.gmra.mxu0 %v1848
      %v2756 = vpop.f32.mrf.mxu0
      %v2757 = vadd.f32 %v2596, %v2756
      %v2758 = vpop.f32.mrf.mxu0
      %v2759 = vpop.f32.mrf.mxu0
      %v2760 = vadd.f32 %v2599, %v2759
      %v2761 = vpop.f32.mrf.mxu0
      %2762 = vmatprep.mubr.bf16.mxu0 %v1858
      %2763 = vmatmul.mubr.bf16.gmra.mxu0 %v1857
      %v2764 = vpop.f32.mrf.mxu0
      %v2765 = vadd.f32 %v2604, %v2764
      %v2766 = vpop.f32.mrf.mxu0
      %v2767 = vpop.f32.mrf.mxu0
      %v2768 = vadd.f32 %v2607, %v2767
      %v2769 = vpop.f32.mrf.mxu0
      %2770 = vmatprep.mubr.bf16.mxu0 %v1867
      %2771 = vmatmul.mubr.bf16.gmra.mxu0 %v1866
      %v2772 = vpop.f32.mrf.mxu0
      %v2773 = vadd.f32 %v2612, %v2772
      %v2774 = vpop.f32.mrf.mxu0
      %v2775 = vpop.f32.mrf.mxu0
      %v2776 = vadd.f32 %v2615, %v2775
      %v2777 = vpop.f32.mrf.mxu0
      %2778 = vmatprep.mubr.bf16.mxu0 %v1876
      %2779 = vmatmul.mubr.bf16.gmra.mxu0 %v1875
      %v2780 = vpop.f32.mrf.mxu0
      %v2781 = vadd.f32 %v2620, %v2780
      %v2782 = vpop.f32.mrf.mxu0
      %v2783 = vpop.f32.mrf.mxu0
      %v2784 = vadd.f32 %v2623, %v2783
      %v2785 = vpop.f32.mrf.mxu0
      %2786 = vmatprep.mubr.bf16.mxu0 %v1885
      %2787 = vmatmul.mubr.bf16.gmra.mxu0 %v1884
      %v2788 = vpop.f32.mrf.mxu0
      %v2789 = vadd.f32 %v2628, %v2788
      %v2790 = vpop.f32.mrf.mxu0
      %v2791 = vpop.f32.mrf.mxu0
      %v2792 = vadd.f32 %v2631, %v2791
      %v2793 = vpop.f32.mrf.mxu0
      %2794 = vmatprep.mubr.bf16.mxu0 %v1894
      %2795 = vmatmul.mubr.bf16.gmra.mxu0 %v1893
      %v2796 = vpop.f32.mrf.mxu0
      %v2797 = vadd.f32 %v2636, %v2796
      %v2798 = vpop.f32.mrf.mxu0
      %v2799 = vpop.f32.mrf.mxu0
      %v2800 = vadd.f32 %v2639, %v2799
      %v2801 = vpop.f32.mrf.mxu0
      %2802 = vmatprep.mubr.bf16.mxu0 %v1903
      %2803 = vmatmul.mubr.bf16.gmra.mxu0 %v1902
      %v2804 = vpop.f32.mrf.mxu0
      %v2805 = vadd.f32 %v2644, %v2804
      %v2806 = vpop.f32.mrf.mxu0
      %v2807 = vpop.f32.mrf.mxu0
      %v2808 = vadd.f32 %v2647, %v2807
      %v2809 = vpop.f32.mrf.mxu0
      %2810 = vmatprep.mubr.bf16.mxu0 %v1912
      %2811 = vmatmul.mubr.bf16.gmra.mxu0 %v1911
      %v2812 = vpop.f32.mrf.mxu0
      %v2813 = vadd.f32 %v2652, %v2812
      %v2814 = vpop.f32.mrf.mxu0
      %v2815 = vpop.f32.mrf.mxu0
      %v2816 = vadd.f32 %v2655, %v2815
      %v2817 = vpop.f32.mrf.mxu0
      %2818 = vmatprep.mubr.bf16.mxu0 %v1921
      %2819 = vmatmul.mubr.bf16.gmra.mxu0 %v1920
      %v2820 = vpop.f32.mrf.mxu0
      %v2821 = vadd.f32 %v2660, %v2820
      %v2822 = vpop.f32.mrf.mxu0
      %v2823 = vpop.f32.mrf.mxu0
      %v2824 = vadd.f32 %v2663, %v2823
      %v2825 = vpop.f32.mrf.mxu0
      %2826 = vmatprep.mubr.bf16.mxu0 %v1930
      %2827 = vmatmul.mubr.bf16.gmra.mxu0 %v1929
      %v2828 = vpop.f32.mrf.mxu0
      %v2829 = vadd.f32 %v2668, %v2828
      %v2830 = vpop.f32.mrf.mxu0
      %v2831 = vpop.f32.mrf.mxu0
      %v2832 = vadd.f32 %v2671, %v2831
      %v2833 = vpop.f32.mrf.mxu0
      %2834 = vmatprep.mubr.bf16.mxu0 %v1939
      %2835 = vmatmul.mubr.bf16.gmra.mxu0 %v1938
      %v2836 = vpop.f32.mrf.mxu0
      %v2837 = vadd.f32 %v2676, %v2836
      %v2838 = vpop.f32.mrf.mxu0
      %v2839 = vpop.f32.mrf.mxu0
      %v2840 = vadd.f32 %v2679, %v2839
      %v2841 = vpop.f32.mrf.mxu0
      %2842 = vdwg.mxu0
      %2843 = vmatprep.subr.bf16.mxu0 0
      %2844 = vmatpush1.bf16.msra.mxu0 %v2416
      %2845 = vmatprep.subr.bf16.mxu0 0
      %2846 = vmatpush1.bf16.msra.mxu0 %v2415
      %2847 = vmatprep.subr.bf16.mxu0 0
      %2848 = vmatpush1.bf16.msra.mxu0 %v2414
      %2849 = vmatprep.subr.bf16.mxu0 0
      %2850 = vmatpush1.bf16.msra.mxu0 %v2413
      %2851 = vmatprep.subr.bf16.mxu0 0
      %2852 = vmatpush1.bf16.msra.mxu0 %v2412
      %2853 = vmatprep.subr.bf16.mxu0 0
      %2854 = vmatpush1.bf16.msra.mxu0 %v2411
      %2855 = vmatprep.subr.bf16.mxu0 0
      %2856 = vmatpush1.bf16.msra.mxu0 %v2410
      %2857 = vmatprep.subr.bf16.mxu0 0
      %2858 = vmatpush1.bf16.msra.mxu0 %v2409
      %2859 = vmatprep.subr.bf16.mxu0 0
      %2860 = vmatpush2.bf16.msra.mxu0 %v2424
      %2861 = vmatprep.subr.bf16.mxu0 0
      %2862 = vmatpush2.bf16.msra.mxu0 %v2423
      %2863 = vmatprep.subr.bf16.mxu0 0
      %2864 = vmatpush2.bf16.msra.mxu0 %v2422
      %2865 = vmatprep.subr.bf16.mxu0 0
      %2866 = vmatpush2.bf16.msra.mxu0 %v2421
      %2867 = vmatprep.subr.bf16.mxu0 0
      %2868 = vmatpush2.bf16.msra.mxu0 %v2420
      %2869 = vmatprep.subr.bf16.mxu0 0
      %2870 = vmatpush2.bf16.msra.mxu0 %v2419
      %2871 = vmatprep.subr.bf16.mxu0 0
      %2872 = vmatpush2.bf16.msra.mxu0 %v2418
      %2873 = vmatprep.subr.bf16.mxu0 0
      %2874 = vmatpush2.bf16.msra.mxu0 %v2417
      %2875 = vmatprep.mubr.bf16.mxu0 %v1806
      %2876 = vmatmul.mubr.bf16.gmra.mxu0 %v1805
      %v2877 = vpop.f32.mrf.mxu0
      %v2878 = vadd.f32 %v2717, %v2877
      %v2879 = vpop.f32.mrf.mxu0
      %v2880 = vpop.f32.mrf.mxu0
      %v2881 = vadd.f32 %v2720, %v2880
      %v2882 = vpop.f32.mrf.mxu0
      %2883 = vmatprep.mubr.bf16.mxu0 %v1815
      %2884 = vmatmul.mubr.bf16.gmra.mxu0 %v1814
      %v2885 = vpop.f32.mrf.mxu0
      %v2886 = vadd.f32 %v2725, %v2885
      %v2887 = vpop.f32.mrf.mxu0
      %v2888 = vpop.f32.mrf.mxu0
      %v2889 = vadd.f32 %v2728, %v2888
      %v2890 = vpop.f32.mrf.mxu0
      %2891 = vmatprep.mubr.bf16.mxu0 %v1824
      %2892 = vmatmul.mubr.bf16.gmra.mxu0 %v1823
      %v2893 = vpop.f32.mrf.mxu0
      %v2894 = vadd.f32 %v2733, %v2893
      %v2895 = vpop.f32.mrf.mxu0
      %v2896 = vpop.f32.mrf.mxu0
      %v2897 = vadd.f32 %v2736, %v2896
      %v2898 = vpop.f32.mrf.mxu0
      %2899 = vmatprep.mubr.bf16.mxu0 %v1833
      %2900 = vmatmul.mubr.bf16.gmra.mxu0 %v1832
      %v2901 = vpop.f32.mrf.mxu0
      %v2902 = vadd.f32 %v2741, %v2901
      %v2903 = vpop.f32.mrf.mxu0
      %v2904 = vpop.f32.mrf.mxu0
      %v2905 = vadd.f32 %v2744, %v2904
      %v2906 = vpop.f32.mrf.mxu0
      %2907 = vmatprep.mubr.bf16.mxu0 %v1842
      %2908 = vmatmul.mubr.bf16.gmra.mxu0 %v1841
      %v2909 = vpop.f32.mrf.mxu0
      %v2910 = vadd.f32 %v2749, %v2909
      %v2911 = vpop.f32.mrf.mxu0
      %v2912 = vpop.f32.mrf.mxu0
      %v2913 = vadd.f32 %v2752, %v2912
      %v2914 = vpop.f32.mrf.mxu0
      %2915 = vmatprep.mubr.bf16.mxu0 %v1851
      %2916 = vmatmul.mubr.bf16.gmra.mxu0 %v1850
      %v2917 = vpop.f32.mrf.mxu0
      %v2918 = vadd.f32 %v2757, %v2917
      %v2919 = vpop.f32.mrf.mxu0
      %v2920 = vpop.f32.mrf.mxu0
      %v2921 = vadd.f32 %v2760, %v2920
      %v2922 = vpop.f32.mrf.mxu0
      %2923 = vmatprep.mubr.bf16.mxu0 %v1860
      %2924 = vmatmul.mubr.bf16.gmra.mxu0 %v1859
      %v2925 = vpop.f32.mrf.mxu0
      %v2926 = vadd.f32 %v2765, %v2925
      %v2927 = vpop.f32.mrf.mxu0
      %v2928 = vpop.f32.mrf.mxu0
      %v2929 = vadd.f32 %v2768, %v2928
      %v2930 = vpop.f32.mrf.mxu0
      %2931 = vmatprep.mubr.bf16.mxu0 %v1869
      %2932 = vmatmul.mubr.bf16.gmra.mxu0 %v1868
      %v2933 = vpop.f32.mrf.mxu0
      %v2934 = vadd.f32 %v2773, %v2933
      %v2935 = vpop.f32.mrf.mxu0
      %v2936 = vpop.f32.mrf.mxu0
      %v2937 = vadd.f32 %v2776, %v2936
      %v2938 = vpop.f32.mrf.mxu0
      %2939 = vmatprep.mubr.bf16.mxu0 %v1878
      %2940 = vmatmul.mubr.bf16.gmra.mxu0 %v1877
      %v2941 = vpop.f32.mrf.mxu0
      %v2942 = vadd.f32 %v2781, %v2941
      %v2943 = vpop.f32.mrf.mxu0
      %v2944 = vpop.f32.mrf.mxu0
      %v2945 = vadd.f32 %v2784, %v2944
      %v2946 = vpop.f32.mrf.mxu0
      %2947 = vmatprep.mubr.bf16.mxu0 %v1887
      %2948 = vmatmul.mubr.bf16.gmra.mxu0 %v1886
      %v2949 = vpop.f32.mrf.mxu0
      %v2950 = vadd.f32 %v2789, %v2949
      %v2951 = vpop.f32.mrf.mxu0
      %v2952 = vpop.f32.mrf.mxu0
      %v2953 = vadd.f32 %v2792, %v2952
      %v2954 = vpop.f32.mrf.mxu0
      %2955 = vmatprep.mubr.bf16.mxu0 %v1896
      %2956 = vmatmul.mubr.bf16.gmra.mxu0 %v1895
      %v2957 = vpop.f32.mrf.mxu0
      %v2958 = vadd.f32 %v2797, %v2957
      %v2959 = vpop.f32.mrf.mxu0
      %v2960 = vpop.f32.mrf.mxu0
      %v2961 = vadd.f32 %v2800, %v2960
      %v2962 = vpop.f32.mrf.mxu0
      %2963 = vmatprep.mubr.bf16.mxu0 %v1905
      %2964 = vmatmul.mubr.bf16.gmra.mxu0 %v1904
      %v2965 = vpop.f32.mrf.mxu0
      %v2966 = vadd.f32 %v2805, %v2965
      %v2967 = vpop.f32.mrf.mxu0
      %v2968 = vpop.f32.mrf.mxu0
      %v2969 = vadd.f32 %v2808, %v2968
      %v2970 = vpop.f32.mrf.mxu0
      %2971 = vmatprep.mubr.bf16.mxu0 %v1914
      %2972 = vmatmul.mubr.bf16.gmra.mxu0 %v1913
      %v2973 = vpop.f32.mrf.mxu0
      %v2974 = vadd.f32 %v2813, %v2973
      %v2975 = vpop.f32.mrf.mxu0
      %v2976 = vpop.f32.mrf.mxu0
      %v2977 = vadd.f32 %v2816, %v2976
      %v2978 = vpop.f32.mrf.mxu0
      %2979 = vmatprep.mubr.bf16.mxu0 %v1923
      %2980 = vmatmul.mubr.bf16.gmra.mxu0 %v1922
      %v2981 = vpop.f32.mrf.mxu0
      %v2982 = vadd.f32 %v2821, %v2981
      %v2983 = vpop.f32.mrf.mxu0
      %v2984 = vpop.f32.mrf.mxu0
      %v2985 = vadd.f32 %v2824, %v2984
      %v2986 = vpop.f32.mrf.mxu0
      %2987 = vmatprep.mubr.bf16.mxu0 %v1932
      %2988 = vmatmul.mubr.bf16.gmra.mxu0 %v1931
      %v2989 = vpop.f32.mrf.mxu0
      %v2990 = vadd.f32 %v2829, %v2989
      %v2991 = vpop.f32.mrf.mxu0
      %v2992 = vpop.f32.mrf.mxu0
      %v2993 = vadd.f32 %v2832, %v2992
      %v2994 = vpop.f32.mrf.mxu0
      %2995 = vmatprep.mubr.bf16.mxu0 %v1941
      %2996 = vmatmul.mubr.bf16.gmra.mxu0 %v1940
      %v2997 = vpop.f32.mrf.mxu0
      %v2998 = vadd.f32 %v2837, %v2997
      %v2999 = vpop.f32.mrf.mxu0
      %v3000 = vpop.f32.mrf.mxu0
      %v3001 = vadd.f32 %v2840, %v3000
      %v3002 = vpop.f32.mrf.mxu0
      %3003 = vdwg.mxu0
      %3004 = vmatprep.subr.bf16.mxu0 0
      %3005 = vmatpush1.bf16.msra.mxu0 %v2432
      %3006 = vmatprep.subr.bf16.mxu0 0
      %3007 = vmatpush1.bf16.msra.mxu0 %v2431
      %3008 = vmatprep.subr.bf16.mxu0 0
      %3009 = vmatpush1.bf16.msra.mxu0 %v2430
      %3010 = vmatprep.subr.bf16.mxu0 0
      %3011 = vmatpush1.bf16.msra.mxu0 %v2429
      %3012 = vmatprep.subr.bf16.mxu0 0
      %3013 = vmatpush1.bf16.msra.mxu0 %v2428
      %3014 = vmatprep.subr.bf16.mxu0 0
      %3015 = vmatpush1.bf16.msra.mxu0 %v2427
      %3016 = vmatprep.subr.bf16.mxu0 0
      %3017 = vmatpush1.bf16.msra.mxu0 %v2426
      %3018 = vmatprep.subr.bf16.mxu0 0
      %3019 = vmatpush1.bf16.msra.mxu0 %v2425
      %3020 = vmatprep.subr.bf16.mxu0 0
      %3021 = vmatpush2.bf16.msra.mxu0 %v2440
      %3022 = vmatprep.subr.bf16.mxu0 0
      %3023 = vmatpush2.bf16.msra.mxu0 %v2439
      %3024 = vmatprep.subr.bf16.mxu0 0
      %3025 = vmatpush2.bf16.msra.mxu0 %v2438
      %3026 = vmatprep.subr.bf16.mxu0 0
      %3027 = vmatpush2.bf16.msra.mxu0 %v2437
      %3028 = vmatprep.subr.bf16.mxu0 0
      %3029 = vmatpush2.bf16.msra.mxu0 %v2436
      %3030 = vmatprep.subr.bf16.mxu0 0
      %3031 = vmatpush2.bf16.msra.mxu0 %v2435
      %3032 = vmatprep.subr.bf16.mxu0 0
      %3033 = vmatpush2.bf16.msra.mxu0 %v2434
      %3034 = vmatprep.subr.bf16.mxu0 0
      %3035 = vmatpush2.bf16.msra.mxu0 %v2433
      %3036 = vmatprep.mubr.bf16.mxu0 %v1808
      %3037 = vmatmul.mubr.bf16.gmra.mxu0 %v1807
      %v3038 = vpop.f32.mrf.mxu0
      %v3039 = vadd.f32 %v2878, %v3038
      %v3040 = vpop.f32.mrf.mxu0
      %v3041 = vpop.f32.mrf.mxu0
      %v3042 = vadd.f32 %v2881, %v3041
      %v3043 = vpop.f32.mrf.mxu0
      %3044 = vmatprep.mubr.bf16.mxu0 %v1817
      %3045 = vmatmul.mubr.bf16.gmra.mxu0 %v1816
      %v3046 = vpop.f32.mrf.mxu0
      %v3047 = vadd.f32 %v2886, %v3046
      %v3048 = vpop.f32.mrf.mxu0
      %v3049 = vpop.f32.mrf.mxu0
      %v3050 = vadd.f32 %v2889, %v3049
      %v3051 = vpop.f32.mrf.mxu0
      %3052 = vmatprep.mubr.bf16.mxu0 %v1826
      %3053 = vmatmul.mubr.bf16.gmra.mxu0 %v1825
      %v3054 = vpop.f32.mrf.mxu0
      %v3055 = vadd.f32 %v2894, %v3054
      %v3056 = vpop.f32.mrf.mxu0
      %v3057 = vpop.f32.mrf.mxu0
      %v3058 = vadd.f32 %v2897, %v3057
      %v3059 = vpop.f32.mrf.mxu0
      %3060 = vmatprep.mubr.bf16.mxu0 %v1835
      %3061 = vmatmul.mubr.bf16.gmra.mxu0 %v1834
      %v3062 = vpop.f32.mrf.mxu0
      %v3063 = vadd.f32 %v2902, %v3062
      %v3064 = vpop.f32.mrf.mxu0
      %v3065 = vpop.f32.mrf.mxu0
      %v3066 = vadd.f32 %v2905, %v3065
      %v3067 = vpop.f32.mrf.mxu0
      %3068 = vmatprep.mubr.bf16.mxu0 %v1844
      %3069 = vmatmul.mubr.bf16.gmra.mxu0 %v1843
      %v3070 = vpop.f32.mrf.mxu0
      %v3071 = vadd.f32 %v2910, %v3070
      %v3072 = vpop.f32.mrf.mxu0
      %v3073 = vpop.f32.mrf.mxu0
      %v3074 = vadd.f32 %v2913, %v3073
      %v3075 = vpop.f32.mrf.mxu0
      %3076 = vmatprep.mubr.bf16.mxu0 %v1853
      %3077 = vmatmul.mubr.bf16.gmra.mxu0 %v1852
      %v3078 = vpop.f32.mrf.mxu0
      %v3079 = vadd.f32 %v2918, %v3078
      %v3080 = vpop.f32.mrf.mxu0
      %v3081 = vpop.f32.mrf.mxu0
      %v3082 = vadd.f32 %v2921, %v3081
      %v3083 = vpop.f32.mrf.mxu0
      %3084 = vmatprep.mubr.bf16.mxu0 %v1862
      %3085 = vmatmul.mubr.bf16.gmra.mxu0 %v1861
      %v3086 = vpop.f32.mrf.mxu0
      %v3087 = vadd.f32 %v2926, %v3086
      %v3088 = vpop.f32.mrf.mxu0
      %v3089 = vpop.f32.mrf.mxu0
      %v3090 = vadd.f32 %v2929, %v3089
      %v3091 = vpop.f32.mrf.mxu0
      %3092 = vmatprep.mubr.bf16.mxu0 %v1871
      %3093 = vmatmul.mubr.bf16.gmra.mxu0 %v1870
      %v3094 = vpop.f32.mrf.mxu0
      %v3095 = vadd.f32 %v2934, %v3094
      %v3096 = vpop.f32.mrf.mxu0
      %v3097 = vpop.f32.mrf.mxu0
      %v3098 = vadd.f32 %v2937, %v3097
      %v3099 = vpop.f32.mrf.mxu0
      %3100 = vmatprep.mubr.bf16.mxu0 %v1880
      %3101 = vmatmul.mubr.bf16.gmra.mxu0 %v1879
      %v3102 = vpop.f32.mrf.mxu0
      %v3103 = vadd.f32 %v2942, %v3102
      %v3104 = vpop.f32.mrf.mxu0
      %v3105 = vpop.f32.mrf.mxu0
      %v3106 = vadd.f32 %v2945, %v3105
      %v3107 = vpop.f32.mrf.mxu0
      %3108 = vmatprep.mubr.bf16.mxu0 %v1889
      %3109 = vmatmul.mubr.bf16.gmra.mxu0 %v1888
      %v3110 = vpop.f32.mrf.mxu0
      %v3111 = vadd.f32 %v2950, %v3110
      %v3112 = vpop.f32.mrf.mxu0
      %v3113 = vpop.f32.mrf.mxu0
      %v3114 = vadd.f32 %v2953, %v3113
      %v3115 = vpop.f32.mrf.mxu0
      %3116 = vmatprep.mubr.bf16.mxu0 %v1898
      %3117 = vmatmul.mubr.bf16.gmra.mxu0 %v1897
      %v3118 = vpop.f32.mrf.mxu0
      %v3119 = vadd.f32 %v2958, %v3118
      %v3120 = vpop.f32.mrf.mxu0
      %v3121 = vpop.f32.mrf.mxu0
      %v3122 = vadd.f32 %v2961, %v3121
      %v3123 = vpop.f32.mrf.mxu0
      %3124 = vmatprep.mubr.bf16.mxu0 %v1907
      %3125 = vmatmul.mubr.bf16.gmra.mxu0 %v1906
      %v3126 = vpop.f32.mrf.mxu0
      %v3127 = vadd.f32 %v2966, %v3126
      %v3128 = vpop.f32.mrf.mxu0
      %v3129 = vpop.f32.mrf.mxu0
      %v3130 = vadd.f32 %v2969, %v3129
      %v3131 = vpop.f32.mrf.mxu0
      %3132 = vmatprep.mubr.bf16.mxu0 %v1916
      %3133 = vmatmul.mubr.bf16.gmra.mxu0 %v1915
      %v3134 = vpop.f32.mrf.mxu0
      %v3135 = vadd.f32 %v2974, %v3134
      %v3136 = vpop.f32.mrf.mxu0
      %v3137 = vpop.f32.mrf.mxu0
      %v3138 = vadd.f32 %v2977, %v3137
      %v3139 = vpop.f32.mrf.mxu0
      %3140 = vmatprep.mubr.bf16.mxu0 %v1925
      %3141 = vmatmul.mubr.bf16.gmra.mxu0 %v1924
      %v3142 = vpop.f32.mrf.mxu0
      %v3143 = vadd.f32 %v2982, %v3142
      %v3144 = vpop.f32.mrf.mxu0
      %v3145 = vpop.f32.mrf.mxu0
      %v3146 = vadd.f32 %v2985, %v3145
      %v3147 = vpop.f32.mrf.mxu0
      %3148 = vmatprep.mubr.bf16.mxu0 %v1934
      %3149 = vmatmul.mubr.bf16.gmra.mxu0 %v1933
      %v3150 = vpop.f32.mrf.mxu0
      %v3151 = vadd.f32 %v2990, %v3150
      %v3152 = vpop.f32.mrf.mxu0
      %v3153 = vpop.f32.mrf.mxu0
      %v3154 = vadd.f32 %v2993, %v3153
      %v3155 = vpop.f32.mrf.mxu0
      %3156 = vmatprep.mubr.bf16.mxu0 %v1943
      %3157 = vmatmul.mubr.bf16.gmra.mxu0 %v1942
      %v3158 = vpop.f32.mrf.mxu0
      %v3159 = vadd.f32 %v2998, %v3158
      %v3160 = vpop.f32.mrf.mxu0
      %v3161 = vpop.f32.mrf.mxu0
      %v3162 = vadd.f32 %v3001, %v3161
      %v3163 = vpop.f32.mrf.mxu0
      %3164 = vdwg.mxu0
      %3165 = vmatprep.subr.bf16.mxu0 0
      %3166 = vmatpush1.bf16.msra.mxu0 %v2448
      %3167 = vmatprep.subr.bf16.mxu0 0
      %3168 = vmatpush1.bf16.msra.mxu0 %v2447
      %3169 = vmatprep.subr.bf16.mxu0 0
      %3170 = vmatpush1.bf16.msra.mxu0 %v2446
      %3171 = vmatprep.subr.bf16.mxu0 0
      %3172 = vmatpush1.bf16.msra.mxu0 %v2445
      %3173 = vmatprep.subr.bf16.mxu0 0
      %3174 = vmatpush1.bf16.msra.mxu0 %v2444
      %3175 = vmatprep.subr.bf16.mxu0 0
      %3176 = vmatpush1.bf16.msra.mxu0 %v2443
      %3177 = vmatprep.subr.bf16.mxu0 0
      %3178 = vmatpush1.bf16.msra.mxu0 %v2442
      %3179 = vmatprep.subr.bf16.mxu0 0
      %3180 = vmatpush1.bf16.msra.mxu0 %v2441
      %3181 = vmatprep.subr.bf16.mxu0 0
      %3182 = vmatpush2.bf16.msra.mxu0 0
      %3183 = vmatprep.subr.bf16.mxu0 0
      %3184 = vmatpush2.bf16.msra.mxu0 0
      %3185 = vmatprep.subr.bf16.mxu0 0
      %3186 = vmatpush2.bf16.msra.mxu0 0
      %3187 = vmatprep.subr.bf16.mxu0 0
      %3188 = vmatpush2.bf16.msra.mxu0 0
      %3189 = vmatprep.subr.bf16.mxu0 0
      %3190 = vmatpush2.bf16.msra.mxu0 0
      %3191 = vmatprep.subr.bf16.mxu0 0
      %3192 = vmatpush2.bf16.msra.mxu0 0
      %3193 = vmatprep.subr.bf16.mxu0 0
      %3194 = vmatpush2.bf16.msra.mxu0 0
      %3195 = vmatprep.subr.bf16.mxu0 0
      %3196 = vmatpush2.bf16.msra.mxu0 0
      %3197 = vmatprep.mubr.bf16.mxu0 0
      %3198 = vmatmul.mubr.bf16.gmra.mxu0 %v1809
      %v3199 = vpop.f32.mrf.mxu0
      %v3200 = vadd.f32 %v3039, %v3199
      %v3201 = vpop.f32.mrf.mxu0
      %v3202 = vpop.f32.mrf.mxu0
      %v3203 = vadd.f32 %v3042, %v3202
      %v3204 = vpop.f32.mrf.mxu0
      %3205 = vmatprep.mubr.bf16.mxu0 0
      %3206 = vmatmul.mubr.bf16.gmra.mxu0 %v1818
      %v3207 = vpop.f32.mrf.mxu0
      %v3208 = vadd.f32 %v3047, %v3207
      %v3209 = vpop.f32.mrf.mxu0
      %v3210 = vpop.f32.mrf.mxu0
      %v3211 = vadd.f32 %v3050, %v3210
      %v3212 = vpop.f32.mrf.mxu0
      %3213 = vmatprep.mubr.bf16.mxu0 0
      %3214 = vmatmul.mubr.bf16.gmra.mxu0 %v1827
      %v3215 = vpop.f32.mrf.mxu0
      %v3216 = vadd.f32 %v3055, %v3215
      %v3217 = vpop.f32.mrf.mxu0
      %v3218 = vpop.f32.mrf.mxu0
      %v3219 = vadd.f32 %v3058, %v3218
      %v3220 = vpop.f32.mrf.mxu0
      %3221 = vmatprep.mubr.bf16.mxu0 0
      %3222 = vmatmul.mubr.bf16.gmra.mxu0 %v1836
      %v3223 = vpop.f32.mrf.mxu0
      %v3224 = vadd.f32 %v3063, %v3223
      %v3225 = vpop.f32.mrf.mxu0
      %v3226 = vpop.f32.mrf.mxu0
      %v3227 = vadd.f32 %v3066, %v3226
      %v3228 = vpop.f32.mrf.mxu0
      %3229 = vmatprep.mubr.bf16.mxu0 0
      %3230 = vmatmul.mubr.bf16.gmra.mxu0 %v1845
      %v3231 = vpop.f32.mrf.mxu0
      %v3232 = vadd.f32 %v3071, %v3231
      %v3233 = vpop.f32.mrf.mxu0
      %v3234 = vpop.f32.mrf.mxu0
      %v3235 = vadd.f32 %v3074, %v3234
      %v3236 = vpop.f32.mrf.mxu0
      %3237 = vmatprep.mubr.bf16.mxu0 0
      %3238 = vmatmul.mubr.bf16.gmra.mxu0 %v1854
      %v3239 = vpop.f32.mrf.mxu0
      %v3240 = vadd.f32 %v3079, %v3239
      %v3241 = vpop.f32.mrf.mxu0
      %v3242 = vpop.f32.mrf.mxu0
      %v3243 = vadd.f32 %v3082, %v3242
      %v3244 = vpop.f32.mrf.mxu0
      %3245 = vmatprep.mubr.bf16.mxu0 0
      %3246 = vmatmul.mubr.bf16.gmra.mxu0 %v1863
      %v3247 = vpop.f32.mrf.mxu0
      %v3248 = vadd.f32 %v3087, %v3247
      %v3249 = vpop.f32.mrf.mxu0
      %v3250 = vpop.f32.mrf.mxu0
      %v3251 = vadd.f32 %v3090, %v3250
      %v3252 = vpop.f32.mrf.mxu0
      %3253 = vmatprep.mubr.bf16.mxu0 0
      %3254 = vmatmul.mubr.bf16.gmra.mxu0 %v1872
      %v3255 = vpop.f32.mrf.mxu0
      %v3256 = vadd.f32 %v3095, %v3255
      %v3257 = vpop.f32.mrf.mxu0
      %v3258 = vpop.f32.mrf.mxu0
      %v3259 = vadd.f32 %v3098, %v3258
      %v3260 = vpop.f32.mrf.mxu0
      %3261 = vmatprep.mubr.bf16.mxu0 0
      %3262 = vmatmul.mubr.bf16.gmra.mxu0 %v1881
      %v3263 = vpop.f32.mrf.mxu0
      %v3264 = vadd.f32 %v3103, %v3263
      %v3265 = vpop.f32.mrf.mxu0
      %v3266 = vpop.f32.mrf.mxu0
      %v3267 = vadd.f32 %v3106, %v3266
      %v3268 = vpop.f32.mrf.mxu0
      %3269 = vmatprep.mubr.bf16.mxu0 0
      %3270 = vmatmul.mubr.bf16.gmra.mxu0 %v1890
      %v3271 = vpop.f32.mrf.mxu0
      %v3272 = vadd.f32 %v3111, %v3271
      %v3273 = vpop.f32.mrf.mxu0
      %v3274 = vpop.f32.mrf.mxu0
      %v3275 = vadd.f32 %v3114, %v3274
      %v3276 = vpop.f32.mrf.mxu0
      %3277 = vmatprep.mubr.bf16.mxu0 0
      %3278 = vmatmul.mubr.bf16.gmra.mxu0 %v1899
      %v3279 = vpop.f32.mrf.mxu0
      %v3280 = vadd.f32 %v3119, %v3279
      %v3281 = vpop.f32.mrf.mxu0
      %v3282 = vpop.f32.mrf.mxu0
      %v3283 = vadd.f32 %v3122, %v3282
      %v3284 = vpop.f32.mrf.mxu0
      %3285 = vmatprep.mubr.bf16.mxu0 0
      %3286 = vmatmul.mubr.bf16.gmra.mxu0 %v1908
      %v3287 = vpop.f32.mrf.mxu0
      %v3288 = vadd.f32 %v3127, %v3287
      %v3289 = vpop.f32.mrf.mxu0
      %v3290 = vpop.f32.mrf.mxu0
      %v3291 = vadd.f32 %v3130, %v3290
      %v3292 = vpop.f32.mrf.mxu0
      %3293 = vmatprep.mubr.bf16.mxu0 0
      %3294 = vmatmul.mubr.bf16.gmra.mxu0 %v1917
      %v3295 = vpop.f32.mrf.mxu0
      %v3296 = vadd.f32 %v3135, %v3295
      %v3297 = vpop.f32.mrf.mxu0
      %v3298 = vpop.f32.mrf.mxu0
      %v3299 = vadd.f32 %v3138, %v3298
      %v3300 = vpop.f32.mrf.mxu0
      %3301 = vmatprep.mubr.bf16.mxu0 0
      %3302 = vmatmul.mubr.bf16.gmra.mxu0 %v1926
      %v3303 = vpop.f32.mrf.mxu0
      %v3304 = vadd.f32 %v3143, %v3303
      %v3305 = vpop.f32.mrf.mxu0
      %v3306 = vpop.f32.mrf.mxu0
      %v3307 = vadd.f32 %v3146, %v3306
      %v3308 = vpop.f32.mrf.mxu0
      %3309 = vmatprep.mubr.bf16.mxu0 0
      %3310 = vmatmul.mubr.bf16.gmra.mxu0 %v1935
      %v3311 = vpop.f32.mrf.mxu0
      %v3312 = vadd.f32 %v3151, %v3311
      %v3313 = vpop.f32.mrf.mxu0
      %v3314 = vpop.f32.mrf.mxu0
      %v3315 = vadd.f32 %v3154, %v3314
      %v3316 = vpop.f32.mrf.mxu0
      %3317 = vmatprep.mubr.bf16.mxu0 0
      %3318 = vmatmul.mubr.bf16.gmra.mxu0 %v1944
      %v3319 = vpop.f32.mrf.mxu0
      %v3320 = vadd.f32 %v3159, %v3319
      %v3321 = vpop.f32.mrf.mxu0
      %v3322 = vpop.f32.mrf.mxu0
      %v3323 = vadd.f32 %v3162, %v3322
      %v3324 = vpop.f32.mrf.mxu0
      %3325 = vdwg.mxu0
      %3326 = vmax.xlane.f32.xlu0 %v3200
      %v3327 = vpop.xlane.xlu0 %3326
      %3328 = vmax.xlane.f32.xlu0 %v3203
      %v3329 = vpop.xlane.xlu0 %3328
      %3330 = vmax.xlane.f32.xlu0 %v3208
      %v3331 = vpop.xlane.xlu0 %3330
      %3332 = vmax.xlane.f32.xlu0 %v3211
      %v3333 = vpop.xlane.xlu0 %3332
      %3334 = vmax.xlane.f32.xlu0 %v3216
      %v3335 = vpop.xlane.xlu0 %3334
      %3336 = vmax.xlane.f32.xlu0 %v3219
      %v3337 = vpop.xlane.xlu0 %3336
      %3338 = vmax.xlane.f32.xlu0 %v3224
      %v3339 = vpop.xlane.xlu0 %3338
      %3340 = vmax.xlane.f32.xlu0 %v3227
      %v3341 = vpop.xlane.xlu0 %3340
      %3342 = vmax.xlane.f32.xlu0 %v3232
      %v3343 = vpop.xlane.xlu0 %3342
      %3344 = vmax.xlane.f32.xlu0 %v3235
      %v3345 = vpop.xlane.xlu0 %3344
      %3346 = vmax.xlane.f32.xlu0 %v3240
      %v3347 = vpop.xlane.xlu0 %3346
      %3348 = vmax.xlane.f32.xlu0 %v3243
      %v3349 = vpop.xlane.xlu0 %3348
      %3350 = vmax.xlane.f32.xlu0 %v3248
      %v3351 = vpop.xlane.xlu0 %3350
      %3352 = vmax.xlane.f32.xlu0 %v3251
      %v3353 = vpop.xlane.xlu0 %3352
      %3354 = vmax.xlane.f32.xlu0 %v3256
      %v3355 = vpop.xlane.xlu0 %3354
      %3356 = vmax.xlane.f32.xlu0 %v3259
      %v3357 = vpop.xlane.xlu0 %3356
      %3358 = vmax.xlane.f32.xlu0 %v3264
      %v3359 = vpop.xlane.xlu0 %3358
      %3360 = vmax.xlane.f32.xlu0 %v3267
      %v3361 = vpop.xlane.xlu0 %3360
      %3362 = vmax.xlane.f32.xlu0 %v3272
      %v3363 = vpop.xlane.xlu0 %3362
      %3364 = vmax.xlane.f32.xlu0 %v3275
      %v3365 = vpop.xlane.xlu0 %3364
      %3366 = vmax.xlane.f32.xlu0 %v3280
      %v3367 = vpop.xlane.xlu0 %3366
      %3368 = vmax.xlane.f32.xlu0 %v3283
      %v3369 = vpop.xlane.xlu0 %3368
      %3370 = vmax.xlane.f32.xlu0 %v3288
      %v3371 = vpop.xlane.xlu0 %3370
      %3372 = vmax.xlane.f32.xlu0 %v3291
      %v3373 = vpop.xlane.xlu0 %3372
      %3374 = vmax.xlane.f32.xlu0 %v3296
      %v3375 = vpop.xlane.xlu0 %3374
      %3376 = vmax.xlane.f32.xlu0 %v3299
      %v3377 = vpop.xlane.xlu0 %3376
      %3378 = vmax.xlane.f32.xlu0 %v3304
      %v3379 = vpop.xlane.xlu0 %3378
      %3380 = vmax.xlane.f32.xlu0 %v3307
      %v3381 = vpop.xlane.xlu0 %3380
      %3382 = vmax.xlane.f32.xlu0 %v3312
      %v3383 = vpop.xlane.xlu0 %3382
      %3384 = vmax.xlane.f32.xlu0 %v3315
      %v3385 = vpop.xlane.xlu0 %3384
      %3386 = vmax.xlane.f32.xlu0 %v3320
      %v3387 = vpop.xlane.xlu0 %3386
      %3388 = vmax.xlane.f32.xlu0 %v3323
      %v3389 = vpop.xlane.xlu0 %3388
      %v3390 = vsub.f32 %v3200, %v3327
      %v3391 = vsub.f32 %v3203, %v3329
      %v3392 = vsub.f32 %v3208, %v3331
      %v3393 = vsub.f32 %v3211, %v3333
      %v3394 = vsub.f32 %v3216, %v3335
      %v3395 = vsub.f32 %v3219, %v3337
      %v3396 = vsub.f32 %v3224, %v3339
      %v3397 = vsub.f32 %v3227, %v3341
      %v3398 = vsub.f32 %v3232, %v3343
      %v3399 = vsub.f32 %v3235, %v3345
      %v3400 = vsub.f32 %v3240, %v3347
      %v3401 = vsub.f32 %v3243, %v3349
      %v3402 = vsub.f32 %v3248, %v3351
      %v3403 = vsub.f32 %v3251, %v3353
      %v3404 = vsub.f32 %v3256, %v3355
      %v3405 = vsub.f32 %v3259, %v3357
      %v3406 = vsub.f32 %v3264, %v3359
      %v3407 = vsub.f32 %v3267, %v3361
      %v3408 = vsub.f32 %v3272, %v3363
      %v3409 = vsub.f32 %v3275, %v3365
      %v3410 = vsub.f32 %v3280, %v3367
      %v3411 = vsub.f32 %v3283, %v3369
      %v3412 = vsub.f32 %v3288, %v3371
      %v3413 = vsub.f32 %v3291, %v3373
      %v3414 = vsub.f32 %v3296, %v3375
      %v3415 = vsub.f32 %v3299, %v3377
      %v3416 = vsub.f32 %v3304, %v3379
      %v3417 = vsub.f32 %v3307, %v3381
      %v3418 = vsub.f32 %v3312, %v3383
      %v3419 = vsub.f32 %v3315, %v3385
      %v3420 = vsub.f32 %v3320, %v3387
      %v3421 = vsub.f32 %v3323, %v3389
      %v3422 = vmul.f32 %v3390, 1.442695
      %v3423 = vpow.pop %v3422
      %v3424 = vmul.f32 %v3391, 1.442695
      %v3425 = vpow.pop %v3424
      %v3426 = vmul.f32 %v3392, 1.442695
      %v3427 = vpow.pop %v3426
      %v3428 = vmul.f32 %v3393, 1.442695
      %v3429 = vpow.pop %v3428
      %v3430 = vmul.f32 %v3394, 1.442695
      %v3431 = vpow.pop %v3430
      %v3432 = vmul.f32 %v3395, 1.442695
      %v3433 = vpow.pop %v3432
      %v3434 = vmul.f32 %v3396, 1.442695
      %v3435 = vpow.pop %v3434
      %v3436 = vmul.f32 %v3397, 1.442695
      %v3437 = vpow.pop %v3436
      %v3438 = vmul.f32 %v3398, 1.442695
      %v3439 = vpow.pop %v3438
      %v3440 = vmul.f32 %v3399, 1.442695
      %v3441 = vpow.pop %v3440
      %v3442 = vmul.f32 %v3400, 1.442695
      %v3443 = vpow.pop %v3442
      %v3444 = vmul.f32 %v3401, 1.442695
      %v3445 = vpow.pop %v3444
      %v3446 = vmul.f32 %v3402, 1.442695
      %v3447 = vpow.pop %v3446
      %v3448 = vmul.f32 %v3403, 1.442695
      %v3449 = vpow.pop %v3448
      %v3450 = vmul.f32 %v3404, 1.442695
      %v3451 = vpow.pop %v3450
      %v3452 = vmul.f32 %v3405, 1.442695
      %v3453 = vpow.pop %v3452
      %v3454 = vmul.f32 %v3406, 1.442695
      %v3455 = vpow.pop %v3454
      %v3456 = vmul.f32 %v3407, 1.442695
      %v3457 = vpow.pop %v3456
      %v3458 = vmul.f32 %v3408, 1.442695
      %v3459 = vpow.pop %v3458
      %v3460 = vmul.f32 %v3409, 1.442695
      %v3461 = vpow.pop %v3460
      %v3462 = vmul.f32 %v3410, 1.442695
      %v3463 = vpow.pop %v3462
      %v3464 = vmul.f32 %v3411, 1.442695
      %v3465 = vpow.pop %v3464
      %v3466 = vmul.f32 %v3412, 1.442695
      %v3467 = vpow.pop %v3466
      %v3468 = vmul.f32 %v3413, 1.442695
      %v3469 = vpow.pop %v3468
      %v3470 = vmul.f32 %v3414, 1.442695
      %v3471 = vpow.pop %v3470
      %v3472 = vmul.f32 %v3415, 1.442695
      %v3473 = vpow.pop %v3472
      %v3474 = vmul.f32 %v3416, 1.442695
      %v3475 = vpow.pop %v3474
      %v3476 = vmul.f32 %v3417, 1.442695
      %v3477 = vpow.pop %v3476
      %v3478 = vmul.f32 %v3418, 1.442695
      %v3479 = vpow.pop %v3478
      %v3480 = vmul.f32 %v3419, 1.442695
      %v3481 = vpow.pop %v3480
      %v3482 = vmul.f32 %v3420, 1.442695
      %v3483 = vpow.pop %v3482
      %v3484 = vmul.f32 %v3421, 1.442695
      %v3485 = vpow.pop %v3484
      %v3486 = vsel %vm996, %v1041, 1.0
      %3487 = vmatprep.subr.mxu0 0.0
      %3488 = vmatpush1.xpose.msra.mxu0 %v3453
      %3489 = vmatprep.subr.mxu0 0.0
      %3490 = vmatpush1.xpose.msra.mxu0 %v3451
      %3491 = vmatprep.subr.mxu0 0.0
      %3492 = vmatpush1.xpose.msra.mxu0 %v3449
      %3493 = vmatprep.subr.mxu0 0.0
      %3494 = vmatpush1.xpose.msra.mxu0 %v3447
      %3495 = vmatprep.subr.mxu0 0.0
      %3496 = vmatpush1.xpose.msra.mxu0 %v3445
      %3497 = vmatprep.subr.mxu0 0.0
      %3498 = vmatpush1.xpose.msra.mxu0 %v3443
      %3499 = vmatprep.subr.mxu0 0.0
      %3500 = vmatpush1.xpose.msra.mxu0 %v3441
      %3501 = vmatprep.subr.mxu0 0.0
      %3502 = vmatpush1.xpose.msra.mxu0 %v3439
      %3503 = vmatprep.subr.mxu0 0.0
      %3504 = vmatpush1.xpose.msra.mxu0 %v3437
      %3505 = vmatprep.subr.mxu0 0.0
      %3506 = vmatpush1.xpose.msra.mxu0 %v3435
      %3507 = vmatprep.subr.mxu0 0.0
      %3508 = vmatpush1.xpose.msra.mxu0 %v3433
      %3509 = vmatprep.subr.mxu0 0.0
      %3510 = vmatpush1.xpose.msra.mxu0 %v3431
      %3511 = vmatprep.subr.mxu0 0.0
      %3512 = vmatpush1.xpose.msra.mxu0 %v3429
      %3513 = vmatprep.subr.mxu0 0.0
      %3514 = vmatpush1.xpose.msra.mxu0 %v3427
      %3515 = vmatprep.subr.mxu0 0.0
      %3516 = vmatpush1.xpose.msra.mxu0 %v3425
      %3517 = vmatprep.subr.mxu0 0.0
      %3518 = vmatpush1.xpose.msra.mxu0 %v3423
      %3519 = vmatprep.subr.mxu0 0.0
      %3520 = vmatpush2.xpose.msra.mxu0 %v3485
      %3521 = vmatprep.subr.mxu0 0.0
      %3522 = vmatpush2.xpose.msra.mxu0 %v3483
      %3523 = vmatprep.subr.mxu0 0.0
      %3524 = vmatpush2.xpose.msra.mxu0 %v3481
      %3525 = vmatprep.subr.mxu0 0.0
      %3526 = vmatpush2.xpose.msra.mxu0 %v3479
      %3527 = vmatprep.subr.mxu0 0.0
      %3528 = vmatpush2.xpose.msra.mxu0 %v3477
      %3529 = vmatprep.subr.mxu0 0.0
      %3530 = vmatpush2.xpose.msra.mxu0 %v3475
      %3531 = vmatprep.subr.mxu0 0.0
      %3532 = vmatpush2.xpose.msra.mxu0 %v3473
      %3533 = vmatprep.subr.mxu0 0.0
      %3534 = vmatpush2.xpose.msra.mxu0 %v3471
      %3535 = vmatprep.subr.mxu0 0.0
      %3536 = vmatpush2.xpose.msra.mxu0 %v3469
      %3537 = vmatprep.subr.mxu0 0.0
      %3538 = vmatpush2.xpose.msra.mxu0 %v3467
      %3539 = vmatprep.subr.mxu0 0.0
      %3540 = vmatpush2.xpose.msra.mxu0 %v3465
      %3541 = vmatprep.subr.mxu0 0.0
      %3542 = vmatpush2.xpose.msra.mxu0 %v3463
      %3543 = vmatprep.subr.mxu0 0.0
      %3544 = vmatpush2.xpose.msra.mxu0 %v3461
      %3545 = vmatprep.subr.mxu0 0.0
      %3546 = vmatpush2.xpose.msra.mxu0 %v3459
      %3547 = vmatprep.subr.mxu0 0.0
      %3548 = vmatpush2.xpose.msra.mxu0 %v3457
      %3549 = vmatprep.subr.mxu0 0.0
      %3550 = vmatpush2.xpose.msra.mxu0 %v3455
      %3551 = vmatprep.mubr.f32.mxu0 0.0
      %3552 = vmatmul.mubr.f32.gmra.mxu0 %v3486
      %v3553 = vpop.f32.mrf.mxu0
      %v3554 = vadd.f32 0.0, %v3553
      %v3555 = vpop.f32.mrf.mxu0
      %v3556 = vadd.f32 0.0, %v3555
      %3557 = vdwg.mxu0
      %v3558 = vrcp.pop %v3554
      %v3559 = vrcp.pop %v3556
      %v3562 = vrot.slane %v3558, 1
      %v3563 = vrot.slane %v3559, 1
      %v3566 = vmul.f32 %v3554, %v3562
      %v3567 = vmul.f32 %v3556, %v3563
      %v3570 = vcombine.low %v3566, %v3567
      %v3572 = vunpack.c.l.s4 1966171168
      %v3573 = vunpack.c.0.s8 %v3572
      %v3574 = vlaneseq
      %v3575 = vshrl.u32 %v3574, 7
      %v3576 = vsub.s32 %v3573, %v3575
      %v3577 = vrot.slane %v3570, %v3576
      %v3579 = vunpack.c.l.s4 1966171168
      %v3580 = vunpack.c.0.s8 %v3579
      %v3581 = vlaneseq
      %v3582 = vshrl.u32 %v3581, 7
      %v3583 = vsub.s32 %v3580, %v3582
      %v3584 = vrot.slane %v3577, %v3583
      %v3586 = vlaneseq
      %vm3587 = vcmp.ge.s32.totalorder %v3586, 0
      %vm3588 = vcmp.lt.s32.totalorder %v3586, 256
      %vm3589 = vmand %vm3587, %vm3588
      %3590 = vst.msk [vmem:[%s407] sm:$0x3] %vm3589, %v3584
      %p3591 = scmp.lt.s32.totalorder %s23, 1
      %s3592 = scalar_select %p3591, %s23, 1
      %s3593 = scalar_lea.vmem %s10, %s3592
      %p3594 = scmp.lt.s32.totalorder %s23, 1
      %s3595 = scalar_select %p3594, %s23, 1
      %s3596 = smul.addr %s3595, 2
      %s3597 = scalar_lea.vmem %s11, %s3596
      // Predicated region
      $region61: #{swin_adabin_forward.1} parent=59 // pred_check
        %p3598 = pneg %p261
      $region62: #{swin_adabin_forward.1} parent=59 // pred_check_branch
        %3600 = sbr.rel (%p3598) target = $region64
      $region63: #{swin_adabin_forward.1} parent=59 // pred_region
        _
      $region64: #{swin_adabin_forward.1} parent=59 // pred_fallthru
        _
      // Predicated region
      $region65: #{swin_adabin_forward.1} parent=59 // pred_check
        %p3601 = pneg %p287
      $region66: #{swin_adabin_forward.1} parent=59 // pred_check_branch
        %3603 = sbr.rel (%p3601) target = $region68
      $region67: #{swin_adabin_forward.1} parent=59 // pred_region
        _
      $region68: #{swin_adabin_forward.1} parent=59 // pred_fallthru
        _
    $region60: #{swin_adabin_forward.1} parent=5 // pred_fallthru
      _
    %p3604 = scmp.le.s32.totalorder 2, %s18
    // Predicated region
    $region69: #{swin_adabin_forward.1} parent=5 // pred_check
      %p3605 = pneg %p3604
    $region70: #{swin_adabin_forward.1} parent=5 // pred_check_branch
      %3607 = sbr.rel (%p3605) target = $region72
    $region71: #{swin_adabin_forward.1} parent=5 // pred_region
      %s3608 = ssub.s32 %s18, 2
      // Predicated region
      $region73: #{swin_adabin_forward.1} parent=71 // pred_check
        %p3609 = pneg %p267
      $region74: #{swin_adabin_forward.1} parent=71 // pred_check_branch
        %3611 = sbr.rel (%p3609) target = $region76
      $region75: #{swin_adabin_forward.1} parent=71 // pred_region
        %p3612 = scmp.lt.s32.totalorder %s24, 1
        %s3613 = scalar_select %p3612, %s24, 1
        %s3614 = scalar_lea.vmem %s10, %s3613
      $region76: #{swin_adabin_forward.1} parent=71 // pred_fallthru
        _
      // Predicated region
      $region77: #{swin_adabin_forward.1} parent=71 // pred_check
        %p3615 = pneg %p293
      $region78: #{swin_adabin_forward.1} parent=71 // pred_check_branch
        %3617 = sbr.rel (%p3615) target = $region80
      $region79: #{swin_adabin_forward.1} parent=71 // pred_region
        %p3618 = scmp.lt.s32.totalorder %s24, 1
        %s3619 = scalar_select %p3618, %s24, 1
        %s3620 = smul.addr %s3619, 2
        %s3621 = scalar_lea.vmem %s11, %s3620
      $region80: #{swin_adabin_forward.1} parent=71 // pred_fallthru
        _
    $region72: #{swin_adabin_forward.1} parent=5 // pred_fallthru
      _
  $region6: #{swin_adabin_forward.1} parent=0 // loop_footer
    %s22 = sadd.s32 1, %s18
  $region7: #{swin_adabin_forward.1} parent=0 // loop_footer_branch
    %17 = sbr.rel target = $region3
  $region8: #{swin_adabin_forward.1} parent=0 // loop_exit
    _

</llo_original>
